<compile_context>
chip_gen: v6e
topology: v6e:2x2x1
jax: 0.10.0
libtpu: 0.0.40
codegen_flags: <defaults>
</compile_context>

<pallas_src>
import functools

import jax
import jax.numpy as jnp
from jax import lax
from jax.experimental import pallas as pl
from jax.experimental.pallas import tpu as pltpu


def _make_dae_kernel(T_enc, T_dec, B, H):
    """Build the kernel with static shape info (T_enc, T_dec, B, H) captured in the closure."""

    def _sigmoid(x):
        # 1 EUP push per vreg (tanh) instead of exp + reciprocal.
        return 0.5 * jnp.tanh(0.5 * x) + 0.5

    def _lstm_step(xw_t, h, c, w_hh_ref):
        # xw_t = x_t @ W_ih + b  (precomputed, f32).  Only h @ W_hh (K = H) stays on the
        # serial dependent chain.  Gate columns are pre-ordered (i, f, o, g).
        gates = xw_t + jnp.dot(h.astype(w_hh_ref.dtype), w_hh_ref[...],
                               preferred_element_type=jnp.float32)        # (B, 4H) f32
        sig = _sigmoid(gates[:, :3 * H])                                   # (B, 3H): i, f, o
        g = jnp.tanh(gates[:, 3 * H:])                                     # (B, H)
        i = sig[:, 0 * H:1 * H]
        f = sig[:, 1 * H:2 * H]
        o = sig[:, 2 * H:3 * H]
        c_new = f * c + i * g
        h_new = o * jnp.tanh(c_new)
        return h_new, c_new

    def kernel(enc_x_ref, dec_x_ref,
               w_ih_e_ref, w_hh_e_ref, b_e_ref,
               w_ih_d_ref, w_hh_d_ref, b_d_ref,
               w_fc_ref, b_fc_ref,
               out_ref):
        # ---- hoisted input projections (batched MXU matmuls, biases folded in) ----
        xw_e = jnp.dot(enc_x_ref[...], w_ih_e_ref[...],
                       preferred_element_type=jnp.float32) + b_e_ref[...]   # (T_enc*B, 4H)
        xw_d = jnp.dot(dec_x_ref[...], w_ih_d_ref[...],
                       preferred_element_type=jnp.float32) + b_d_ref[...]   # (T_dec*B, 4H)

        h = jnp.zeros((B, H), jnp.float32)
        c = jnp.zeros((B, H), jnp.float32)

        # ---- encoder LSTM: only final (h, c) is needed ----
        # TODO(synk): if T_enc grows well beyond 8, switch this to lax.fori_loop(unroll=k)
        # to bound live ranges (Python unrolling does not).
        for t in range(T_enc):
            h, c = _lstm_step(xw_e[t * B:(t + 1) * B, :], h, c, w_hh_e_ref)

        # ---- decoder LSTM (initialized with encoder state); collect h_t in registers ----
        hs = []
        for t in range(T_dec):
            h, c = _lstm_step(xw_d[t * B:(t + 1) * B, :], h, c, w_hh_d_ref)
            hs.append(h.astype(w_fc_ref.dtype))                             # bf16 for fc

        hcat = jnp.concatenate(hs, axis=0)                                  # (T_dec*B, H) bf16

        # ---- batched fc projection: one MXU matmul + one lane-dense store ----
        logits = jnp.dot(hcat, w_fc_ref[...],
                         preferred_element_type=jnp.float32) + b_fc_ref[...]
        out_ref[...] = logits.astype(out_ref.dtype)                         # (T_dec*B, V)

    return kernel


def _reorder_ifgo_to_ifog(x, H):
    """Reorder gate columns from PyTorch's (i, f, g, o) to (i, f, o, g)."""
    i = x[..., 0 * H:1 * H]
    f = x[..., 1 * H:2 * H]
    g = x[..., 2 * H:3 * H]
    o = x[..., 3 * H:4 * H]
    return jnp.concatenate([i, f, o, g], axis=-1)


def _pack_params(params):
    """Reorder gates, cast weights to bf16 (f32 accumulation in-kernel). W_ih / W_hh stay split."""
    H = params["w_hh_e"].shape[0]
    w_ih_e = _reorder_ifgo_to_ifog(params["w_ih_e"], H).astype(jnp.bfloat16)
    w_hh_e = _reorder_ifgo_to_ifog(params["w_hh_e"], H).astype(jnp.bfloat16)
    w_ih_d = _reorder_ifgo_to_ifog(params["w_ih_d"], H).astype(jnp.bfloat16)
    w_hh_d = _reorder_ifgo_to_ifog(params["w_hh_d"], H).astype(jnp.bfloat16)
    b_e = _reorder_ifgo_to_ifog(params["b_e"], H).astype(jnp.float32)
    b_d = _reorder_ifgo_to_ifog(params["b_d"], H).astype(jnp.float32)
    w_fc = params["w_fc"].astype(jnp.bfloat16)
    b_fc = params["b_fc"].astype(jnp.float32)
    return w_ih_e, w_hh_e, b_e, w_ih_d, w_hh_d, b_d, w_fc, b_fc


@functools.partial(jax.jit, static_argnames=())
def denoising_autoencoder_forward(encoder_input, decoder_input, params):
    """Glue: embedding gathers, layout transpose/flatten, weight packing, pallas_call."""
    emb_enc = params["emb_enc"]          # (V, E), row 0 is zero (padding_idx=0)
    emb_dec = params["emb_dec"]          # (V, E), row 0 is zero
    V, E = emb_enc.shape
    H = params["w_hh_e"].shape[0]

    B, T_enc = encoder_input.shape
    _, T_dec = decoder_input.shape

    # Embedding lookup (gather) in plain JAX; time-major flattened bf16 activations.
    enc_x = jnp.transpose(emb_enc[encoder_input], (1, 0, 2)).reshape(T_enc * B, E)
    dec_x = jnp.transpose(emb_dec[decoder_input], (1, 0, 2)).reshape(T_dec * B, E)
    enc_x = enc_x.astype(jnp.bfloat16)
    dec_x = dec_x.astype(jnp.bfloat16)

    w_ih_e, w_hh_e, b_e, w_ih_d, w_hh_d, b_d, w_fc, b_fc = _pack_params(params)

    vmem_spec = pl.BlockSpec(memory_space=pltpu.MemorySpace.VMEM)

    # TODO(synk): for large vocab / long T / big batch, add a grid tiled over V (lane-dense
    # multiple-of-128 out BlockSpec) and a "parallel" batch axis for v7x's 2 TensorCores,
    # instead of keeping the whole problem VMEM-resident (~1 MiB today, fits all generations).
    out_flat = pl.pallas_call(
        _make_dae_kernel(T_enc, T_dec, B, H),
        out_shape=jax.ShapeDtypeStruct((T_dec * B, V), jnp.float32),
        in_specs=[vmem_spec] * 10,
        out_specs=vmem_spec,
    )(enc_x, dec_x, w_ih_e, w_hh_e, b_e, w_ih_d, w_hh_d, b_d, w_fc, b_fc)

    # back to batch_first (B, T_dec, V) to match PyTorch
    return jnp.transpose(out_flat.reshape(T_dec, B, V), (1, 0, 2))


def _reference_forward(encoder_input, decoder_input, params):
    """Pure-JAX f32 reference replicating PyTorch semantics (for sanity check)."""
    emb_enc = params["emb_enc"]
    emb_dec = params["emb_dec"]
    H = params["w_hh_e"].shape[0]

    def lstm_scan(emb_seq_tm, h, c, w_ih, w_hh, b):
        def step(carry, x_t):
            h, c = carry
            gates = x_t @ w_ih + h @ w_hh + b
            i = jax.nn.sigmoid(gates[:, 0 * H:1 * H])
            f = jax.nn.sigmoid(gates[:, 1 * H:2 * H])
            g = jnp.tanh(gates[:, 2 * H:3 * H])
            o = jax.nn.sigmoid(gates[:, 3 * H:4 * H])
            c_new = f * c + i * g
            h_new = o * jnp.tanh(c_new)
            return (h_new, c_new), h_new
        (h, c), hs = lax.scan(step, (h, c), emb_seq_tm)
        return h, c, hs

    B = encoder_input.shape[0]
    enc_emb = jnp.transpose(emb_enc[encoder_input], (1, 0, 2)).astype(jnp.float32)
    dec_emb = jnp.transpose(emb_dec[decoder_input], (1, 0, 2)).astype(jnp.float32)

    h0 = jnp.zeros((B, H), jnp.float32)
    c0 = jnp.zeros((B, H), jnp.float32)
    h, c, _ = lstm_scan(enc_emb, h0, c0, params["w_ih_e"], params["w_hh_e"], params["b_e"])
    _, _, hs = lstm_scan(dec_emb, h, c, params["w_ih_d"], params["w_hh_d"], params["b_d"])
    logits_tm = hs @ params["w_fc"] + params["b_fc"]
    return jnp.transpose(logits_tm, (1, 0, 2))


def init_params(key, vocab_size, embedding_dim, latent_dim):
    """Deterministic synthetic parameters (no checkpoint loading)."""
    ks = jax.random.split(key, 12)
    u = lambda k, shape, s=0.1: jax.random.uniform(k, shape, jnp.float32, -s, s)

    emb_enc = u(ks[0], (vocab_size, embedding_dim))
    emb_dec = u(ks[1], (vocab_size, embedding_dim))
    # padding_idx=0 -> embedding row 0 is zero
    emb_enc = emb_enc.at[0].set(0.0)
    emb_dec = emb_dec.at[0].set(0.0)

    H4 = 4 * latent_dim
    params = {
        "emb_enc": emb_enc,
        "emb_dec": emb_dec,
        # LSTM weights stored pre-transposed: (in, 4H) / (H, 4H); bias = b_ih + b_hh, shape (1, 4H)
        # (gate column order i, f, g, o as in PyTorch; kernel-side packing reorders to i, f, o, g)
        "w_ih_e": u(ks[2], (embedding_dim, H4)),
        "w_hh_e": u(ks[3], (latent_dim, H4)),
        "b_e": u(ks[4], (1, H4)) + u(ks[5], (1, H4)),
        "w_ih_d": u(ks[6], (embedding_dim, H4)),
        "w_hh_d": u(ks[7], (latent_dim, H4)),
        "b_d": u(ks[8], (1, H4)) + u(ks[9], (1, H4)),
        # fc: (H, V) pre-transposed, bias (1, V)
        "w_fc": u(ks[10], (latent_dim, vocab_size)),
        "b_fc": u(ks[11], (1, vocab_size)),
    }
    return params


if __name__ == "__main__":
    # Small shapes consistent with the module (token-id sequences in, logits out).
    vocab_size = 256
    embedding_dim = 128
    latent_dim = 128
    batch = 2
    seq_len = 8

    key = jax.random.PRNGKey(0)
    k_params, k_enc, k_dec = jax.random.split(key, 3)

    params = init_params(k_params, vocab_size, embedding_dim, latent_dim)

    encoder_input = jax.random.randint(k_enc, (batch, seq_len), 0, vocab_size, dtype=jnp.int32)
    decoder_input = jax.random.randint(k_dec, (batch, seq_len), 0, vocab_size, dtype=jnp.int32)

    logits = denoising_autoencoder_forward(encoder_input, decoder_input, params)
    logits = jax.block_until_ready(logits)

    assert logits.shape == (batch, seq_len, vocab_size), logits.shape
    assert bool(jnp.all(jnp.isfinite(logits)))

    # Sanity check against a pure-f32 JAX reference of the same math
    # (tolerance loosened because kernel weights/matmul inputs are bf16 with f32 accumulation;
    #  the recurrent h/c state itself is carried in f32, so drift stays bounded over T).
    ref = jax.block_until_ready(_reference_forward(encoder_input, decoder_input, params))
    assert jnp.allclose(logits, ref, rtol=2e-2, atol=2e-2), float(jnp.max(jnp.abs(logits - ref)))

    print("KERNEL_OK")
</pallas_src>

<mosaic_0001>
module attributes {stable_mosaic.version = 11 : i64} {
  func.func @kernel(%arg0: memref<16x128xbf16, #tpu.memory_space<vmem>>, %arg1: memref<16x128xbf16, #tpu.memory_space<vmem>>, %arg2: memref<128x512xbf16, #tpu.memory_space<vmem>>, %arg3: memref<128x512xbf16, #tpu.memory_space<vmem>>, %arg4: memref<1x512xf32, #tpu.memory_space<vmem>>, %arg5: memref<128x512xbf16, #tpu.memory_space<vmem>>, %arg6: memref<128x512xbf16, #tpu.memory_space<vmem>>, %arg7: memref<1x512xf32, #tpu.memory_space<vmem>>, %arg8: memref<128x256xbf16, #tpu.memory_space<vmem>>, %arg9: memref<1x256xf32, #tpu.memory_space<vmem>>, %arg10: memref<16x256xf32, #tpu.memory_space<vmem>>) attributes {dimension_semantics = [], scalar_prefetch = 0 : i64, scratch_operands = 0 : i64, tpu.core_type = #tpu.core_type<tc>} {
    %c0 = arith.constant 0 : index
    %c0_0 = arith.constant 0 : index
    %0 = vector.load %arg0[%c0, %c0_0] : memref<16x128xbf16, #tpu.memory_space<vmem>>, vector<16x128xbf16>
    %c0_1 = arith.constant 0 : index
    %c0_2 = arith.constant 0 : index
    %1 = vector.load %arg2[%c0_1, %c0_2] : memref<128x512xbf16, #tpu.memory_space<vmem>>, vector<128x512xbf16>
    %cst = arith.constant dense<0.000000e+00> : vector<16x512xf32>
    %2 = tpu.matmul %0, %1, %cst {dimension_numbers = #tpu.dot_dimension_numbers<[1], [0], [0], [1], [0, 0, 1, 1], [], []>} : vector<16x128xbf16>, vector<128x512xbf16>, vector<16x512xf32> -> vector<16x512xf32>
    %c0_3 = arith.constant 0 : index
    %c0_4 = arith.constant 0 : index
    %3 = vector.load %arg4[%c0_3, %c0_4] : memref<1x512xf32, #tpu.memory_space<vmem>>, vector<1x512xf32>
    %4 = vector.broadcast %3 : vector<1x512xf32> to vector<16x512xf32>
    %5 = arith.addf %2, %4 : vector<16x512xf32>
    %c0_5 = arith.constant 0 : index
    %c0_6 = arith.constant 0 : index
    %6 = vector.load %arg1[%c0_5, %c0_6] : memref<16x128xbf16, #tpu.memory_space<vmem>>, vector<16x128xbf16>
    %c0_7 = arith.constant 0 : index
    %c0_8 = arith.constant 0 : index
    %7 = vector.load %arg5[%c0_7, %c0_8] : memref<128x512xbf16, #tpu.memory_space<vmem>>, vector<128x512xbf16>
    %cst_9 = arith.constant dense<0.000000e+00> : vector<16x512xf32>
    %8 = tpu.matmul %6, %7, %cst_9 {dimension_numbers = #tpu.dot_dimension_numbers<[1], [0], [0], [1], [0, 0, 1, 1], [], []>} : vector<16x128xbf16>, vector<128x512xbf16>, vector<16x512xf32> -> vector<16x512xf32>
    %c0_10 = arith.constant 0 : index
    %c0_11 = arith.constant 0 : index
    %9 = vector.load %arg7[%c0_10, %c0_11] : memref<1x512xf32, #tpu.memory_space<vmem>>, vector<1x512xf32>
    %10 = vector.broadcast %9 : vector<1x512xf32> to vector<16x512xf32>
    %11 = arith.addf %8, %10 : vector<16x512xf32>
    %cst_12 = arith.constant 0.000000e+00 : f32
    %12 = vector.broadcast %cst_12 : f32 to vector<2x128xf32>
    %cst_13 = arith.constant 0.000000e+00 : f32
    %13 = vector.broadcast %cst_13 : f32 to vector<2x128xf32>
    %14 = vector.extract_strided_slice %5 {offsets = [0, 0], sizes = [2, 512], strides = [1, 1]} : vector<16x512xf32> to vector<2x512xf32>
    %15 = arith.truncf %12 : vector<2x128xf32> to vector<2x128xbf16>
    %c0_14 = arith.constant 0 : index
    %c0_15 = arith.constant 0 : index
    %16 = vector.load %arg3[%c0_14, %c0_15] : memref<128x512xbf16, #tpu.memory_space<vmem>>, vector<128x512xbf16>
    %cst_16 = arith.constant dense<0.000000e+00> : vector<2x512xf32>
    %17 = tpu.matmul %15, %16, %cst_16 {dimension_numbers = #tpu.dot_dimension_numbers<[1], [0], [0], [1], [0, 0, 1, 1], [], []>} : vector<2x128xbf16>, vector<128x512xbf16>, vector<2x512xf32> -> vector<2x512xf32>
    %18 = arith.addf %14, %17 : vector<2x512xf32>
    %19 = vector.extract_strided_slice %18 {offsets = [0, 0], sizes = [2, 384], strides = [1, 1]} : vector<2x512xf32> to vector<2x384xf32>
    %cst_17 = arith.constant 5.000000e-01 : f32
    %20 = vector.broadcast %cst_17 : f32 to vector<2x384xf32>
    %21 = arith.mulf %20, %19 : vector<2x384xf32>
    %22 = math.tanh %21 : vector<2x384xf32>
    %cst_18 = arith.constant 5.000000e-01 : f32
    %23 = vector.broadcast %cst_18 : f32 to vector<2x384xf32>
    %24 = arith.mulf %23, %22 : vector<2x384xf32>
    %cst_19 = arith.constant 5.000000e-01 : f32
    %25 = vector.broadcast %cst_19 : f32 to vector<2x384xf32>
    %26 = arith.addf %24, %25 : vector<2x384xf32>
    %27 = vector.extract_strided_slice %18 {offsets = [0, 384], sizes = [2, 128], strides = [1, 1]} : vector<2x512xf32> to vector<2x128xf32>
    %28 = math.tanh %27 : vector<2x128xf32>
    %29 = vector.extract_strided_slice %26 {offsets = [0, 0], sizes = [2, 128], strides = [1, 1]} : vector<2x384xf32> to vector<2x128xf32>
    %30 = vector.extract_strided_slice %26 {offsets = [0, 128], sizes = [2, 128], strides = [1, 1]} : vector<2x384xf32> to vector<2x128xf32>
    %31 = vector.extract_strided_slice %26 {offsets = [0, 256], sizes = [2, 128], strides = [1, 1]} : vector<2x384xf32> to vector<2x128xf32>
    %32 = arith.mulf %30, %13 : vector<2x128xf32>
    %33 = arith.mulf %29, %28 : vector<2x128xf32>
    %34 = arith.addf %32, %33 : vector<2x128xf32>
    %35 = math.tanh %34 : vector<2x128xf32>
    %36 = arith.mulf %31, %35 : vector<2x128xf32>
    %37 = vector.extract_strided_slice %5 {offsets = [2, 0], sizes = [2, 512], strides = [1, 1]} : vector<16x512xf32> to vector<2x512xf32>
    %38 = arith.truncf %36 : vector<2x128xf32> to vector<2x128xbf16>
    %c0_20 = arith.constant 0 : index
    %c0_21 = arith.constant 0 : index
    %39 = vector.load %arg3[%c0_20, %c0_21] : memref<128x512xbf16, #tpu.memory_space<vmem>>, vector<128x512xbf16>
    %cst_22 = arith.constant dense<0.000000e+00> : vector<2x512xf32>
    %40 = tpu.matmul %38, %39, %cst_22 {dimension_numbers = #tpu.dot_dimension_numbers<[1], [0], [0], [1], [0, 0, 1, 1], [], []>} : vector<2x128xbf16>, vector<128x512xbf16>, vector<2x512xf32> -> vector<2x512xf32>
    %41 = arith.addf %37, %40 : vector<2x512xf32>
    %42 = vector.extract_strided_slice %41 {offsets = [0, 0], sizes = [2, 384], strides = [1, 1]} : vector<2x512xf32> to vector<2x384xf32>
    %cst_23 = arith.constant 5.000000e-01 : f32
    %43 = vector.broadcast %cst_23 : f32 to vector<2x384xf32>
    %44 = arith.mulf %43, %42 : vector<2x384xf32>
    %45 = math.tanh %44 : vector<2x384xf32>
    %cst_24 = arith.constant 5.000000e-01 : f32
    %46 = vector.broadcast %cst_24 : f32 to vector<2x384xf32>
    %47 = arith.mulf %46, %45 : vector<2x384xf32>
    %cst_25 = arith.constant 5.000000e-01 : f32
    %48 = vector.broadcast %cst_25 : f32 to vector<2x384xf32>
    %49 = arith.addf %47, %48 : vector<2x384xf32>
    %50 = vector.extract_strided_slice %41 {offsets = [0, 384], sizes = [2, 128], strides = [1, 1]} : vector<2x512xf32> to vector<2x128xf32>
    %51 = math.tanh %50 : vector<2x128xf32>
    %52 = vector.extract_strided_slice %49 {offsets = [0, 0], sizes = [2, 128], strides = [1, 1]} : vector<2x384xf32> to vector<2x128xf32>
    %53 = vector.extract_strided_slice %49 {offsets = [0, 128], sizes = [2, 128], strides = [1, 1]} : vector<2x384xf32> to vector<2x128xf32>
    %54 = vector.extract_strided_slice %49 {offsets = [0, 256], sizes = [2, 128], strides = [1, 1]} : vector<2x384xf32> to vector<2x128xf32>
    %55 = arith.mulf %53, %34 : vector<2x128xf32>
    %56 = arith.mulf %52, %51 : vector<2x128xf32>
    %57 = arith.addf %55, %56 : vector<2x128xf32>
    %58 = math.tanh %57 : vector<2x128xf32>
    %59 = arith.mulf %54, %58 : vector<2x128xf32>
    %60 = vector.extract_strided_slice %5 {offsets = [4, 0], sizes = [2, 512], strides = [1, 1]} : vector<16x512xf32> to vector<2x512xf32>
    %61 = arith.truncf %59 : vector<2x128xf32> to vector<2x128xbf16>
    %c0_26 = arith.constant 0 : index
    %c0_27 = arith.constant 0 : index
    %62 = vector.load %arg3[%c0_26, %c0_27] : memref<128x512xbf16, #tpu.memory_space<vmem>>, vector<128x512xbf16>
    %cst_28 = arith.constant dense<0.000000e+00> : vector<2x512xf32>
    %63 = tpu.matmul %61, %62, %cst_28 {dimension_numbers = #tpu.dot_dimension_numbers<[1], [0], [0], [1], [0, 0, 1, 1], [], []>} : vector<2x128xbf16>, vector<128x512xbf16>, vector<2x512xf32> -> vector<2x512xf32>
    %64 = arith.addf %60, %63 : vector<2x512xf32>
    %65 = vector.extract_strided_slice %64 {offsets = [0, 0], sizes = [2, 384], strides = [1, 1]} : vector<2x512xf32> to vector<2x384xf32>
    %cst_29 = arith.constant 5.000000e-01 : f32
    %66 = vector.broadcast %cst_29 : f32 to vector<2x384xf32>
    %67 = arith.mulf %66, %65 : vector<2x384xf32>
    %68 = math.tanh %67 : vector<2x384xf32>
    %cst_30 = arith.constant 5.000000e-01 : f32
    %69 = vector.broadcast %cst_30 : f32 to vector<2x384xf32>
    %70 = arith.mulf %69, %68 : vector<2x384xf32>
    %cst_31 = arith.constant 5.000000e-01 : f32
    %71 = vector.broadcast %cst_31 : f32 to vector<2x384xf32>
    %72 = arith.addf %70, %71 : vector<2x384xf32>
    %73 = vector.extract_strided_slice %64 {offsets = [0, 384], sizes = [2, 128], strides = [1, 1]} : vector<2x512xf32> to vector<2x128xf32>
    %74 = math.tanh %73 : vector<2x128xf32>
    %75 = vector.extract_strided_slice %72 {offsets = [0, 0], sizes = [2, 128], strides = [1, 1]} : vector<2x384xf32> to vector<2x128xf32>
    %76 = vector.extract_strided_slice %72 {offsets = [0, 128], sizes = [2, 128], strides = [1, 1]} : vector<2x384xf32> to vector<2x128xf32>
    %77 = vector.extract_strided_slice %72 {offsets = [0, 256], sizes = [2, 128], strides = [1, 1]} : vector<2x384xf32> to vector<2x128xf32>
    %78 = arith.mulf %76, %57 : vector<2x128xf32>
    %79 = arith.mulf %75, %74 : vector<2x128xf32>
    %80 = arith.addf %78, %79 : vector<2x128xf32>
    %81 = math.tanh %80 : vector<2x128xf32>
    %82 = arith.mulf %77, %81 : vector<2x128xf32>
    %83 = vector.extract_strided_slice %5 {offsets = [6, 0], sizes = [2, 512], strides = [1, 1]} : vector<16x512xf32> to vector<2x512xf32>
    %84 = arith.truncf %82 : vector<2x128xf32> to vector<2x128xbf16>
    %c0_32 = arith.constant 0 : index
    %c0_33 = arith.constant 0 : index
    %85 = vector.load %arg3[%c0_32, %c0_33] : memref<128x512xbf16, #tpu.memory_space<vmem>>, vector<128x512xbf16>
    %cst_34 = arith.constant dense<0.000000e+00> : vector<2x512xf32>
    %86 = tpu.matmul %84, %85, %cst_34 {dimension_numbers = #tpu.dot_dimension_numbers<[1], [0], [0], [1], [0, 0, 1, 1], [], []>} : vector<2x128xbf16>, vector<128x512xbf16>, vector<2x512xf32> -> vector<2x512xf32>
    %87 = arith.addf %83, %86 : vector<2x512xf32>
    %88 = vector.extract_strided_slice %87 {offsets = [0, 0], sizes = [2, 384], strides = [1, 1]} : vector<2x512xf32> to vector<2x384xf32>
    %cst_35 = arith.constant 5.000000e-01 : f32
    %89 = vector.broadcast %cst_35 : f32 to vector<2x384xf32>
    %90 = arith.mulf %89, %88 : vector<2x384xf32>
    %91 = math.tanh %90 : vector<2x384xf32>
    %cst_36 = arith.constant 5.000000e-01 : f32
    %92 = vector.broadcast %cst_36 : f32 to vector<2x384xf32>
    %93 = arith.mulf %92, %91 : vector<2x384xf32>
    %cst_37 = arith.constant 5.000000e-01 : f32
    %94 = vector.broadcast %cst_37 : f32 to vector<2x384xf32>
    %95 = arith.addf %93, %94 : vector<2x384xf32>
    %96 = vector.extract_strided_slice %87 {offsets = [0, 384], sizes = [2, 128], strides = [1, 1]} : vector<2x512xf32> to vector<2x128xf32>
    %97 = math.tanh %96 : vector<2x128xf32>
    %98 = vector.extract_strided_slice %95 {offsets = [0, 0], sizes = [2, 128], strides = [1, 1]} : vector<2x384xf32> to vector<2x128xf32>
    %99 = vector.extract_strided_slice %95 {offsets = [0, 128], sizes = [2, 128], strides = [1, 1]} : vector<2x384xf32> to vector<2x128xf32>
    %100 = vector.extract_strided_slice %95 {offsets = [0, 256], sizes = [2, 128], strides = [1, 1]} : vector<2x384xf32> to vector<2x128xf32>
    %101 = arith.mulf %99, %80 : vector<2x128xf32>
    %102 = arith.mulf %98, %97 : vector<2x128xf32>
    %103 = arith.addf %101, %102 : vector<2x128xf32>
    %104 = math.tanh %103 : vector<2x128xf32>
    %105 = arith.mulf %100, %104 : vector<2x128xf32>
    %106 = vector.extract_strided_slice %5 {offsets = [8, 0], sizes = [2, 512], strides = [1, 1]} : vector<16x512xf32> to vector<2x512xf32>
    %107 = arith.truncf %105 : vector<2x128xf32> to vector<2x128xbf16>
    %c0_38 = arith.constant 0 : index
    %c0_39 = arith.constant 0 : index
    %108 = vector.load %arg3[%c0_38, %c0_39] : memref<128x512xbf16, #tpu.memory_space<vmem>>, vector<128x512xbf16>
    %cst_40 = arith.constant dense<0.000000e+00> : vector<2x512xf32>
    %109 = tpu.matmul %107, %108, %cst_40 {dimension_numbers = #tpu.dot_dimension_numbers<[1], [0], [0], [1], [0, 0, 1, 1], [], []>} : vector<2x128xbf16>, vector<128x512xbf16>, vector<2x512xf32> -> vector<2x512xf32>
    %110 = arith.addf %106, %109 : vector<2x512xf32>
    %111 = vector.extract_strided_slice %110 {offsets = [0, 0], sizes = [2, 384], strides = [1, 1]} : vector<2x512xf32> to vector<2x384xf32>
    %cst_41 = arith.constant 5.000000e-01 : f32
    %112 = vector.broadcast %cst_41 : f32 to vector<2x384xf32>
    %113 = arith.mulf %112, %111 : vector<2x384xf32>
    %114 = math.tanh %113 : vector<2x384xf32>
    %cst_42 = arith.constant 5.000000e-01 : f32
    %115 = vector.broadcast %cst_42 : f32 to vector<2x384xf32>
    %116 = arith.mulf %115, %114 : vector<2x384xf32>
    %cst_43 = arith.constant 5.000000e-01 : f32
    %117 = vector.broadcast %cst_43 : f32 to vector<2x384xf32>
    %118 = arith.addf %116, %117 : vector<2x384xf32>
    %119 = vector.extract_strided_slice %110 {offsets = [0, 384], sizes = [2, 128], strides = [1, 1]} : vector<2x512xf32> to vector<2x128xf32>
    %120 = math.tanh %119 : vector<2x128xf32>
    %121 = vector.extract_strided_slice %118 {offsets = [0, 0], sizes = [2, 128], strides = [1, 1]} : vector<2x384xf32> to vector<2x128xf32>
    %122 = vector.extract_strided_slice %118 {offsets = [0, 128], sizes = [2, 128], strides = [1, 1]} : vector<2x384xf32> to vector<2x128xf32>
    %123 = vector.extract_strided_slice %118 {offsets = [0, 256], sizes = [2, 128], strides = [1, 1]} : vector<2x384xf32> to vector<2x128xf32>
    %124 = arith.mulf %122, %103 : vector<2x128xf32>
    %125 = arith.mulf %121, %120 : vector<2x128xf32>
    %126 = arith.addf %124, %125 : vector<2x128xf32>
    %127 = math.tanh %126 : vector<2x128xf32>
    %128 = arith.mulf %123, %127 : vector<2x128xf32>
    %129 = vector.extract_strided_slice %5 {offsets = [10, 0], sizes = [2, 512], strides = [1, 1]} : vector<16x512xf32> to vector<2x512xf32>
    %130 = arith.truncf %128 : vector<2x128xf32> to vector<2x128xbf16>
    %c0_44 = arith.constant 0 : index
    %c0_45 = arith.constant 0 : index
    %131 = vector.load %arg3[%c0_44, %c0_45] : memref<128x512xbf16, #tpu.memory_space<vmem>>, vector<128x512xbf16>
    %cst_46 = arith.constant dense<0.000000e+00> : vector<2x512xf32>
    %132 = tpu.matmul %130, %131, %cst_46 {dimension_numbers = #tpu.dot_dimension_numbers<[1], [0], [0], [1], [0, 0, 1, 1], [], []>} : vector<2x128xbf16>, vector<128x512xbf16>, vector<2x512xf32> -> vector<2x512xf32>
    %133 = arith.addf %129, %132 : vector<2x512xf32>
    %134 = vector.extract_strided_slice %133 {offsets = [0, 0], sizes = [2, 384], strides = [1, 1]} : vector<2x512xf32> to vector<2x384xf32>
    %cst_47 = arith.constant 5.000000e-01 : f32
    %135 = vector.broadcast %cst_47 : f32 to vector<2x384xf32>
    %136 = arith.mulf %135, %134 : vector<2x384xf32>
    %137 = math.tanh %136 : vector<2x384xf32>
    %cst_48 = arith.constant 5.000000e-01 : f32
    %138 = vector.broadcast %cst_48 : f32 to vector<2x384xf32>
    %139 = arith.mulf %138, %137 : vector<2x384xf32>
    %cst_49 = arith.constant 5.000000e-01 : f32
    %140 = vector.broadcast %cst_49 : f32 to vector<2x384xf32>
    %141 = arith.addf %139, %140 : vector<2x384xf32>
    %142 = vector.extract_strided_slice %133 {offsets = [0, 384], sizes = [2, 128], strides = [1, 1]} : vector<2x512xf32> to vector<2x128xf32>
    %143 = math.tanh %142 : vector<2x128xf32>
    %144 = vector.extract_strided_slice %141 {offsets = [0, 0], sizes = [2, 128], strides = [1, 1]} : vector<2x384xf32> to vector<2x128xf32>
    %145 = vector.extract_strided_slice %141 {offsets = [0, 128], sizes = [2, 128], strides = [1, 1]} : vector<2x384xf32> to vector<2x128xf32>
    %146 = vector.extract_strided_slice %141 {offsets = [0, 256], sizes = [2, 128], strides = [1, 1]} : vector<2x384xf32> to vector<2x128xf32>
    %147 = arith.mulf %145, %126 : vector<2x128xf32>
    %148 = arith.mulf %144, %143 : vector<2x128xf32>
    %149 = arith.addf %147, %148 : vector<2x128xf32>
    %150 = math.tanh %149 : vector<2x128xf32>
    %151 = arith.mulf %146, %150 : vector<2x128xf32>
    %152 = vector.extract_strided_slice %5 {offsets = [12, 0], sizes = [2, 512], strides = [1, 1]} : vector<16x512xf32> to vector<2x512xf32>
    %153 = arith.truncf %151 : vector<2x128xf32> to vector<2x128xbf16>
    %c0_50 = arith.constant 0 : index
    %c0_51 = arith.constant 0 : index
    %154 = vector.load %arg3[%c0_50, %c0_51] : memref<128x512xbf16, #tpu.memory_space<vmem>>, vector<128x512xbf16>
    %cst_52 = arith.constant dense<0.000000e+00> : vector<2x512xf32>
    %155 = tpu.matmul %153, %154, %cst_52 {dimension_numbers = #tpu.dot_dimension_numbers<[1], [0], [0], [1], [0, 0, 1, 1], [], []>} : vector<2x128xbf16>, vector<128x512xbf16>, vector<2x512xf32> -> vector<2x512xf32>
    %156 = arith.addf %152, %155 : vector<2x512xf32>
    %157 = vector.extract_strided_slice %156 {offsets = [0, 0], sizes = [2, 384], strides = [1, 1]} : vector<2x512xf32> to vector<2x384xf32>
    %cst_53 = arith.constant 5.000000e-01 : f32
    %158 = vector.broadcast %cst_53 : f32 to vector<2x384xf32>
    %159 = arith.mulf %158, %157 : vector<2x384xf32>
    %160 = math.tanh %159 : vector<2x384xf32>
    %cst_54 = arith.constant 5.000000e-01 : f32
    %161 = vector.broadcast %cst_54 : f32 to vector<2x384xf32>
    %162 = arith.mulf %161, %160 : vector<2x384xf32>
    %cst_55 = arith.constant 5.000000e-01 : f32
    %163 = vector.broadcast %cst_55 : f32 to vector<2x384xf32>
    %164 = arith.addf %162, %163 : vector<2x384xf32>
    %165 = vector.extract_strided_slice %156 {offsets = [0, 384], sizes = [2, 128], strides = [1, 1]} : vector<2x512xf32> to vector<2x128xf32>
    %166 = math.tanh %165 : vector<2x128xf32>
    %167 = vector.extract_strided_slice %164 {offsets = [0, 0], sizes = [2, 128], strides = [1, 1]} : vector<2x384xf32> to vector<2x128xf32>
    %168 = vector.extract_strided_slice %164 {offsets = [0, 128], sizes = [2, 128], strides = [1, 1]} : vector<2x384xf32> to vector<2x128xf32>
    %169 = vector.extract_strided_slice %164 {offsets = [0, 256], sizes = [2, 128], strides = [1, 1]} : vector<2x384xf32> to vector<2x128xf32>
    %170 = arith.mulf %168, %149 : vector<2x128xf32>
    %171 = arith.mulf %167, %166 : vector<2x128xf32>
    %172 = arith.addf %170, %171 : vector<2x128xf32>
    %173 = math.tanh %172 : vector<2x128xf32>
    %174 = arith.mulf %169, %173 : vector<2x128xf32>
    %175 = vector.extract_strided_slice %5 {offsets = [14, 0], sizes = [2, 512], strides = [1, 1]} : vector<16x512xf32> to vector<2x512xf32>
    %176 = arith.truncf %174 : vector<2x128xf32> to vector<2x128xbf16>
    %c0_56 = arith.constant 0 : index
    %c0_57 = arith.constant 0 : index
    %177 = vector.load %arg3[%c0_56, %c0_57] : memref<128x512xbf16, #tpu.memory_space<vmem>>, vector<128x512xbf16>
    %cst_58 = arith.constant dense<0.000000e+00> : vector<2x512xf32>
    %178 = tpu.matmul %176, %177, %cst_58 {dimension_numbers = #tpu.dot_dimension_numbers<[1], [0], [0], [1], [0, 0, 1, 1], [], []>} : vector<2x128xbf16>, vector<128x512xbf16>, vector<2x512xf32> -> vector<2x512xf32>
    %179 = arith.addf %175, %178 : vector<2x512xf32>
    %180 = vector.extract_strided_slice %179 {offsets = [0, 0], sizes = [2, 384], strides = [1, 1]} : vector<2x512xf32> to vector<2x384xf32>
    %cst_59 = arith.constant 5.000000e-01 : f32
    %181 = vector.broadcast %cst_59 : f32 to vector<2x384xf32>
    %182 = arith.mulf %181, %180 : vector<2x384xf32>
    %183 = math.tanh %182 : vector<2x384xf32>
    %cst_60 = arith.constant 5.000000e-01 : f32
    %184 = vector.broadcast %cst_60 : f32 to vector<2x384xf32>
    %185 = arith.mulf %184, %183 : vector<2x384xf32>
    %cst_61 = arith.constant 5.000000e-01 : f32
    %186 = vector.broadcast %cst_61 : f32 to vector<2x384xf32>
    %187 = arith.addf %185, %186 : vector<2x384xf32>
    %188 = vector.extract_strided_slice %179 {offsets = [0, 384], sizes = [2, 128], strides = [1, 1]} : vector<2x512xf32> to vector<2x128xf32>
    %189 = math.tanh %188 : vector<2x128xf32>
    %190 = vector.extract_strided_slice %187 {offsets = [0, 0], sizes = [2, 128], strides = [1, 1]} : vector<2x384xf32> to vector<2x128xf32>
    %191 = vector.extract_strided_slice %187 {offsets = [0, 128], sizes = [2, 128], strides = [1, 1]} : vector<2x384xf32> to vector<2x128xf32>
    %192 = vector.extract_strided_slice %187 {offsets = [0, 256], sizes = [2, 128], strides = [1, 1]} : vector<2x384xf32> to vector<2x128xf32>
    %193 = arith.mulf %191, %172 : vector<2x128xf32>
    %194 = arith.mulf %190, %189 : vector<2x128xf32>
    %195 = arith.addf %193, %194 : vector<2x128xf32>
    %196 = math.tanh %195 : vector<2x128xf32>
    %197 = arith.mulf %192, %196 : vector<2x128xf32>
    %198 = vector.extract_strided_slice %11 {offsets = [0, 0], sizes = [2, 512], strides = [1, 1]} : vector<16x512xf32> to vector<2x512xf32>
    %199 = arith.truncf %197 : vector<2x128xf32> to vector<2x128xbf16>
    %c0_62 = arith.constant 0 : index
    %c0_63 = arith.constant 0 : index
    %200 = vector.load %arg6[%c0_62, %c0_63] : memref<128x512xbf16, #tpu.memory_space<vmem>>, vector<128x512xbf16>
    %cst_64 = arith.constant dense<0.000000e+00> : vector<2x512xf32>
    %201 = tpu.matmul %199, %200, %cst_64 {dimension_numbers = #tpu.dot_dimension_numbers<[1], [0], [0], [1], [0, 0, 1, 1], [], []>} : vector<2x128xbf16>, vector<128x512xbf16>, vector<2x512xf32> -> vector<2x512xf32>
    %202 = arith.addf %198, %201 : vector<2x512xf32>
    %203 = vector.extract_strided_slice %202 {offsets = [0, 0], sizes = [2, 384], strides = [1, 1]} : vector<2x512xf32> to vector<2x384xf32>
    %cst_65 = arith.constant 5.000000e-01 : f32
    %204 = vector.broadcast %cst_65 : f32 to vector<2x384xf32>
    %205 = arith.mulf %204, %203 : vector<2x384xf32>
    %206 = math.tanh %205 : vector<2x384xf32>
    %cst_66 = arith.constant 5.000000e-01 : f32
    %207 = vector.broadcast %cst_66 : f32 to vector<2x384xf32>
    %208 = arith.mulf %207, %206 : vector<2x384xf32>
    %cst_67 = arith.constant 5.000000e-01 : f32
    %209 = vector.broadcast %cst_67 : f32 to vector<2x384xf32>
    %210 = arith.addf %208, %209 : vector<2x384xf32>
    %211 = vector.extract_strided_slice %202 {offsets = [0, 384], sizes = [2, 128], strides = [1, 1]} : vector<2x512xf32> to vector<2x128xf32>
    %212 = math.tanh %211 : vector<2x128xf32>
    %213 = vector.extract_strided_slice %210 {offsets = [0, 0], sizes = [2, 128], strides = [1, 1]} : vector<2x384xf32> to vector<2x128xf32>
    %214 = vector.extract_strided_slice %210 {offsets = [0, 128], sizes = [2, 128], strides = [1, 1]} : vector<2x384xf32> to vector<2x128xf32>
    %215 = vector.extract_strided_slice %210 {offsets = [0, 256], sizes = [2, 128], strides = [1, 1]} : vector<2x384xf32> to vector<2x128xf32>
    %216 = arith.mulf %214, %195 : vector<2x128xf32>
    %217 = arith.mulf %213, %212 : vector<2x128xf32>
    %218 = arith.addf %216, %217 : vector<2x128xf32>
    %219 = math.tanh %218 : vector<2x128xf32>
    %220 = arith.mulf %215, %219 : vector<2x128xf32>
    %221 = arith.truncf %220 : vector<2x128xf32> to vector<2x128xbf16>
    %222 = vector.extract_strided_slice %11 {offsets = [2, 0], sizes = [2, 512], strides = [1, 1]} : vector<16x512xf32> to vector<2x512xf32>
    %223 = arith.truncf %220 : vector<2x128xf32> to vector<2x128xbf16>
    %c0_68 = arith.constant 0 : index
    %c0_69 = arith.constant 0 : index
    %224 = vector.load %arg6[%c0_68, %c0_69] : memref<128x512xbf16, #tpu.memory_space<vmem>>, vector<128x512xbf16>
    %cst_70 = arith.constant dense<0.000000e+00> : vector<2x512xf32>
    %225 = tpu.matmul %223, %224, %cst_70 {dimension_numbers = #tpu.dot_dimension_numbers<[1], [0], [0], [1], [0, 0, 1, 1], [], []>} : vector<2x128xbf16>, vector<128x512xbf16>, vector<2x512xf32> -> vector<2x512xf32>
    %226 = arith.addf %222, %225 : vector<2x512xf32>
    %227 = vector.extract_strided_slice %226 {offsets = [0, 0], sizes = [2, 384], strides = [1, 1]} : vector<2x512xf32> to vector<2x384xf32>
    %cst_71 = arith.constant 5.000000e-01 : f32
    %228 = vector.broadcast %cst_71 : f32 to vector<2x384xf32>
    %229 = arith.mulf %228, %227 : vector<2x384xf32>
    %230 = math.tanh %229 : vector<2x384xf32>
    %cst_72 = arith.constant 5.000000e-01 : f32
    %231 = vector.broadcast %cst_72 : f32 to vector<2x384xf32>
    %232 = arith.mulf %231, %230 : vector<2x384xf32>
    %cst_73 = arith.constant 5.000000e-01 : f32
    %233 = vector.broadcast %cst_73 : f32 to vector<2x384xf32>
    %234 = arith.addf %232, %233 : vector<2x384xf32>
    %235 = vector.extract_strided_slice %226 {offsets = [0, 384], sizes = [2, 128], strides = [1, 1]} : vector<2x512xf32> to vector<2x128xf32>
    %236 = math.tanh %235 : vector<2x128xf32>
    %237 = vector.extract_strided_slice %234 {offsets = [0, 0], sizes = [2, 128], strides = [1, 1]} : vector<2x384xf32> to vector<2x128xf32>
    %238 = vector.extract_strided_slice %234 {offsets = [0, 128], sizes = [2, 128], strides = [1, 1]} : vector<2x384xf32> to vector<2x128xf32>
    %239 = vector.extract_strided_slice %234 {offsets = [0, 256], sizes = [2, 128], strides = [1, 1]} : vector<2x384xf32> to vector<2x128xf32>
    %240 = arith.mulf %238, %218 : vector<2x128xf32>
    %241 = arith.mulf %237, %236 : vector<2x128xf32>
    %242 = arith.addf %240, %241 : vector<2x128xf32>
    %243 = math.tanh %242 : vector<2x128xf32>
    %244 = arith.mulf %239, %243 : vector<2x128xf32>
    %245 = arith.truncf %244 : vector<2x128xf32> to vector<2x128xbf16>
    %246 = vector.extract_strided_slice %11 {offsets = [4, 0], sizes = [2, 512], strides = [1, 1]} : vector<16x512xf32> to vector<2x512xf32>
    %247 = arith.truncf %244 : vector<2x128xf32> to vector<2x128xbf16>
    %c0_74 = arith.constant 0 : index
    %c0_75 = arith.constant 0 : index
    %248 = vector.load %arg6[%c0_74, %c0_75] : memref<128x512xbf16, #tpu.memory_space<vmem>>, vector<128x512xbf16>
    %cst_76 = arith.constant dense<0.000000e+00> : vector<2x512xf32>
    %249 = tpu.matmul %247, %248, %cst_76 {dimension_numbers = #tpu.dot_dimension_numbers<[1], [0], [0], [1], [0, 0, 1, 1], [], []>} : vector<2x128xbf16>, vector<128x512xbf16>, vector<2x512xf32> -> vector<2x512xf32>
    %250 = arith.addf %246, %249 : vector<2x512xf32>
    %251 = vector.extract_strided_slice %250 {offsets = [0, 0], sizes = [2, 384], strides = [1, 1]} : vector<2x512xf32> to vector<2x384xf32>
    %cst_77 = arith.constant 5.000000e-01 : f32
    %252 = vector.broadcast %cst_77 : f32 to vector<2x384xf32>
    %253 = arith.mulf %252, %251 : vector<2x384xf32>
    %254 = math.tanh %253 : vector<2x384xf32>
    %cst_78 = arith.constant 5.000000e-01 : f32
    %255 = vector.broadcast %cst_78 : f32 to vector<2x384xf32>
    %256 = arith.mulf %255, %254 : vector<2x384xf32>
    %cst_79 = arith.constant 5.000000e-01 : f32
    %257 = vector.broadcast %cst_79 : f32 to vector<2x384xf32>
    %258 = arith.addf %256, %257 : vector<2x384xf32>
    %259 = vector.extract_strided_slice %250 {offsets = [0, 384], sizes = [2, 128], strides = [1, 1]} : vector<2x512xf32> to vector<2x128xf32>
    %260 = math.tanh %259 : vector<2x128xf32>
    %261 = vector.extract_strided_slice %258 {offsets = [0, 0], sizes = [2, 128], strides = [1, 1]} : vector<2x384xf32> to vector<2x128xf32>
    %262 = vector.extract_strided_slice %258 {offsets = [0, 128], sizes = [2, 128], strides = [1, 1]} : vector<2x384xf32> to vector<2x128xf32>
    %263 = vector.extract_strided_slice %258 {offsets = [0, 256], sizes = [2, 128], strides = [1, 1]} : vector<2x384xf32> to vector<2x128xf32>
    %264 = arith.mulf %262, %242 : vector<2x128xf32>
    %265 = arith.mulf %261, %260 : vector<2x128xf32>
    %266 = arith.addf %264, %265 : vector<2x128xf32>
    %267 = math.tanh %266 : vector<2x128xf32>
    %268 = arith.mulf %263, %267 : vector<2x128xf32>
    %269 = arith.truncf %268 : vector<2x128xf32> to vector<2x128xbf16>
    %270 = vector.extract_strided_slice %11 {offsets = [6, 0], sizes = [2, 512], strides = [1, 1]} : vector<16x512xf32> to vector<2x512xf32>
    %271 = arith.truncf %268 : vector<2x128xf32> to vector<2x128xbf16>
    %c0_80 = arith.constant 0 : index
    %c0_81 = arith.constant 0 : index
    %272 = vector.load %arg6[%c0_80, %c0_81] : memref<128x512xbf16, #tpu.memory_space<vmem>>, vector<128x512xbf16>
    %cst_82 = arith.constant dense<0.000000e+00> : vector<2x512xf32>
    %273 = tpu.matmul %271, %272, %cst_82 {dimension_numbers = #tpu.dot_dimension_numbers<[1], [0], [0], [1], [0, 0, 1, 1], [], []>} : vector<2x128xbf16>, vector<128x512xbf16>, vector<2x512xf32> -> vector<2x512xf32>
    %274 = arith.addf %270, %273 : vector<2x512xf32>
    %275 = vector.extract_strided_slice %274 {offsets = [0, 0], sizes = [2, 384], strides = [1, 1]} : vector<2x512xf32> to vector<2x384xf32>
    %cst_83 = arith.constant 5.000000e-01 : f32
    %276 = vector.broadcast %cst_83 : f32 to vector<2x384xf32>
    %277 = arith.mulf %276, %275 : vector<2x384xf32>
    %278 = math.tanh %277 : vector<2x384xf32>
    %cst_84 = arith.constant 5.000000e-01 : f32
    %279 = vector.broadcast %cst_84 : f32 to vector<2x384xf32>
    %280 = arith.mulf %279, %278 : vector<2x384xf32>
    %cst_85 = arith.constant 5.000000e-01 : f32
    %281 = vector.broadcast %cst_85 : f32 to vector<2x384xf32>
    %282 = arith.addf %280, %281 : vector<2x384xf32>
    %283 = vector.extract_strided_slice %274 {offsets = [0, 384], sizes = [2, 128], strides = [1, 1]} : vector<2x512xf32> to vector<2x128xf32>
    %284 = math.tanh %283 : vector<2x128xf32>
    %285 = vector.extract_strided_slice %282 {offsets = [0, 0], sizes = [2, 128], strides = [1, 1]} : vector<2x384xf32> to vector<2x128xf32>
    %286 = vector.extract_strided_slice %282 {offsets = [0, 128], sizes = [2, 128], strides = [1, 1]} : vector<2x384xf32> to vector<2x128xf32>
    %287 = vector.extract_strided_slice %282 {offsets = [0, 256], sizes = [2, 128], strides = [1, 1]} : vector<2x384xf32> to vector<2x128xf32>
    %288 = arith.mulf %286, %266 : vector<2x128xf32>
    %289 = arith.mulf %285, %284 : vector<2x128xf32>
    %290 = arith.addf %288, %289 : vector<2x128xf32>
    %291 = math.tanh %290 : vector<2x128xf32>
    %292 = arith.mulf %287, %291 : vector<2x128xf32>
    %293 = arith.truncf %292 : vector<2x128xf32> to vector<2x128xbf16>
    %294 = vector.extract_strided_slice %11 {offsets = [8, 0], sizes = [2, 512], strides = [1, 1]} : vector<16x512xf32> to vector<2x512xf32>
    %295 = arith.truncf %292 : vector<2x128xf32> to vector<2x128xbf16>
    %c0_86 = arith.constant 0 : index
    %c0_87 = arith.constant 0 : index
    %296 = vector.load %arg6[%c0_86, %c0_87] : memref<128x512xbf16, #tpu.memory_space<vmem>>, vector<128x512xbf16>
    %cst_88 = arith.constant dense<0.000000e+00> : vector<2x512xf32>
    %297 = tpu.matmul %295, %296, %cst_88 {dimension_numbers = #tpu.dot_dimension_numbers<[1], [0], [0], [1], [0, 0, 1, 1], [], []>} : vector<2x128xbf16>, vector<128x512xbf16>, vector<2x512xf32> -> vector<2x512xf32>
    %298 = arith.addf %294, %297 : vector<2x512xf32>
    %299 = vector.extract_strided_slice %298 {offsets = [0, 0], sizes = [2, 384], strides = [1, 1]} : vector<2x512xf32> to vector<2x384xf32>
    %cst_89 = arith.constant 5.000000e-01 : f32
    %300 = vector.broadcast %cst_89 : f32 to vector<2x384xf32>
    %301 = arith.mulf %300, %299 : vector<2x384xf32>
    %302 = math.tanh %301 : vector<2x384xf32>
    %cst_90 = arith.constant 5.000000e-01 : f32
    %303 = vector.broadcast %cst_90 : f32 to vector<2x384xf32>
    %304 = arith.mulf %303, %302 : vector<2x384xf32>
    %cst_91 = arith.constant 5.000000e-01 : f32
    %305 = vector.broadcast %cst_91 : f32 to vector<2x384xf32>
    %306 = arith.addf %304, %305 : vector<2x384xf32>
    %307 = vector.extract_strided_slice %298 {offsets = [0, 384], sizes = [2, 128], strides = [1, 1]} : vector<2x512xf32> to vector<2x128xf32>
    %308 = math.tanh %307 : vector<2x128xf32>
    %309 = vector.extract_strided_slice %306 {offsets = [0, 0], sizes = [2, 128], strides = [1, 1]} : vector<2x384xf32> to vector<2x128xf32>
    %310 = vector.extract_strided_slice %306 {offsets = [0, 128], sizes = [2, 128], strides = [1, 1]} : vector<2x384xf32> to vector<2x128xf32>
    %311 = vector.extract_strided_slice %306 {offsets = [0, 256], sizes = [2, 128], strides = [1, 1]} : vector<2x384xf32> to vector<2x128xf32>
    %312 = arith.mulf %310, %290 : vector<2x128xf32>
    %313 = arith.mulf %309, %308 : vector<2x128xf32>
    %314 = arith.addf %312, %313 : vector<2x128xf32>
    %315 = math.tanh %314 : vector<2x128xf32>
    %316 = arith.mulf %311, %315 : vector<2x128xf32>
    %317 = arith.truncf %316 : vector<2x128xf32> to vector<2x128xbf16>
    %318 = vector.extract_strided_slice %11 {offsets = [10, 0], sizes = [2, 512], strides = [1, 1]} : vector<16x512xf32> to vector<2x512xf32>
    %319 = arith.truncf %316 : vector<2x128xf32> to vector<2x128xbf16>
    %c0_92 = arith.constant 0 : index
    %c0_93 = arith.constant 0 : index
    %320 = vector.load %arg6[%c0_92, %c0_93] : memref<128x512xbf16, #tpu.memory_space<vmem>>, vector<128x512xbf16>
    %cst_94 = arith.constant dense<0.000000e+00> : vector<2x512xf32>
    %321 = tpu.matmul %319, %320, %cst_94 {dimension_numbers = #tpu.dot_dimension_numbers<[1], [0], [0], [1], [0, 0, 1, 1], [], []>} : vector<2x128xbf16>, vector<128x512xbf16>, vector<2x512xf32> -> vector<2x512xf32>
    %322 = arith.addf %318, %321 : vector<2x512xf32>
    %323 = vector.extract_strided_slice %322 {offsets = [0, 0], sizes = [2, 384], strides = [1, 1]} : vector<2x512xf32> to vector<2x384xf32>
    %cst_95 = arith.constant 5.000000e-01 : f32
    %324 = vector.broadcast %cst_95 : f32 to vector<2x384xf32>
    %325 = arith.mulf %324, %323 : vector<2x384xf32>
    %326 = math.tanh %325 : vector<2x384xf32>
    %cst_96 = arith.constant 5.000000e-01 : f32
    %327 = vector.broadcast %cst_96 : f32 to vector<2x384xf32>
    %328 = arith.mulf %327, %326 : vector<2x384xf32>
    %cst_97 = arith.constant 5.000000e-01 : f32
    %329 = vector.broadcast %cst_97 : f32 to vector<2x384xf32>
    %330 = arith.addf %328, %329 : vector<2x384xf32>
    %331 = vector.extract_strided_slice %322 {offsets = [0, 384], sizes = [2, 128], strides = [1, 1]} : vector<2x512xf32> to vector<2x128xf32>
    %332 = math.tanh %331 : vector<2x128xf32>
    %333 = vector.extract_strided_slice %330 {offsets = [0, 0], sizes = [2, 128], strides = [1, 1]} : vector<2x384xf32> to vector<2x128xf32>
    %334 = vector.extract_strided_slice %330 {offsets = [0, 128], sizes = [2, 128], strides = [1, 1]} : vector<2x384xf32> to vector<2x128xf32>
    %335 = vector.extract_strided_slice %330 {offsets = [0, 256], sizes = [2, 128], strides = [1, 1]} : vector<2x384xf32> to vector<2x128xf32>
    %336 = arith.mulf %334, %314 : vector<2x128xf32>
    %337 = arith.mulf %333, %332 : vector<2x128xf32>
    %338 = arith.addf %336, %337 : vector<2x128xf32>
    %339 = math.tanh %338 : vector<2x128xf32>
    %340 = arith.mulf %335, %339 : vector<2x128xf32>
    %341 = arith.truncf %340 : vector<2x128xf32> to vector<2x128xbf16>
    %342 = vector.extract_strided_slice %11 {offsets = [12, 0], sizes = [2, 512], strides = [1, 1]} : vector<16x512xf32> to vector<2x512xf32>
    %343 = arith.truncf %340 : vector<2x128xf32> to vector<2x128xbf16>
    %c0_98 = arith.constant 0 : index
    %c0_99 = arith.constant 0 : index
    %344 = vector.load %arg6[%c0_98, %c0_99] : memref<128x512xbf16, #tpu.memory_space<vmem>>, vector<128x512xbf16>
    %cst_100 = arith.constant dense<0.000000e+00> : vector<2x512xf32>
    %345 = tpu.matmul %343, %344, %cst_100 {dimension_numbers = #tpu.dot_dimension_numbers<[1], [0], [0], [1], [0, 0, 1, 1], [], []>} : vector<2x128xbf16>, vector<128x512xbf16>, vector<2x512xf32> -> vector<2x512xf32>
    %346 = arith.addf %342, %345 : vector<2x512xf32>
    %347 = vector.extract_strided_slice %346 {offsets = [0, 0], sizes = [2, 384], strides = [1, 1]} : vector<2x512xf32> to vector<2x384xf32>
    %cst_101 = arith.constant 5.000000e-01 : f32
    %348 = vector.broadcast %cst_101 : f32 to vector<2x384xf32>
    %349 = arith.mulf %348, %347 : vector<2x384xf32>
    %350 = math.tanh %349 : vector<2x384xf32>
    %cst_102 = arith.constant 5.000000e-01 : f32
    %351 = vector.broadcast %cst_102 : f32 to vector<2x384xf32>
    %352 = arith.mulf %351, %350 : vector<2x384xf32>
    %cst_103 = arith.constant 5.000000e-01 : f32
    %353 = vector.broadcast %cst_103 : f32 to vector<2x384xf32>
    %354 = arith.addf %352, %353 : vector<2x384xf32>
    %355 = vector.extract_strided_slice %346 {offsets = [0, 384], sizes = [2, 128], strides = [1, 1]} : vector<2x512xf32> to vector<2x128xf32>
    %356 = math.tanh %355 : vector<2x128xf32>
    %357 = vector.extract_strided_slice %354 {offsets = [0, 0], sizes = [2, 128], strides = [1, 1]} : vector<2x384xf32> to vector<2x128xf32>
    %358 = vector.extract_strided_slice %354 {offsets = [0, 128], sizes = [2, 128], strides = [1, 1]} : vector<2x384xf32> to vector<2x128xf32>
    %359 = vector.extract_strided_slice %354 {offsets = [0, 256], sizes = [2, 128], strides = [1, 1]} : vector<2x384xf32> to vector<2x128xf32>
    %360 = arith.mulf %358, %338 : vector<2x128xf32>
    %361 = arith.mulf %357, %356 : vector<2x128xf32>
    %362 = arith.addf %360, %361 : vector<2x128xf32>
    %363 = math.tanh %362 : vector<2x128xf32>
    %364 = arith.mulf %359, %363 : vector<2x128xf32>
    %365 = arith.truncf %364 : vector<2x128xf32> to vector<2x128xbf16>
    %366 = vector.extract_strided_slice %11 {offsets = [14, 0], sizes = [2, 512], strides = [1, 1]} : vector<16x512xf32> to vector<2x512xf32>
    %367 = arith.truncf %364 : vector<2x128xf32> to vector<2x128xbf16>
    %c0_104 = arith.constant 0 : index
    %c0_105 = arith.constant 0 : index
    %368 = vector.load %arg6[%c0_104, %c0_105] : memref<128x512xbf16, #tpu.memory_space<vmem>>, vector<128x512xbf16>
    %cst_106 = arith.constant dense<0.000000e+00> : vector<2x512xf32>
    %369 = tpu.matmul %367, %368, %cst_106 {dimension_numbers = #tpu.dot_dimension_numbers<[1], [0], [0], [1], [0, 0, 1, 1], [], []>} : vector<2x128xbf16>, vector<128x512xbf16>, vector<2x512xf32> -> vector<2x512xf32>
    %370 = arith.addf %366, %369 : vector<2x512xf32>
    %371 = vector.extract_strided_slice %370 {offsets = [0, 0], sizes = [2, 384], strides = [1, 1]} : vector<2x512xf32> to vector<2x384xf32>
    %cst_107 = arith.constant 5.000000e-01 : f32
    %372 = vector.broadcast %cst_107 : f32 to vector<2x384xf32>
    %373 = arith.mulf %372, %371 : vector<2x384xf32>
    %374 = math.tanh %373 : vector<2x384xf32>
    %cst_108 = arith.constant 5.000000e-01 : f32
    %375 = vector.broadcast %cst_108 : f32 to vector<2x384xf32>
    %376 = arith.mulf %375, %374 : vector<2x384xf32>
    %cst_109 = arith.constant 5.000000e-01 : f32
    %377 = vector.broadcast %cst_109 : f32 to vector<2x384xf32>
    %378 = arith.addf %376, %377 : vector<2x384xf32>
    %379 = vector.extract_strided_slice %370 {offsets = [0, 384], sizes = [2, 128], strides = [1, 1]} : vector<2x512xf32> to vector<2x128xf32>
    %380 = math.tanh %379 : vector<2x128xf32>
    %381 = vector.extract_strided_slice %378 {offsets = [0, 0], sizes = [2, 128], strides = [1, 1]} : vector<2x384xf32> to vector<2x128xf32>
    %382 = vector.extract_strided_slice %378 {offsets = [0, 128], sizes = [2, 128], strides = [1, 1]} : vector<2x384xf32> to vector<2x128xf32>
    %383 = vector.extract_strided_slice %378 {offsets = [0, 256], sizes = [2, 128], strides = [1, 1]} : vector<2x384xf32> to vector<2x128xf32>
    %384 = arith.mulf %382, %362 : vector<2x128xf32>
    %385 = arith.mulf %381, %380 : vector<2x128xf32>
    %386 = arith.addf %384, %385 : vector<2x128xf32>
    %387 = math.tanh %386 : vector<2x128xf32>
    %388 = arith.mulf %383, %387 : vector<2x128xf32>
    %389 = arith.truncf %388 : vector<2x128xf32> to vector<2x128xbf16>
    %390 = tpu.concatenate %221, %245, %269, %293, %317, %341, %365, %389 in 0 : vector<2x128xbf16>, vector<2x128xbf16>, vector<2x128xbf16>, vector<2x128xbf16>, vector<2x128xbf16>, vector<2x128xbf16>, vector<2x128xbf16>, vector<2x128xbf16> -> vector<16x128xbf16>
    %c0_110 = arith.constant 0 : index
    %c0_111 = arith.constant 0 : index
    %391 = vector.load %arg8[%c0_110, %c0_111] : memref<128x256xbf16, #tpu.memory_space<vmem>>, vector<128x256xbf16>
    %cst_112 = arith.constant dense<0.000000e+00> : vector<16x256xf32>
    %392 = tpu.matmul %390, %391, %cst_112 {dimension_numbers = #tpu.dot_dimension_numbers<[1], [0], [0], [1], [0, 0, 1, 1], [], []>} : vector<16x128xbf16>, vector<128x256xbf16>, vector<16x256xf32> -> vector<16x256xf32>
    %c0_113 = arith.constant 0 : index
    %c0_114 = arith.constant 0 : index
    %393 = vector.load %arg9[%c0_113, %c0_114] : memref<1x256xf32, #tpu.memory_space<vmem>>, vector<1x256xf32>
    %394 = vector.broadcast %393 : vector<1x256xf32> to vector<16x256xf32>
    %395 = arith.addf %392, %394 : vector<16x256xf32>
    %c0_115 = arith.constant 0 : index
    %c0_116 = arith.constant 0 : index
    %396 = vector.load %arg10[%c0_115, %c0_116] : memref<16x256xf32, #tpu.memory_space<vmem>>, vector<16x256xf32>
    tpu.vector_store %arg10[%c0_115, %c0_116], %395 {strides = array<i32>} : memref<16x256xf32, #tpu.memory_space<vmem>>, vector<16x256xf32>,
    return
  }
}

</mosaic_0001>

<llo_original>
// kernel: denoising_autoencoder_forward.1
$region0: #{denoising_autoencoder_forward.1}
  #allocation0 [shape = 'u32[]', space=smem, size = 0x4, offset = 0x4, fixed_abs, tag = 'smem constant byte address 0x4 - core index']
  #allocation1 [shape = 'u32[144,128]{1,0:T(1,128)}', space=vmem, size = 0x12000, scoped, tag = 'internal scratch']
  %s0 = inlined_call_operand.vmem [shape: bf16[16,128], index: 0, kind: input, shape index: {}]
  %s1 = inlined_call_operand.vmem [shape: bf16[16,128], index: 1, kind: input, shape index: {}]
  %s2 = inlined_call_operand.vmem [shape: bf16[128,512], index: 2, kind: input, shape index: {}]
  %s3 = inlined_call_operand.vmem [shape: bf16[128,512], index: 3, kind: input, shape index: {}]
  %s4 = inlined_call_operand.vmem [shape: f32[1,512], index: 4, kind: input, shape index: {}]
  %s5 = inlined_call_operand.vmem [shape: bf16[128,512], index: 5, kind: input, shape index: {}]
  %s6 = inlined_call_operand.vmem [shape: bf16[128,512], index: 6, kind: input, shape index: {}]
  %s7 = inlined_call_operand.vmem [shape: f32[1,512], index: 7, kind: input, shape index: {}]
  %s8 = inlined_call_operand.vmem [shape: bf16[128,256], index: 8, kind: input, shape index: {}]
  %s9 = inlined_call_operand.vmem [shape: f32[1,256], index: 9, kind: input, shape index: {}]
  %s10 = inlined_call_operand.vmem [shape: f32[16,256], index: 10, kind: output, shape index: {}]
  %s11 = sld [smem:[#allocation0]]
  $region50: #{denoising_autoencoder_forward.1} parent=0
    _
  %s13 = ssub.s32 1, %s11
  %s14 = scalar_select 0, %s13, %s11
  // Predicated region
  $region2: #{denoising_autoencoder_forward.1} parent=0 // pred_check
    _
  $region3: #{denoising_autoencoder_forward.1} parent=0 // pred_check_branch
    %16 = sbr.rel (0) target = $region5
  $region4: #{denoising_autoencoder_forward.1} parent=0 // pred_region
    _
  $region5: #{denoising_autoencoder_forward.1} parent=0 // pred_fallthru
    _
  // Predicated region
  $region6: #{denoising_autoencoder_forward.1} parent=0 // pred_check
    _
  $region7: #{denoising_autoencoder_forward.1} parent=0 // pred_check_branch
    %18 = sbr.rel (0) target = $region9
  $region8: #{denoising_autoencoder_forward.1} parent=0 // pred_region
    _
  $region9: #{denoising_autoencoder_forward.1} parent=0 // pred_fallthru
    _
  // Predicated region
  $region10: #{denoising_autoencoder_forward.1} parent=0 // pred_check
    _
  $region11: #{denoising_autoencoder_forward.1} parent=0 // pred_check_branch
    %20 = sbr.rel (0) target = $region13
  $region12: #{denoising_autoencoder_forward.1} parent=0 // pred_region
    _
  $region13: #{denoising_autoencoder_forward.1} parent=0 // pred_fallthru
    _
  // Predicated region
  $region14: #{denoising_autoencoder_forward.1} parent=0 // pred_check
    _
  $region15: #{denoising_autoencoder_forward.1} parent=0 // pred_check_branch
    %22 = sbr.rel (0) target = $region17
  $region16: #{denoising_autoencoder_forward.1} parent=0 // pred_region
    _
  $region17: #{denoising_autoencoder_forward.1} parent=0 // pred_fallthru
    _
  // Predicated region
  $region18: #{denoising_autoencoder_forward.1} parent=0 // pred_check
    _
  $region19: #{denoising_autoencoder_forward.1} parent=0 // pred_check_branch
    %24 = sbr.rel (0) target = $region21
  $region20: #{denoising_autoencoder_forward.1} parent=0 // pred_region
    _
  $region21: #{denoising_autoencoder_forward.1} parent=0 // pred_fallthru
    _
  // Predicated region
  $region22: #{denoising_autoencoder_forward.1} parent=0 // pred_check
    _
  $region23: #{denoising_autoencoder_forward.1} parent=0 // pred_check_branch
    %26 = sbr.rel (0) target = $region25
  $region24: #{denoising_autoencoder_forward.1} parent=0 // pred_region
    _
  $region25: #{denoising_autoencoder_forward.1} parent=0 // pred_fallthru
    _
  // Predicated region
  $region26: #{denoising_autoencoder_forward.1} parent=0 // pred_check
    _
  $region27: #{denoising_autoencoder_forward.1} parent=0 // pred_check_branch
    %28 = sbr.rel (0) target = $region29
  $region28: #{denoising_autoencoder_forward.1} parent=0 // pred_region
    _
  $region29: #{denoising_autoencoder_forward.1} parent=0 // pred_fallthru
    _
  // Predicated region
  $region30: #{denoising_autoencoder_forward.1} parent=0 // pred_check
    _
  $region31: #{denoising_autoencoder_forward.1} parent=0 // pred_check_branch
    %30 = sbr.rel (0) target = $region33
  $region32: #{denoising_autoencoder_forward.1} parent=0 // pred_region
    _
  $region33: #{denoising_autoencoder_forward.1} parent=0 // pred_fallthru
    _
  // Predicated region
  $region34: #{denoising_autoencoder_forward.1} parent=0 // pred_check
    _
  $region35: #{denoising_autoencoder_forward.1} parent=0 // pred_check_branch
    %32 = sbr.rel (0) target = $region37
  $region36: #{denoising_autoencoder_forward.1} parent=0 // pred_region
    _
  $region37: #{denoising_autoencoder_forward.1} parent=0 // pred_fallthru
    _
  // Predicated region
  $region38: #{denoising_autoencoder_forward.1} parent=0 // pred_check
    _
  $region39: #{denoising_autoencoder_forward.1} parent=0 // pred_check_branch
    %34 = sbr.rel (0) target = $region41
  $region40: #{denoising_autoencoder_forward.1} parent=0 // pred_region
    _
  $region41: #{denoising_autoencoder_forward.1} parent=0 // pred_fallthru
    _
  %v36 = vld [vmem:[%s0] sm:$0xf]
  %v37 = vld [vmem:[%s0 + $0x4] sm:$0xf]
  %v38 = vld [vmem:[%s2] sm:$0xff]
  %v39 = vld [vmem:[%s2 + $0x8] sm:$0xff]
  %v40 = vld [vmem:[%s2 + $0x10] sm:$0xff]
  %v41 = vld [vmem:[%s2 + $0x18] sm:$0xff]
  %v42 = vld [vmem:[%s2 + $0x20] sm:$0xff]
  %v43 = vld [vmem:[%s2 + $0x28] sm:$0xff]
  %v44 = vld [vmem:[%s2 + $0x30] sm:$0xff]
  %v45 = vld [vmem:[%s2 + $0x38] sm:$0xff]
  %v46 = vld [vmem:[%s2 + $0x40] sm:$0xff]
  %v47 = vld [vmem:[%s2 + $0x48] sm:$0xff]
  %v48 = vld [vmem:[%s2 + $0x50] sm:$0xff]
  %v49 = vld [vmem:[%s2 + $0x58] sm:$0xff]
  %v50 = vld [vmem:[%s2 + $0x60] sm:$0xff]
  %v51 = vld [vmem:[%s2 + $0x68] sm:$0xff]
  %v52 = vld [vmem:[%s2 + $0x70] sm:$0xff]
  %v53 = vld [vmem:[%s2 + $0x78] sm:$0xff]
  %v54 = vld [vmem:[%s2 + $0x80] sm:$0xff]
  %v55 = vld [vmem:[%s2 + $0x88] sm:$0xff]
  %v56 = vld [vmem:[%s2 + $0x90] sm:$0xff]
  %v57 = vld [vmem:[%s2 + $0x98] sm:$0xff]
  %v58 = vld [vmem:[%s2 + $0xa0] sm:$0xff]
  %v59 = vld [vmem:[%s2 + $0xa8] sm:$0xff]
  %v60 = vld [vmem:[%s2 + $0xb0] sm:$0xff]
  %v61 = vld [vmem:[%s2 + $0xb8] sm:$0xff]
  %v62 = vld [vmem:[%s2 + $0xc0] sm:$0xff]
  %v63 = vld [vmem:[%s2 + $0xc8] sm:$0xff]
  %v64 = vld [vmem:[%s2 + $0xd0] sm:$0xff]
  %v65 = vld [vmem:[%s2 + $0xd8] sm:$0xff]
  %v66 = vld [vmem:[%s2 + $0xe0] sm:$0xff]
  %v67 = vld [vmem:[%s2 + $0xe8] sm:$0xff]
  %v68 = vld [vmem:[%s2 + $0xf0] sm:$0xff]
  %v69 = vld [vmem:[%s2 + $0xf8] sm:$0xff]
  %v70 = vld [vmem:[%s4] sm:$0xf]
  %v72 = vlaneseq
  %v73 = vshrl.u32 %v72, 7
  %v74 = vsub.s32 0, %v73
  %v75 = vrot.slane %v70, %v74
  %v76 = vlaneseq
  %v77 = vshrl.u32 %v76, 7
  %v78 = vsub.s32 1, %v77
  %v79 = vrot.slane %v70, %v78
  %v80 = vlaneseq
  %v81 = vshrl.u32 %v80, 7
  %v82 = vsub.s32 2, %v81
  %v83 = vrot.slane %v70, %v82
  %v84 = vlaneseq
  %v85 = vshrl.u32 %v84, 7
  %v86 = vsub.s32 3, %v85
  %v87 = vrot.slane %v70, %v86
  %v94 = vunpack.c.l.b16 %v36
  %v95 = vunpack.c.l.b16 %v37
  %v96 = vpack.c.b16 %v95, %v94
  %v130 = vunpack.c.l.b16 %v38
  %v131 = vunpack.c.h.b16 %v38
  %v132 = vunpack.c.l.b16 %v39
  %v133 = vunpack.c.h.b16 %v39
  %v134 = vunpack.c.l.b16 %v40
  %v135 = vunpack.c.h.b16 %v40
  %v136 = vunpack.c.l.b16 %v41
  %v137 = vunpack.c.h.b16 %v41
  %v138 = vunpack.c.l.b16 %v42
  %v139 = vunpack.c.h.b16 %v42
  %v140 = vunpack.c.l.b16 %v43
  %v141 = vunpack.c.h.b16 %v43
  %v142 = vunpack.c.l.b16 %v44
  %v143 = vunpack.c.h.b16 %v44
  %v144 = vunpack.c.l.b16 %v45
  %v145 = vunpack.c.h.b16 %v45
  %v146 = vunpack.c.l.b16 %v46
  %v147 = vunpack.c.h.b16 %v46
  %v148 = vunpack.c.l.b16 %v47
  %v149 = vunpack.c.h.b16 %v47
  %v150 = vunpack.c.l.b16 %v48
  %v151 = vunpack.c.h.b16 %v48
  %v152 = vunpack.c.l.b16 %v49
  %v153 = vunpack.c.h.b16 %v49
  %v154 = vunpack.c.l.b16 %v50
  %v155 = vunpack.c.h.b16 %v50
  %v156 = vunpack.c.l.b16 %v51
  %v157 = vunpack.c.h.b16 %v51
  %v158 = vunpack.c.l.b16 %v52
  %v159 = vunpack.c.h.b16 %v52
  %v160 = vunpack.c.l.b16 %v53
  %v161 = vunpack.c.h.b16 %v53
  %v162 = vunpack.c.l.b16 %v54
  %v163 = vunpack.c.h.b16 %v54
  %v164 = vunpack.c.l.b16 %v55
  %v165 = vunpack.c.h.b16 %v55
  %v166 = vunpack.c.l.b16 %v56
  %v167 = vunpack.c.h.b16 %v56
  %v168 = vunpack.c.l.b16 %v57
  %v169 = vunpack.c.h.b16 %v57
  %v170 = vunpack.c.l.b16 %v58
  %v171 = vunpack.c.h.b16 %v58
  %v172 = vunpack.c.l.b16 %v59
  %v173 = vunpack.c.h.b16 %v59
  %v174 = vunpack.c.l.b16 %v60
  %v175 = vunpack.c.h.b16 %v60
  %v176 = vunpack.c.l.b16 %v61
  %v177 = vunpack.c.h.b16 %v61
  %v178 = vunpack.c.l.b16 %v62
  %v179 = vunpack.c.h.b16 %v62
  %v180 = vunpack.c.l.b16 %v63
  %v181 = vunpack.c.h.b16 %v63
  %v182 = vunpack.c.l.b16 %v64
  %v183 = vunpack.c.h.b16 %v64
  %v184 = vunpack.c.l.b16 %v65
  %v185 = vunpack.c.h.b16 %v65
  %v186 = vunpack.c.l.b16 %v66
  %v187 = vunpack.c.h.b16 %v66
  %v188 = vunpack.c.l.b16 %v67
  %v189 = vunpack.c.h.b16 %v67
  %v190 = vunpack.c.l.b16 %v68
  %v191 = vunpack.c.h.b16 %v68
  %v192 = vunpack.c.l.b16 %v69
  %v193 = vunpack.c.h.b16 %v69
  %v194 = vpack.c.b16 %v134, %v130
  %v195 = vpack.c.b16 %v135, %v131
  %v196 = vpack.c.b16 %v136, %v132
  %v197 = vpack.c.b16 %v137, %v133
  %v198 = vpack.c.b16 %v142, %v138
  %v199 = vpack.c.b16 %v143, %v139
  %v200 = vpack.c.b16 %v144, %v140
  %v201 = vpack.c.b16 %v145, %v141
  %v202 = vpack.c.b16 %v150, %v146
  %v203 = vpack.c.b16 %v151, %v147
  %v204 = vpack.c.b16 %v152, %v148
  %v205 = vpack.c.b16 %v153, %v149
  %v206 = vpack.c.b16 %v158, %v154
  %v207 = vpack.c.b16 %v159, %v155
  %v208 = vpack.c.b16 %v160, %v156
  %v209 = vpack.c.b16 %v161, %v157
  %v210 = vpack.c.b16 %v166, %v162
  %v211 = vpack.c.b16 %v167, %v163
  %v212 = vpack.c.b16 %v168, %v164
  %v213 = vpack.c.b16 %v169, %v165
  %v214 = vpack.c.b16 %v174, %v170
  %v215 = vpack.c.b16 %v175, %v171
  %v216 = vpack.c.b16 %v176, %v172
  %v217 = vpack.c.b16 %v177, %v173
  %v218 = vpack.c.b16 %v182, %v178
  %v219 = vpack.c.b16 %v183, %v179
  %v220 = vpack.c.b16 %v184, %v180
  %v221 = vpack.c.b16 %v185, %v181
  %v222 = vpack.c.b16 %v190, %v186
  %v223 = vpack.c.b16 %v191, %v187
  %v224 = vpack.c.b16 %v192, %v188
  %v225 = vpack.c.b16 %v193, %v189
  %258 = vmatprep.subr.bf16.mxu0 %v223
  %259 = vmatpush1.bf16.msra.mxu0 %v222
  %260 = vmatprep.subr.bf16.mxu0 %v219
  %261 = vmatpush1.bf16.msra.mxu0 %v218
  %262 = vmatprep.subr.bf16.mxu0 %v215
  %263 = vmatpush1.bf16.msra.mxu0 %v214
  %264 = vmatprep.subr.bf16.mxu0 %v211
  %265 = vmatpush1.bf16.msra.mxu0 %v210
  %266 = vmatprep.subr.bf16.mxu0 %v207
  %267 = vmatpush1.bf16.msra.mxu0 %v206
  %268 = vmatprep.subr.bf16.mxu0 %v203
  %269 = vmatpush1.bf16.msra.mxu0 %v202
  %270 = vmatprep.subr.bf16.mxu0 %v199
  %271 = vmatpush1.bf16.msra.mxu0 %v198
  %272 = vmatprep.subr.bf16.mxu0 %v195
  %273 = vmatpush1.bf16.msra.mxu0 %v194
  %274 = vmatprep.subr.bf16.mxu0 0
  %275 = vmatpush2.bf16.msra.mxu0 0
  %276 = vmatprep.subr.bf16.mxu0 0
  %277 = vmatpush2.bf16.msra.mxu0 0
  %278 = vmatprep.subr.bf16.mxu0 0
  %279 = vmatpush2.bf16.msra.mxu0 0
  %280 = vmatprep.subr.bf16.mxu0 0
  %281 = vmatpush2.bf16.msra.mxu0 0
  %282 = vmatprep.subr.bf16.mxu0 0
  %283 = vmatpush2.bf16.msra.mxu0 0
  %284 = vmatprep.subr.bf16.mxu0 0
  %285 = vmatpush2.bf16.msra.mxu0 0
  %286 = vmatprep.subr.bf16.mxu0 0
  %287 = vmatpush2.bf16.msra.mxu0 0
  %288 = vmatprep.subr.bf16.mxu0 0
  %289 = vmatpush2.bf16.msra.mxu0 0
  %290 = vmatprep.mubr.bf16.mxu0 0
  %291 = vmatmul.mubr.bf16.gmra.mxu0 %v96
  %v292 = vpop.f32.mrf.mxu0
  %v293 = vadd.f32 %v75, %v292
  %v294 = vpop.f32.mrf.mxu0
  %v295 = vadd.f32 %v79, %v294
  %v296 = vpop.f32.mrf.mxu0
  %v297 = vadd.f32 %v75, %v296
  %v298 = vpop.f32.mrf.mxu0
  %v299 = vadd.f32 %v79, %v298
  %300 = vdwg.mxu0
  %301 = vmatprep.subr.bf16.mxu0 %v225
  %302 = vmatpush1.bf16.msra.mxu0 %v224
  %303 = vmatprep.subr.bf16.mxu0 %v221
  %304 = vmatpush1.bf16.msra.mxu0 %v220
  %305 = vmatprep.subr.bf16.mxu0 %v217
  %306 = vmatpush1.bf16.msra.mxu0 %v216
  %307 = vmatprep.subr.bf16.mxu0 %v213
  %308 = vmatpush1.bf16.msra.mxu0 %v212
  %309 = vmatprep.subr.bf16.mxu0 %v209
  %310 = vmatpush1.bf16.msra.mxu0 %v208
  %311 = vmatprep.subr.bf16.mxu0 %v205
  %312 = vmatpush1.bf16.msra.mxu0 %v204
  %313 = vmatprep.subr.bf16.mxu0 %v201
  %314 = vmatpush1.bf16.msra.mxu0 %v200
  %315 = vmatprep.subr.bf16.mxu0 %v197
  %316 = vmatpush1.bf16.msra.mxu0 %v196
  %317 = vmatprep.subr.bf16.mxu0 0
  %318 = vmatpush2.bf16.msra.mxu0 0
  %319 = vmatprep.subr.bf16.mxu0 0
  %320 = vmatpush2.bf16.msra.mxu0 0
  %321 = vmatprep.subr.bf16.mxu0 0
  %322 = vmatpush2.bf16.msra.mxu0 0
  %323 = vmatprep.subr.bf16.mxu0 0
  %324 = vmatpush2.bf16.msra.mxu0 0
  %325 = vmatprep.subr.bf16.mxu0 0
  %326 = vmatpush2.bf16.msra.mxu0 0
  %327 = vmatprep.subr.bf16.mxu0 0
  %328 = vmatpush2.bf16.msra.mxu0 0
  %329 = vmatprep.subr.bf16.mxu0 0
  %330 = vmatpush2.bf16.msra.mxu0 0
  %331 = vmatprep.subr.bf16.mxu0 0
  %332 = vmatpush2.bf16.msra.mxu0 0
  %333 = vmatprep.mubr.bf16.mxu0 0
  %334 = vmatmul.mubr.bf16.gmra.mxu0 %v96
  %v335 = vpop.f32.mrf.mxu0
  %v336 = vadd.f32 %v83, %v335
  %v337 = vpop.f32.mrf.mxu0
  %v338 = vadd.f32 %v87, %v337
  %v339 = vpop.f32.mrf.mxu0
  %v340 = vadd.f32 %v83, %v339
  %v341 = vpop.f32.mrf.mxu0
  %v342 = vadd.f32 %v87, %v341
  %343 = vdwg.mxu0
  %v344 = vld [vmem:[%s1] sm:$0xf]
  %v345 = vld [vmem:[%s1 + $0x4] sm:$0xf]
  %v346 = vld [vmem:[%s5] sm:$0xff]
  %v347 = vld [vmem:[%s5 + $0x8] sm:$0xff]
  %v348 = vld [vmem:[%s5 + $0x10] sm:$0xff]
  %v349 = vld [vmem:[%s5 + $0x18] sm:$0xff]
  %v350 = vld [vmem:[%s5 + $0x20] sm:$0xff]
  %v351 = vld [vmem:[%s5 + $0x28] sm:$0xff]
  %v352 = vld [vmem:[%s5 + $0x30] sm:$0xff]
  %v353 = vld [vmem:[%s5 + $0x38] sm:$0xff]
  %v354 = vld [vmem:[%s5 + $0x40] sm:$0xff]
  %v355 = vld [vmem:[%s5 + $0x48] sm:$0xff]
  %v356 = vld [vmem:[%s5 + $0x50] sm:$0xff]
  %v357 = vld [vmem:[%s5 + $0x58] sm:$0xff]
  %v358 = vld [vmem:[%s5 + $0x60] sm:$0xff]
  %v359 = vld [vmem:[%s5 + $0x68] sm:$0xff]
  %v360 = vld [vmem:[%s5 + $0x70] sm:$0xff]
  %v361 = vld [vmem:[%s5 + $0x78] sm:$0xff]
  %v362 = vld [vmem:[%s5 + $0x80] sm:$0xff]
  %v363 = vld [vmem:[%s5 + $0x88] sm:$0xff]
  %v364 = vld [vmem:[%s5 + $0x90] sm:$0xff]
  %v365 = vld [vmem:[%s5 + $0x98] sm:$0xff]
  %v366 = vld [vmem:[%s5 + $0xa0] sm:$0xff]
  %v367 = vld [vmem:[%s5 + $0xa8] sm:$0xff]
  %v368 = vld [vmem:[%s5 + $0xb0] sm:$0xff]
  %v369 = vld [vmem:[%s5 + $0xb8] sm:$0xff]
  %v370 = vld [vmem:[%s5 + $0xc0] sm:$0xff]
  %v371 = vld [vmem:[%s5 + $0xc8] sm:$0xff]
  %v372 = vld [vmem:[%s5 + $0xd0] sm:$0xff]
  %v373 = vld [vmem:[%s5 + $0xd8] sm:$0xff]
  %v374 = vld [vmem:[%s5 + $0xe0] sm:$0xff]
  %v375 = vld [vmem:[%s5 + $0xe8] sm:$0xff]
  %v376 = vld [vmem:[%s5 + $0xf0] sm:$0xff]
  %v377 = vld [vmem:[%s5 + $0xf8] sm:$0xff]
  %v378 = vld [vmem:[%s7] sm:$0xf]
  %v380 = vlaneseq
  %v381 = vshrl.u32 %v380, 7
  %v382 = vsub.s32 0, %v381
  %v383 = vrot.slane %v378, %v382
  %v384 = vlaneseq
  %v385 = vshrl.u32 %v384, 7
  %v386 = vsub.s32 1, %v385
  %v387 = vrot.slane %v378, %v386
  %v388 = vlaneseq
  %v389 = vshrl.u32 %v388, 7
  %v390 = vsub.s32 2, %v389
  %v391 = vrot.slane %v378, %v390
  %v392 = vlaneseq
  %v393 = vshrl.u32 %v392, 7
  %v394 = vsub.s32 3, %v393
  %v395 = vrot.slane %v378, %v394
  %v402 = vunpack.c.l.b16 %v344
  %v403 = vunpack.c.l.b16 %v345
  %v404 = vpack.c.b16 %v403, %v402
  %v438 = vunpack.c.l.b16 %v346
  %v439 = vunpack.c.h.b16 %v346
  %v440 = vunpack.c.l.b16 %v347
  %v441 = vunpack.c.h.b16 %v347
  %v442 = vunpack.c.l.b16 %v348
  %v443 = vunpack.c.h.b16 %v348
  %v444 = vunpack.c.l.b16 %v349
  %v445 = vunpack.c.h.b16 %v349
  %v446 = vunpack.c.l.b16 %v350
  %v447 = vunpack.c.h.b16 %v350
  %v448 = vunpack.c.l.b16 %v351
  %v449 = vunpack.c.h.b16 %v351
  %v450 = vunpack.c.l.b16 %v352
  %v451 = vunpack.c.h.b16 %v352
  %v452 = vunpack.c.l.b16 %v353
  %v453 = vunpack.c.h.b16 %v353
  %v454 = vunpack.c.l.b16 %v354
  %v455 = vunpack.c.h.b16 %v354
  %v456 = vunpack.c.l.b16 %v355
  %v457 = vunpack.c.h.b16 %v355
  %v458 = vunpack.c.l.b16 %v356
  %v459 = vunpack.c.h.b16 %v356
  %v460 = vunpack.c.l.b16 %v357
  %v461 = vunpack.c.h.b16 %v357
  %v462 = vunpack.c.l.b16 %v358
  %v463 = vunpack.c.h.b16 %v358
  %v464 = vunpack.c.l.b16 %v359
  %v465 = vunpack.c.h.b16 %v359
  %v466 = vunpack.c.l.b16 %v360
  %v467 = vunpack.c.h.b16 %v360
  %v468 = vunpack.c.l.b16 %v361
  %v469 = vunpack.c.h.b16 %v361
  %v470 = vunpack.c.l.b16 %v362
  %v471 = vunpack.c.h.b16 %v362
  %v472 = vunpack.c.l.b16 %v363
  %v473 = vunpack.c.h.b16 %v363
  %v474 = vunpack.c.l.b16 %v364
  %v475 = vunpack.c.h.b16 %v364
  %v476 = vunpack.c.l.b16 %v365
  %v477 = vunpack.c.h.b16 %v365
  %v478 = vunpack.c.l.b16 %v366
  %v479 = vunpack.c.h.b16 %v366
  %v480 = vunpack.c.l.b16 %v367
  %v481 = vunpack.c.h.b16 %v367
  %v482 = vunpack.c.l.b16 %v368
  %v483 = vunpack.c.h.b16 %v368
  %v484 = vunpack.c.l.b16 %v369
  %v485 = vunpack.c.h.b16 %v369
  %v486 = vunpack.c.l.b16 %v370
  %v487 = vunpack.c.h.b16 %v370
  %v488 = vunpack.c.l.b16 %v371
  %v489 = vunpack.c.h.b16 %v371
  %v490 = vunpack.c.l.b16 %v372
  %v491 = vunpack.c.h.b16 %v372
  %v492 = vunpack.c.l.b16 %v373
  %v493 = vunpack.c.h.b16 %v373
  %v494 = vunpack.c.l.b16 %v374
  %v495 = vunpack.c.h.b16 %v374
  %v496 = vunpack.c.l.b16 %v375
  %v497 = vunpack.c.h.b16 %v375
  %v498 = vunpack.c.l.b16 %v376
  %v499 = vunpack.c.h.b16 %v376
  %v500 = vunpack.c.l.b16 %v377
  %v501 = vunpack.c.h.b16 %v377
  %v502 = vpack.c.b16 %v442, %v438
  %v503 = vpack.c.b16 %v443, %v439
  %v504 = vpack.c.b16 %v444, %v440
  %v505 = vpack.c.b16 %v445, %v441
  %v506 = vpack.c.b16 %v450, %v446
  %v507 = vpack.c.b16 %v451, %v447
  %v508 = vpack.c.b16 %v452, %v448
  %v509 = vpack.c.b16 %v453, %v449
  %v510 = vpack.c.b16 %v458, %v454
  %v511 = vpack.c.b16 %v459, %v455
  %v512 = vpack.c.b16 %v460, %v456
  %v513 = vpack.c.b16 %v461, %v457
  %v514 = vpack.c.b16 %v466, %v462
  %v515 = vpack.c.b16 %v467, %v463
  %v516 = vpack.c.b16 %v468, %v464
  %v517 = vpack.c.b16 %v469, %v465
  %v518 = vpack.c.b16 %v474, %v470
  %v519 = vpack.c.b16 %v475, %v471
  %v520 = vpack.c.b16 %v476, %v472
  %v521 = vpack.c.b16 %v477, %v473
  %v522 = vpack.c.b16 %v482, %v478
  %v523 = vpack.c.b16 %v483, %v479
  %v524 = vpack.c.b16 %v484, %v480
  %v525 = vpack.c.b16 %v485, %v481
  %v526 = vpack.c.b16 %v490, %v486
  %v527 = vpack.c.b16 %v491, %v487
  %v528 = vpack.c.b16 %v492, %v488
  %v529 = vpack.c.b16 %v493, %v489
  %v530 = vpack.c.b16 %v498, %v494
  %v531 = vpack.c.b16 %v499, %v495
  %v532 = vpack.c.b16 %v500, %v496
  %v533 = vpack.c.b16 %v501, %v497
  %566 = vmatprep.subr.bf16.mxu0 %v531
  %567 = vmatpush1.bf16.msra.mxu0 %v530
  %568 = vmatprep.subr.bf16.mxu0 %v527
  %569 = vmatpush1.bf16.msra.mxu0 %v526
  %570 = vmatprep.subr.bf16.mxu0 %v523
  %571 = vmatpush1.bf16.msra.mxu0 %v522
  %572 = vmatprep.subr.bf16.mxu0 %v519
  %573 = vmatpush1.bf16.msra.mxu0 %v518
  %574 = vmatprep.subr.bf16.mxu0 %v515
  %575 = vmatpush1.bf16.msra.mxu0 %v514
  %576 = vmatprep.subr.bf16.mxu0 %v511
  %577 = vmatpush1.bf16.msra.mxu0 %v510
  %578 = vmatprep.subr.bf16.mxu0 %v507
  %579 = vmatpush1.bf16.msra.mxu0 %v506
  %580 = vmatprep.subr.bf16.mxu0 %v503
  %581 = vmatpush1.bf16.msra.mxu0 %v502
  %582 = vmatprep.subr.bf16.mxu0 0
  %583 = vmatpush2.bf16.msra.mxu0 0
  %584 = vmatprep.subr.bf16.mxu0 0
  %585 = vmatpush2.bf16.msra.mxu0 0
  %586 = vmatprep.subr.bf16.mxu0 0
  %587 = vmatpush2.bf16.msra.mxu0 0
  %588 = vmatprep.subr.bf16.mxu0 0
  %589 = vmatpush2.bf16.msra.mxu0 0
  %590 = vmatprep.subr.bf16.mxu0 0
  %591 = vmatpush2.bf16.msra.mxu0 0
  %592 = vmatprep.subr.bf16.mxu0 0
  %593 = vmatpush2.bf16.msra.mxu0 0
  %594 = vmatprep.subr.bf16.mxu0 0
  %595 = vmatpush2.bf16.msra.mxu0 0
  %596 = vmatprep.subr.bf16.mxu0 0
  %597 = vmatpush2.bf16.msra.mxu0 0
  %598 = vmatprep.mubr.bf16.mxu0 0
  %599 = vmatmul.mubr.bf16.gmra.mxu0 %v404
  %v600 = vpop.f32.mrf.mxu0
  %v601 = vadd.f32 %v383, %v600
  %v602 = vpop.f32.mrf.mxu0
  %v603 = vadd.f32 %v387, %v602
  %v604 = vpop.f32.mrf.mxu0
  %v605 = vadd.f32 %v383, %v604
  %v606 = vpop.f32.mrf.mxu0
  %v607 = vadd.f32 %v387, %v606
  %608 = vdwg.mxu0
  %609 = vmatprep.subr.bf16.mxu0 %v533
  %610 = vmatpush1.bf16.msra.mxu0 %v532
  %611 = vmatprep.subr.bf16.mxu0 %v529
  %612 = vmatpush1.bf16.msra.mxu0 %v528
  %613 = vmatprep.subr.bf16.mxu0 %v525
  %614 = vmatpush1.bf16.msra.mxu0 %v524
  %615 = vmatprep.subr.bf16.mxu0 %v521
  %616 = vmatpush1.bf16.msra.mxu0 %v520
  %617 = vmatprep.subr.bf16.mxu0 %v517
  %618 = vmatpush1.bf16.msra.mxu0 %v516
  %619 = vmatprep.subr.bf16.mxu0 %v513
  %620 = vmatpush1.bf16.msra.mxu0 %v512
  %621 = vmatprep.subr.bf16.mxu0 %v509
  %622 = vmatpush1.bf16.msra.mxu0 %v508
  %623 = vmatprep.subr.bf16.mxu0 %v505
  %624 = vmatpush1.bf16.msra.mxu0 %v504
  %625 = vmatprep.subr.bf16.mxu0 0
  %626 = vmatpush2.bf16.msra.mxu0 0
  %627 = vmatprep.subr.bf16.mxu0 0
  %628 = vmatpush2.bf16.msra.mxu0 0
  %629 = vmatprep.subr.bf16.mxu0 0
  %630 = vmatpush2.bf16.msra.mxu0 0
  %631 = vmatprep.subr.bf16.mxu0 0
  %632 = vmatpush2.bf16.msra.mxu0 0
  %633 = vmatprep.subr.bf16.mxu0 0
  %634 = vmatpush2.bf16.msra.mxu0 0
  %635 = vmatprep.subr.bf16.mxu0 0
  %636 = vmatpush2.bf16.msra.mxu0 0
  %637 = vmatprep.subr.bf16.mxu0 0
  %638 = vmatpush2.bf16.msra.mxu0 0
  %639 = vmatprep.subr.bf16.mxu0 0
  %640 = vmatpush2.bf16.msra.mxu0 0
  %641 = vmatprep.mubr.bf16.mxu0 0
  %642 = vmatmul.mubr.bf16.gmra.mxu0 %v404
  %v643 = vpop.f32.mrf.mxu0
  %v644 = vadd.f32 %v391, %v643
  %v645 = vpop.f32.mrf.mxu0
  %v646 = vadd.f32 %v395, %v645
  %v647 = vpop.f32.mrf.mxu0
  %v648 = vadd.f32 %v391, %v647
  %v649 = vpop.f32.mrf.mxu0
  %v650 = vadd.f32 %v395, %v649
  %651 = vdwg.mxu0
  %v652 = vld [vmem:[%s3] sm:$0xff]
  %v653 = vld [vmem:[%s3 + $0x8] sm:$0xff]
  %v654 = vld [vmem:[%s3 + $0x10] sm:$0xff]
  %v655 = vld [vmem:[%s3 + $0x18] sm:$0xff]
  %v656 = vld [vmem:[%s3 + $0x20] sm:$0xff]
  %v657 = vld [vmem:[%s3 + $0x28] sm:$0xff]
  %v658 = vld [vmem:[%s3 + $0x30] sm:$0xff]
  %v659 = vld [vmem:[%s3 + $0x38] sm:$0xff]
  %v660 = vld [vmem:[%s3 + $0x40] sm:$0xff]
  %v661 = vld [vmem:[%s3 + $0x48] sm:$0xff]
  %v662 = vld [vmem:[%s3 + $0x50] sm:$0xff]
  %v663 = vld [vmem:[%s3 + $0x58] sm:$0xff]
  %v664 = vld [vmem:[%s3 + $0x60] sm:$0xff]
  %v665 = vld [vmem:[%s3 + $0x68] sm:$0xff]
  %v666 = vld [vmem:[%s3 + $0x70] sm:$0xff]
  %v667 = vld [vmem:[%s3 + $0x78] sm:$0xff]
  %v668 = vld [vmem:[%s3 + $0x80] sm:$0xff]
  %v669 = vld [vmem:[%s3 + $0x88] sm:$0xff]
  %v670 = vld [vmem:[%s3 + $0x90] sm:$0xff]
  %v671 = vld [vmem:[%s3 + $0x98] sm:$0xff]
  %v672 = vld [vmem:[%s3 + $0xa0] sm:$0xff]
  %v673 = vld [vmem:[%s3 + $0xa8] sm:$0xff]
  %v674 = vld [vmem:[%s3 + $0xb0] sm:$0xff]
  %v675 = vld [vmem:[%s3 + $0xb8] sm:$0xff]
  %v676 = vld [vmem:[%s3 + $0xc0] sm:$0xff]
  %v677 = vld [vmem:[%s3 + $0xc8] sm:$0xff]
  %v678 = vld [vmem:[%s3 + $0xd0] sm:$0xff]
  %v679 = vld [vmem:[%s3 + $0xd8] sm:$0xff]
  %v680 = vld [vmem:[%s3 + $0xe0] sm:$0xff]
  %v681 = vld [vmem:[%s3 + $0xe8] sm:$0xff]
  %v682 = vld [vmem:[%s3 + $0xf0] sm:$0xff]
  %v683 = vld [vmem:[%s3 + $0xf8] sm:$0xff]
  %v716 = vunpack.c.l.b16 %v652
  %v717 = vunpack.c.h.b16 %v652
  %v718 = vunpack.c.l.b16 %v653
  %v719 = vunpack.c.h.b16 %v653
  %v720 = vunpack.c.l.b16 %v654
  %v721 = vunpack.c.h.b16 %v654
  %v722 = vunpack.c.l.b16 %v655
  %v723 = vunpack.c.h.b16 %v655
  %v724 = vunpack.c.l.b16 %v656
  %v725 = vunpack.c.h.b16 %v656
  %v726 = vunpack.c.l.b16 %v657
  %v727 = vunpack.c.h.b16 %v657
  %v728 = vunpack.c.l.b16 %v658
  %v729 = vunpack.c.h.b16 %v658
  %v730 = vunpack.c.l.b16 %v659
  %v731 = vunpack.c.h.b16 %v659
  %v732 = vunpack.c.l.b16 %v660
  %v733 = vunpack.c.h.b16 %v660
  %v734 = vunpack.c.l.b16 %v661
  %v735 = vunpack.c.h.b16 %v661
  %v736 = vunpack.c.l.b16 %v662
  %v737 = vunpack.c.h.b16 %v662
  %v738 = vunpack.c.l.b16 %v663
  %v739 = vunpack.c.h.b16 %v663
  %v740 = vunpack.c.l.b16 %v664
  %v741 = vunpack.c.h.b16 %v664
  %v742 = vunpack.c.l.b16 %v665
  %v743 = vunpack.c.h.b16 %v665
  %v744 = vunpack.c.l.b16 %v666
  %v745 = vunpack.c.h.b16 %v666
  %v746 = vunpack.c.l.b16 %v667
  %v747 = vunpack.c.h.b16 %v667
  %v748 = vunpack.c.l.b16 %v668
  %v749 = vunpack.c.h.b16 %v668
  %v750 = vunpack.c.l.b16 %v669
  %v751 = vunpack.c.h.b16 %v669
  %v752 = vunpack.c.l.b16 %v670
  %v753 = vunpack.c.h.b16 %v670
  %v754 = vunpack.c.l.b16 %v671
  %v755 = vunpack.c.h.b16 %v671
  %v756 = vunpack.c.l.b16 %v672
  %v757 = vunpack.c.h.b16 %v672
  %v758 = vunpack.c.l.b16 %v673
  %v759 = vunpack.c.h.b16 %v673
  %v760 = vunpack.c.l.b16 %v674
  %v761 = vunpack.c.h.b16 %v674
  %v762 = vunpack.c.l.b16 %v675
  %v763 = vunpack.c.h.b16 %v675
  %v764 = vunpack.c.l.b16 %v676
  %v765 = vunpack.c.h.b16 %v676
  %v766 = vunpack.c.l.b16 %v677
  %v767 = vunpack.c.h.b16 %v677
  %v768 = vunpack.c.l.b16 %v678
  %v769 = vunpack.c.h.b16 %v678
  %v770 = vunpack.c.l.b16 %v679
  %v771 = vunpack.c.h.b16 %v679
  %v772 = vunpack.c.l.b16 %v680
  %v773 = vunpack.c.h.b16 %v680
  %v774 = vunpack.c.l.b16 %v681
  %v775 = vunpack.c.h.b16 %v681
  %v776 = vunpack.c.l.b16 %v682
  %v777 = vunpack.c.h.b16 %v682
  %v778 = vunpack.c.l.b16 %v683
  %v779 = vunpack.c.h.b16 %v683
  %v780 = vpack.c.b16 %v720, %v716
  %v781 = vpack.c.b16 %v721, %v717
  %v782 = vpack.c.b16 %v722, %v718
  %v783 = vpack.c.b16 %v723, %v719
  %v784 = vpack.c.b16 %v728, %v724
  %v785 = vpack.c.b16 %v729, %v725
  %v786 = vpack.c.b16 %v730, %v726
  %v787 = vpack.c.b16 %v731, %v727
  %v788 = vpack.c.b16 %v736, %v732
  %v789 = vpack.c.b16 %v737, %v733
  %v790 = vpack.c.b16 %v738, %v734
  %v791 = vpack.c.b16 %v739, %v735
  %v792 = vpack.c.b16 %v744, %v740
  %v793 = vpack.c.b16 %v745, %v741
  %v794 = vpack.c.b16 %v746, %v742
  %v795 = vpack.c.b16 %v747, %v743
  %v796 = vpack.c.b16 %v752, %v748
  %v797 = vpack.c.b16 %v753, %v749
  %v798 = vpack.c.b16 %v754, %v750
  %v799 = vpack.c.b16 %v755, %v751
  %v800 = vpack.c.b16 %v760, %v756
  %v801 = vpack.c.b16 %v761, %v757
  %v802 = vpack.c.b16 %v762, %v758
  %v803 = vpack.c.b16 %v763, %v759
  %v804 = vpack.c.b16 %v768, %v764
  %v805 = vpack.c.b16 %v769, %v765
  %v806 = vpack.c.b16 %v770, %v766
  %v807 = vpack.c.b16 %v771, %v767
  %v808 = vpack.c.b16 %v776, %v772
  %v809 = vpack.c.b16 %v777, %v773
  %v810 = vpack.c.b16 %v778, %v774
  %v811 = vpack.c.b16 %v779, %v775
  %844 = vmatprep.subr.bf16.mxu0 %v809
  %845 = vmatpush1.bf16.msra.mxu0 %v808
  %846 = vmatprep.subr.bf16.mxu0 %v805
  %847 = vmatpush1.bf16.msra.mxu0 %v804
  %848 = vmatprep.subr.bf16.mxu0 %v801
  %849 = vmatpush1.bf16.msra.mxu0 %v800
  %850 = vmatprep.subr.bf16.mxu0 %v797
  %851 = vmatpush1.bf16.msra.mxu0 %v796
  %852 = vmatprep.subr.bf16.mxu0 %v793
  %853 = vmatpush1.bf16.msra.mxu0 %v792
  %854 = vmatprep.subr.bf16.mxu0 %v789
  %855 = vmatpush1.bf16.msra.mxu0 %v788
  %856 = vmatprep.subr.bf16.mxu0 %v785
  %857 = vmatpush1.bf16.msra.mxu0 %v784
  %858 = vmatprep.subr.bf16.mxu0 %v781
  %859 = vmatpush1.bf16.msra.mxu0 %v780
  %860 = vmatprep.subr.bf16.mxu0 0
  %861 = vmatpush2.bf16.msra.mxu0 0
  %862 = vmatprep.subr.bf16.mxu0 0
  %863 = vmatpush2.bf16.msra.mxu0 0
  %864 = vmatprep.subr.bf16.mxu0 0
  %865 = vmatpush2.bf16.msra.mxu0 0
  %866 = vmatprep.subr.bf16.mxu0 0
  %867 = vmatpush2.bf16.msra.mxu0 0
  %868 = vmatprep.subr.bf16.mxu0 0
  %869 = vmatpush2.bf16.msra.mxu0 0
  %870 = vmatprep.subr.bf16.mxu0 0
  %871 = vmatpush2.bf16.msra.mxu0 0
  %872 = vmatprep.subr.bf16.mxu0 0
  %873 = vmatpush2.bf16.msra.mxu0 0
  %874 = vmatprep.subr.bf16.mxu0 0
  %875 = vmatpush2.bf16.msra.mxu0 0
  %876 = vmatprep.mubr.bf16.mxu0 0
  %877 = vmatmul.mubr.bf16.gmra.mxu0 0
  %v878 = vpop.f32.mrf.mxu0
  %v879 = vadd.f32 0.0, %v878
  %v880 = vpop.f32.mrf.mxu0
  %v881 = vadd.f32 0.0, %v880
  %v882 = vpop.f32.mrf.mxu0
  %v883 = vpop.f32.mrf.mxu0
  %884 = vdwg.mxu0
  %885 = vmatprep.subr.bf16.mxu0 %v811
  %886 = vmatpush1.bf16.msra.mxu0 %v810
  %887 = vmatprep.subr.bf16.mxu0 %v807
  %888 = vmatpush1.bf16.msra.mxu0 %v806
  %889 = vmatprep.subr.bf16.mxu0 %v803
  %890 = vmatpush1.bf16.msra.mxu0 %v802
  %891 = vmatprep.subr.bf16.mxu0 %v799
  %892 = vmatpush1.bf16.msra.mxu0 %v798
  %893 = vmatprep.subr.bf16.mxu0 %v795
  %894 = vmatpush1.bf16.msra.mxu0 %v794
  %895 = vmatprep.subr.bf16.mxu0 %v791
  %896 = vmatpush1.bf16.msra.mxu0 %v790
  %897 = vmatprep.subr.bf16.mxu0 %v787
  %898 = vmatpush1.bf16.msra.mxu0 %v786
  %899 = vmatprep.subr.bf16.mxu0 %v783
  %900 = vmatpush1.bf16.msra.mxu0 %v782
  %901 = vmatprep.subr.bf16.mxu0 0
  %902 = vmatpush2.bf16.msra.mxu0 0
  %903 = vmatprep.subr.bf16.mxu0 0
  %904 = vmatpush2.bf16.msra.mxu0 0
  %905 = vmatprep.subr.bf16.mxu0 0
  %906 = vmatpush2.bf16.msra.mxu0 0
  %907 = vmatprep.subr.bf16.mxu0 0
  %908 = vmatpush2.bf16.msra.mxu0 0
  %909 = vmatprep.subr.bf16.mxu0 0
  %910 = vmatpush2.bf16.msra.mxu0 0
  %911 = vmatprep.subr.bf16.mxu0 0
  %912 = vmatpush2.bf16.msra.mxu0 0
  %913 = vmatprep.subr.bf16.mxu0 0
  %914 = vmatpush2.bf16.msra.mxu0 0
  %915 = vmatprep.subr.bf16.mxu0 0
  %916 = vmatpush2.bf16.msra.mxu0 0
  %917 = vmatprep.mubr.bf16.mxu0 0
  %918 = vmatmul.mubr.bf16.gmra.mxu0 0
  %v919 = vpop.f32.mrf.mxu0
  %v920 = vadd.f32 0.0, %v919
  %v921 = vpop.f32.mrf.mxu0
  %v922 = vadd.f32 0.0, %v921
  %v923 = vpop.f32.mrf.mxu0
  %v924 = vpop.f32.mrf.mxu0
  %925 = vdwg.mxu0
  %v926 = vadd.f32 %v293, %v879
  %v927 = vadd.f32 %v295, %v881
  %v928 = vadd.f32 %v336, %v920
  %v929 = vadd.f32 %v338, %v922
  %v930 = vmul.f32 %v926, 0.5
  %v931 = vmul.f32 %v927, 0.5
  %v932 = vmul.f32 %v928, 0.5
  %v933 = vtanh.pop %v930
  %v934 = vtanh.pop %v931
  %v935 = vtanh.pop %v932
  %v936 = vmul.f32 %v933, 0.5
  %v937 = vmul.f32 %v934, 0.5
  %v938 = vmul.f32 %v935, 0.5
  %v939 = vadd.f32 %v936, 0.5
  %v940 = vadd.f32 %v937, 0.5
  %v941 = vadd.f32 %v938, 0.5
  %v942 = vtanh.pop %v929
  %v943 = vmul.f32 %v940, 0.0
  %v944 = vmul.f32 %v939, %v942
  %v945 = vadd.f32 %v943, %v944
  %v946 = vtanh.pop %v945
  %v947 = vmul.f32 %v941, %v946
  %v948 = vpack.c.bf16 %v947, %v947
  %949 = vmatprep.subr.bf16.mxu0 %v809
  %950 = vmatpush1.bf16.msra.mxu0 %v808
  %951 = vmatprep.subr.bf16.mxu0 %v805
  %952 = vmatpush1.bf16.msra.mxu0 %v804
  %953 = vmatprep.subr.bf16.mxu0 %v801
  %954 = vmatpush1.bf16.msra.mxu0 %v800
  %955 = vmatprep.subr.bf16.mxu0 %v797
  %956 = vmatpush1.bf16.msra.mxu0 %v796
  %957 = vmatprep.subr.bf16.mxu0 %v793
  %958 = vmatpush1.bf16.msra.mxu0 %v792
  %959 = vmatprep.subr.bf16.mxu0 %v789
  %960 = vmatpush1.bf16.msra.mxu0 %v788
  %961 = vmatprep.subr.bf16.mxu0 %v785
  %962 = vmatpush1.bf16.msra.mxu0 %v784
  %963 = vmatprep.subr.bf16.mxu0 %v781
  %964 = vmatpush1.bf16.msra.mxu0 %v780
  %965 = vmatprep.subr.bf16.mxu0 0
  %966 = vmatpush2.bf16.msra.mxu0 0
  %967 = vmatprep.subr.bf16.mxu0 0
  %968 = vmatpush2.bf16.msra.mxu0 0
  %969 = vmatprep.subr.bf16.mxu0 0
  %970 = vmatpush2.bf16.msra.mxu0 0
  %971 = vmatprep.subr.bf16.mxu0 0
  %972 = vmatpush2.bf16.msra.mxu0 0
  %973 = vmatprep.subr.bf16.mxu0 0
  %974 = vmatpush2.bf16.msra.mxu0 0
  %975 = vmatprep.subr.bf16.mxu0 0
  %976 = vmatpush2.bf16.msra.mxu0 0
  %977 = vmatprep.subr.bf16.mxu0 0
  %978 = vmatpush2.bf16.msra.mxu0 0
  %979 = vmatprep.subr.bf16.mxu0 0
  %980 = vmatpush2.bf16.msra.mxu0 0
  %981 = vmatprep.mubr.bf16.mxu0 0
  %982 = vmatmul.mubr.bf16.gmra.mxu0 %v948
  %v983 = vpop.f32.mrf.mxu0
  %v984 = vadd.f32 0.0, %v983
  %v985 = vpop.f32.mrf.mxu0
  %v986 = vadd.f32 0.0, %v985
  %v987 = vpop.f32.mrf.mxu0
  %v988 = vpop.f32.mrf.mxu0
  %989 = vdwg.mxu0
  %990 = vmatprep.subr.bf16.mxu0 %v811
  %991 = vmatpush1.bf16.msra.mxu0 %v810
  %992 = vmatprep.subr.bf16.mxu0 %v807
  %993 = vmatpush1.bf16.msra.mxu0 %v806
  %994 = vmatprep.subr.bf16.mxu0 %v803
  %995 = vmatpush1.bf16.msra.mxu0 %v802
  %996 = vmatprep.subr.bf16.mxu0 %v799
  %997 = vmatpush1.bf16.msra.mxu0 %v798
  %998 = vmatprep.subr.bf16.mxu0 %v795
  %999 = vmatpush1.bf16.msra.mxu0 %v794
  %1000 = vmatprep.subr.bf16.mxu0 %v791
  %1001 = vmatpush1.bf16.msra.mxu0 %v790
  %1002 = vmatprep.subr.bf16.mxu0 %v787
  %1003 = vmatpush1.bf16.msra.mxu0 %v786
  %1004 = vmatprep.subr.bf16.mxu0 %v783
  %1005 = vmatpush1.bf16.msra.mxu0 %v782
  %1006 = vmatprep.subr.bf16.mxu0 0
  %1007 = vmatpush2.bf16.msra.mxu0 0
  %1008 = vmatprep.subr.bf16.mxu0 0
  %1009 = vmatpush2.bf16.msra.mxu0 0
  %1010 = vmatprep.subr.bf16.mxu0 0
  %1011 = vmatpush2.bf16.msra.mxu0 0
  %1012 = vmatprep.subr.bf16.mxu0 0
  %1013 = vmatpush2.bf16.msra.mxu0 0
  %1014 = vmatprep.subr.bf16.mxu0 0
  %1015 = vmatpush2.bf16.msra.mxu0 0
  %1016 = vmatprep.subr.bf16.mxu0 0
  %1017 = vmatpush2.bf16.msra.mxu0 0
  %1018 = vmatprep.subr.bf16.mxu0 0
  %1019 = vmatpush2.bf16.msra.mxu0 0
  %1020 = vmatprep.subr.bf16.mxu0 0
  %1021 = vmatpush2.bf16.msra.mxu0 0
  %1022 = vmatprep.mubr.bf16.mxu0 0
  %1023 = vmatmul.mubr.bf16.gmra.mxu0 %v948
  %v1024 = vpop.f32.mrf.mxu0
  %v1025 = vadd.f32 0.0, %v1024
  %v1026 = vpop.f32.mrf.mxu0
  %v1027 = vadd.f32 0.0, %v1026
  %v1028 = vpop.f32.mrf.mxu0
  %v1029 = vpop.f32.mrf.mxu0
  %1030 = vdwg.mxu0
  %v1035 = vrot.slane %v984, 6
  %v1036 = vrot.slane %v986, 6
  %v1037 = vrot.slane %v1025, 6
  %v1038 = vrot.slane %v1027, 6
  %v1043 = vadd.f32 %v293, %v1035
  %v1044 = vadd.f32 %v295, %v1036
  %v1045 = vadd.f32 %v336, %v1037
  %v1046 = vadd.f32 %v338, %v1038
  %v1047 = vmul.f32 %v1043, 0.5
  %v1048 = vmul.f32 %v1044, 0.5
  %v1049 = vmul.f32 %v1045, 0.5
  %v1050 = vtanh.pop %v1047
  %v1051 = vtanh.pop %v1048
  %v1052 = vtanh.pop %v1049
  %v1053 = vmul.f32 %v1050, 0.5
  %v1054 = vmul.f32 %v1051, 0.5
  %v1055 = vmul.f32 %v1052, 0.5
  %v1056 = vadd.f32 %v1053, 0.5
  %v1057 = vadd.f32 %v1054, 0.5
  %v1058 = vadd.f32 %v1055, 0.5
  %v1059 = vtanh.pop %v1046
  %v1061 = vrot.slane %v945, 6
  %v1063 = vmul.f32 %v1057, %v1061
  %v1064 = vmul.f32 %v1056, %v1059
  %v1065 = vadd.f32 %v1063, %v1064
  %v1066 = vtanh.pop %v1065
  %v1067 = vmul.f32 %v1058, %v1066
  %v1068 = vpack.c.bf16 %v1067, %v1067
  %v1070 = vrot.slane %v1068, 1
  %1072 = vmatprep.subr.bf16.mxu0 %v809
  %1073 = vmatpush1.bf16.msra.mxu0 %v808
  %1074 = vmatprep.subr.bf16.mxu0 %v805
  %1075 = vmatpush1.bf16.msra.mxu0 %v804
  %1076 = vmatprep.subr.bf16.mxu0 %v801
  %1077 = vmatpush1.bf16.msra.mxu0 %v800
  %1078 = vmatprep.subr.bf16.mxu0 %v797
  %1079 = vmatpush1.bf16.msra.mxu0 %v796
  %1080 = vmatprep.subr.bf16.mxu0 %v793
  %1081 = vmatpush1.bf16.msra.mxu0 %v792
  %1082 = vmatprep.subr.bf16.mxu0 %v789
  %1083 = vmatpush1.bf16.msra.mxu0 %v788
  %1084 = vmatprep.subr.bf16.mxu0 %v785
  %1085 = vmatpush1.bf16.msra.mxu0 %v784
  %1086 = vmatprep.subr.bf16.mxu0 %v781
  %1087 = vmatpush1.bf16.msra.mxu0 %v780
  %1088 = vmatprep.subr.bf16.mxu0 0
  %1089 = vmatpush2.bf16.msra.mxu0 0
  %1090 = vmatprep.subr.bf16.mxu0 0
  %1091 = vmatpush2.bf16.msra.mxu0 0
  %1092 = vmatprep.subr.bf16.mxu0 0
  %1093 = vmatpush2.bf16.msra.mxu0 0
  %1094 = vmatprep.subr.bf16.mxu0 0
  %1095 = vmatpush2.bf16.msra.mxu0 0
  %1096 = vmatprep.subr.bf16.mxu0 0
  %1097 = vmatpush2.bf16.msra.mxu0 0
  %1098 = vmatprep.subr.bf16.mxu0 0
  %1099 = vmatpush2.bf16.msra.mxu0 0
  %1100 = vmatprep.subr.bf16.mxu0 0
  %1101 = vmatpush2.bf16.msra.mxu0 0
  %1102 = vmatprep.subr.bf16.mxu0 0
  %1103 = vmatpush2.bf16.msra.mxu0 0
  %1104 = vmatprep.mubr.bf16.mxu0 0
  %1105 = vmatmul.mubr.bf16.gmra.mxu0 %v1070
  %v1106 = vpop.f32.mrf.mxu0
  %v1107 = vadd.f32 0.0, %v1106
  %v1108 = vpop.f32.mrf.mxu0
  %v1109 = vadd.f32 0.0, %v1108
  %v1110 = vpop.f32.mrf.mxu0
  %v1111 = vpop.f32.mrf.mxu0
  %1112 = vdwg.mxu0
  %1113 = vmatprep.subr.bf16.mxu0 %v811
  %1114 = vmatpush1.bf16.msra.mxu0 %v810
  %1115 = vmatprep.subr.bf16.mxu0 %v807
  %1116 = vmatpush1.bf16.msra.mxu0 %v806
  %1117 = vmatprep.subr.bf16.mxu0 %v803
  %1118 = vmatpush1.bf16.msra.mxu0 %v802
  %1119 = vmatprep.subr.bf16.mxu0 %v799
  %1120 = vmatpush1.bf16.msra.mxu0 %v798
  %1121 = vmatprep.subr.bf16.mxu0 %v795
  %1122 = vmatpush1.bf16.msra.mxu0 %v794
  %1123 = vmatprep.subr.bf16.mxu0 %v791
  %1124 = vmatpush1.bf16.msra.mxu0 %v790
  %1125 = vmatprep.subr.bf16.mxu0 %v787
  %1126 = vmatpush1.bf16.msra.mxu0 %v786
  %1127 = vmatprep.subr.bf16.mxu0 %v783
  %1128 = vmatpush1.bf16.msra.mxu0 %v782
  %1129 = vmatprep.subr.bf16.mxu0 0
  %1130 = vmatpush2.bf16.msra.mxu0 0
  %1131 = vmatprep.subr.bf16.mxu0 0
  %1132 = vmatpush2.bf16.msra.mxu0 0
  %1133 = vmatprep.subr.bf16.mxu0 0
  %1134 = vmatpush2.bf16.msra.mxu0 0
  %1135 = vmatprep.subr.bf16.mxu0 0
  %1136 = vmatpush2.bf16.msra.mxu0 0
  %1137 = vmatprep.subr.bf16.mxu0 0
  %1138 = vmatpush2.bf16.msra.mxu0 0
  %1139 = vmatprep.subr.bf16.mxu0 0
  %1140 = vmatpush2.bf16.msra.mxu0 0
  %1141 = vmatprep.subr.bf16.mxu0 0
  %1142 = vmatpush2.bf16.msra.mxu0 0
  %1143 = vmatprep.subr.bf16.mxu0 0
  %1144 = vmatpush2.bf16.msra.mxu0 0
  %1145 = vmatprep.mubr.bf16.mxu0 0
  %1146 = vmatmul.mubr.bf16.gmra.mxu0 %v1070
  %v1147 = vpop.f32.mrf.mxu0
  %v1148 = vadd.f32 0.0, %v1147
  %v1149 = vpop.f32.mrf.mxu0
  %v1150 = vadd.f32 0.0, %v1149
  %v1151 = vpop.f32.mrf.mxu0
  %v1152 = vpop.f32.mrf.mxu0
  %1153 = vdwg.mxu0
  %v1158 = vrot.slane %v1107, 4
  %v1159 = vrot.slane %v1109, 4
  %v1160 = vrot.slane %v1148, 4
  %v1161 = vrot.slane %v1150, 4
  %v1166 = vadd.f32 %v293, %v1158
  %v1167 = vadd.f32 %v295, %v1159
  %v1168 = vadd.f32 %v336, %v1160
  %v1169 = vadd.f32 %v338, %v1161
  %v1170 = vmul.f32 %v1166, 0.5
  %v1171 = vmul.f32 %v1167, 0.5
  %v1172 = vmul.f32 %v1168, 0.5
  %v1173 = vtanh.pop %v1170
  %v1174 = vtanh.pop %v1171
  %v1175 = vtanh.pop %v1172
  %v1176 = vmul.f32 %v1173, 0.5
  %v1177 = vmul.f32 %v1174, 0.5
  %v1178 = vmul.f32 %v1175, 0.5
  %v1179 = vadd.f32 %v1176, 0.5
  %v1180 = vadd.f32 %v1177, 0.5
  %v1181 = vadd.f32 %v1178, 0.5
  %v1182 = vtanh.pop %v1169
  %v1184 = vrot.slane %v1065, 6
  %v1186 = vmul.f32 %v1180, %v1184
  %v1187 = vmul.f32 %v1179, %v1182
  %v1188 = vadd.f32 %v1186, %v1187
  %v1189 = vtanh.pop %v1188
  %v1190 = vmul.f32 %v1181, %v1189
  %v1191 = vpack.c.bf16 %v1190, %v1190
  %v1193 = vrot.slane %v1191, 2
  %1195 = vmatprep.subr.bf16.mxu0 %v809
  %1196 = vmatpush1.bf16.msra.mxu0 %v808
  %1197 = vmatprep.subr.bf16.mxu0 %v805
  %1198 = vmatpush1.bf16.msra.mxu0 %v804
  %1199 = vmatprep.subr.bf16.mxu0 %v801
  %1200 = vmatpush1.bf16.msra.mxu0 %v800
  %1201 = vmatprep.subr.bf16.mxu0 %v797
  %1202 = vmatpush1.bf16.msra.mxu0 %v796
  %1203 = vmatprep.subr.bf16.mxu0 %v793
  %1204 = vmatpush1.bf16.msra.mxu0 %v792
  %1205 = vmatprep.subr.bf16.mxu0 %v789
  %1206 = vmatpush1.bf16.msra.mxu0 %v788
  %1207 = vmatprep.subr.bf16.mxu0 %v785
  %1208 = vmatpush1.bf16.msra.mxu0 %v784
  %1209 = vmatprep.subr.bf16.mxu0 %v781
  %1210 = vmatpush1.bf16.msra.mxu0 %v780
  %1211 = vmatprep.subr.bf16.mxu0 0
  %1212 = vmatpush2.bf16.msra.mxu0 0
  %1213 = vmatprep.subr.bf16.mxu0 0
  %1214 = vmatpush2.bf16.msra.mxu0 0
  %1215 = vmatprep.subr.bf16.mxu0 0
  %1216 = vmatpush2.bf16.msra.mxu0 0
  %1217 = vmatprep.subr.bf16.mxu0 0
  %1218 = vmatpush2.bf16.msra.mxu0 0
  %1219 = vmatprep.subr.bf16.mxu0 0
  %1220 = vmatpush2.bf16.msra.mxu0 0
  %1221 = vmatprep.subr.bf16.mxu0 0
  %1222 = vmatpush2.bf16.msra.mxu0 0
  %1223 = vmatprep.subr.bf16.mxu0 0
  %1224 = vmatpush2.bf16.msra.mxu0 0
  %1225 = vmatprep.subr.bf16.mxu0 0
  %1226 = vmatpush2.bf16.msra.mxu0 0
  %1227 = vmatprep.mubr.bf16.mxu0 0
  %1228 = vmatmul.mubr.bf16.gmra.mxu0 %v1193
  %v1229 = vpop.f32.mrf.mxu0
  %v1230 = vadd.f32 0.0, %v1229
  %v1231 = vpop.f32.mrf.mxu0
  %v1232 = vadd.f32 0.0, %v1231
  %v1233 = vpop.f32.mrf.mxu0
  %v1234 = vpop.f32.mrf.mxu0
  %1235 = vdwg.mxu0
  %1236 = vmatprep.subr.bf16.mxu0 %v811
  %1237 = vmatpush1.bf16.msra.mxu0 %v810
  %1238 = vmatprep.subr.bf16.mxu0 %v807
  %1239 = vmatpush1.bf16.msra.mxu0 %v806
  %1240 = vmatprep.subr.bf16.mxu0 %v803
  %1241 = vmatpush1.bf16.msra.mxu0 %v802
  %1242 = vmatprep.subr.bf16.mxu0 %v799
  %1243 = vmatpush1.bf16.msra.mxu0 %v798
  %1244 = vmatprep.subr.bf16.mxu0 %v795
  %1245 = vmatpush1.bf16.msra.mxu0 %v794
  %1246 = vmatprep.subr.bf16.mxu0 %v791
  %1247 = vmatpush1.bf16.msra.mxu0 %v790
  %1248 = vmatprep.subr.bf16.mxu0 %v787
  %1249 = vmatpush1.bf16.msra.mxu0 %v786
  %1250 = vmatprep.subr.bf16.mxu0 %v783
  %1251 = vmatpush1.bf16.msra.mxu0 %v782
  %1252 = vmatprep.subr.bf16.mxu0 0
  %1253 = vmatpush2.bf16.msra.mxu0 0
  %1254 = vmatprep.subr.bf16.mxu0 0
  %1255 = vmatpush2.bf16.msra.mxu0 0
  %1256 = vmatprep.subr.bf16.mxu0 0
  %1257 = vmatpush2.bf16.msra.mxu0 0
  %1258 = vmatprep.subr.bf16.mxu0 0
  %1259 = vmatpush2.bf16.msra.mxu0 0
  %1260 = vmatprep.subr.bf16.mxu0 0
  %1261 = vmatpush2.bf16.msra.mxu0 0
  %1262 = vmatprep.subr.bf16.mxu0 0
  %1263 = vmatpush2.bf16.msra.mxu0 0
  %1264 = vmatprep.subr.bf16.mxu0 0
  %1265 = vmatpush2.bf16.msra.mxu0 0
  %1266 = vmatprep.subr.bf16.mxu0 0
  %1267 = vmatpush2.bf16.msra.mxu0 0
  %1268 = vmatprep.mubr.bf16.mxu0 0
  %1269 = vmatmul.mubr.bf16.gmra.mxu0 %v1193
  %v1270 = vpop.f32.mrf.mxu0
  %v1271 = vadd.f32 0.0, %v1270
  %v1272 = vpop.f32.mrf.mxu0
  %v1273 = vadd.f32 0.0, %v1272
  %v1274 = vpop.f32.mrf.mxu0
  %v1275 = vpop.f32.mrf.mxu0
  %1276 = vdwg.mxu0
  %v1281 = vrot.slane %v1230, 2
  %v1282 = vrot.slane %v1232, 2
  %v1283 = vrot.slane %v1271, 2
  %v1284 = vrot.slane %v1273, 2
  %v1289 = vadd.f32 %v293, %v1281
  %v1290 = vadd.f32 %v295, %v1282
  %v1291 = vadd.f32 %v336, %v1283
  %v1292 = vadd.f32 %v338, %v1284
  %v1293 = vmul.f32 %v1289, 0.5
  %v1294 = vmul.f32 %v1290, 0.5
  %v1295 = vmul.f32 %v1291, 0.5
  %v1296 = vtanh.pop %v1293
  %v1297 = vtanh.pop %v1294
  %v1298 = vtanh.pop %v1295
  %v1299 = vmul.f32 %v1296, 0.5
  %v1300 = vmul.f32 %v1297, 0.5
  %v1301 = vmul.f32 %v1298, 0.5
  %v1302 = vadd.f32 %v1299, 0.5
  %v1303 = vadd.f32 %v1300, 0.5
  %v1304 = vadd.f32 %v1301, 0.5
  %v1305 = vtanh.pop %v1292
  %v1307 = vrot.slane %v1188, 6
  %v1309 = vmul.f32 %v1303, %v1307
  %v1310 = vmul.f32 %v1302, %v1305
  %v1311 = vadd.f32 %v1309, %v1310
  %v1312 = vtanh.pop %v1311
  %v1313 = vmul.f32 %v1304, %v1312
  %v1314 = vpack.c.bf16 %v1313, %v1313
  %v1316 = vrot.slane %v1314, 3
  %1318 = vmatprep.subr.bf16.mxu0 %v809
  %1319 = vmatpush1.bf16.msra.mxu0 %v808
  %1320 = vmatprep.subr.bf16.mxu0 %v805
  %1321 = vmatpush1.bf16.msra.mxu0 %v804
  %1322 = vmatprep.subr.bf16.mxu0 %v801
  %1323 = vmatpush1.bf16.msra.mxu0 %v800
  %1324 = vmatprep.subr.bf16.mxu0 %v797
  %1325 = vmatpush1.bf16.msra.mxu0 %v796
  %1326 = vmatprep.subr.bf16.mxu0 %v793
  %1327 = vmatpush1.bf16.msra.mxu0 %v792
  %1328 = vmatprep.subr.bf16.mxu0 %v789
  %1329 = vmatpush1.bf16.msra.mxu0 %v788
  %1330 = vmatprep.subr.bf16.mxu0 %v785
  %1331 = vmatpush1.bf16.msra.mxu0 %v784
  %1332 = vmatprep.subr.bf16.mxu0 %v781
  %1333 = vmatpush1.bf16.msra.mxu0 %v780
  %1334 = vmatprep.subr.bf16.mxu0 0
  %1335 = vmatpush2.bf16.msra.mxu0 0
  %1336 = vmatprep.subr.bf16.mxu0 0
  %1337 = vmatpush2.bf16.msra.mxu0 0
  %1338 = vmatprep.subr.bf16.mxu0 0
  %1339 = vmatpush2.bf16.msra.mxu0 0
  %1340 = vmatprep.subr.bf16.mxu0 0
  %1341 = vmatpush2.bf16.msra.mxu0 0
  %1342 = vmatprep.subr.bf16.mxu0 0
  %1343 = vmatpush2.bf16.msra.mxu0 0
  %1344 = vmatprep.subr.bf16.mxu0 0
  %1345 = vmatpush2.bf16.msra.mxu0 0
  %1346 = vmatprep.subr.bf16.mxu0 0
  %1347 = vmatpush2.bf16.msra.mxu0 0
  %1348 = vmatprep.subr.bf16.mxu0 0
  %1349 = vmatpush2.bf16.msra.mxu0 0
  %1350 = vmatprep.mubr.bf16.mxu0 0
  %1351 = vmatmul.mubr.bf16.gmra.mxu0 %v1316
  %v1352 = vpop.f32.mrf.mxu0
  %v1353 = vadd.f32 0.0, %v1352
  %v1354 = vpop.f32.mrf.mxu0
  %v1355 = vadd.f32 0.0, %v1354
  %v1356 = vpop.f32.mrf.mxu0
  %v1357 = vpop.f32.mrf.mxu0
  %1358 = vdwg.mxu0
  %1359 = vmatprep.subr.bf16.mxu0 %v811
  %1360 = vmatpush1.bf16.msra.mxu0 %v810
  %1361 = vmatprep.subr.bf16.mxu0 %v807
  %1362 = vmatpush1.bf16.msra.mxu0 %v806
  %1363 = vmatprep.subr.bf16.mxu0 %v803
  %1364 = vmatpush1.bf16.msra.mxu0 %v802
  %1365 = vmatprep.subr.bf16.mxu0 %v799
  %1366 = vmatpush1.bf16.msra.mxu0 %v798
  %1367 = vmatprep.subr.bf16.mxu0 %v795
  %1368 = vmatpush1.bf16.msra.mxu0 %v794
  %1369 = vmatprep.subr.bf16.mxu0 %v791
  %1370 = vmatpush1.bf16.msra.mxu0 %v790
  %1371 = vmatprep.subr.bf16.mxu0 %v787
  %1372 = vmatpush1.bf16.msra.mxu0 %v786
  %1373 = vmatprep.subr.bf16.mxu0 %v783
  %1374 = vmatpush1.bf16.msra.mxu0 %v782
  %1375 = vmatprep.subr.bf16.mxu0 0
  %1376 = vmatpush2.bf16.msra.mxu0 0
  %1377 = vmatprep.subr.bf16.mxu0 0
  %1378 = vmatpush2.bf16.msra.mxu0 0
  %1379 = vmatprep.subr.bf16.mxu0 0
  %1380 = vmatpush2.bf16.msra.mxu0 0
  %1381 = vmatprep.subr.bf16.mxu0 0
  %1382 = vmatpush2.bf16.msra.mxu0 0
  %1383 = vmatprep.subr.bf16.mxu0 0
  %1384 = vmatpush2.bf16.msra.mxu0 0
  %1385 = vmatprep.subr.bf16.mxu0 0
  %1386 = vmatpush2.bf16.msra.mxu0 0
  %1387 = vmatprep.subr.bf16.mxu0 0
  %1388 = vmatpush2.bf16.msra.mxu0 0
  %1389 = vmatprep.subr.bf16.mxu0 0
  %1390 = vmatpush2.bf16.msra.mxu0 0
  %1391 = vmatprep.mubr.bf16.mxu0 0
  %1392 = vmatmul.mubr.bf16.gmra.mxu0 %v1316
  %v1393 = vpop.f32.mrf.mxu0
  %v1394 = vadd.f32 0.0, %v1393
  %v1395 = vpop.f32.mrf.mxu0
  %v1396 = vadd.f32 0.0, %v1395
  %v1397 = vpop.f32.mrf.mxu0
  %v1398 = vpop.f32.mrf.mxu0
  %1399 = vdwg.mxu0
  %v1400 = vadd.f32 %v297, %v1353
  %v1401 = vadd.f32 %v299, %v1355
  %v1402 = vadd.f32 %v340, %v1394
  %v1403 = vadd.f32 %v342, %v1396
  %v1404 = vmul.f32 %v1400, 0.5
  %v1405 = vmul.f32 %v1401, 0.5
  %v1406 = vmul.f32 %v1402, 0.5
  %v1407 = vtanh.pop %v1404
  %v1408 = vtanh.pop %v1405
  %v1409 = vtanh.pop %v1406
  %v1410 = vmul.f32 %v1407, 0.5
  %v1411 = vmul.f32 %v1408, 0.5
  %v1412 = vmul.f32 %v1409, 0.5
  %v1413 = vadd.f32 %v1410, 0.5
  %v1414 = vadd.f32 %v1411, 0.5
  %v1415 = vadd.f32 %v1412, 0.5
  %v1416 = vtanh.pop %v1403
  %v1418 = vrot.slane %v1311, 6
  %v1420 = vmul.f32 %v1414, %v1418
  %v1421 = vmul.f32 %v1413, %v1416
  %v1422 = vadd.f32 %v1420, %v1421
  %v1423 = vtanh.pop %v1422
  %v1424 = vmul.f32 %v1415, %v1423
  %v1425 = vpack.c.bf16 %v1424, %v1424
  %1426 = vmatprep.subr.bf16.mxu0 %v809
  %1427 = vmatpush1.bf16.msra.mxu0 %v808
  %1428 = vmatprep.subr.bf16.mxu0 %v805
  %1429 = vmatpush1.bf16.msra.mxu0 %v804
  %1430 = vmatprep.subr.bf16.mxu0 %v801
  %1431 = vmatpush1.bf16.msra.mxu0 %v800
  %1432 = vmatprep.subr.bf16.mxu0 %v797
  %1433 = vmatpush1.bf16.msra.mxu0 %v796
  %1434 = vmatprep.subr.bf16.mxu0 %v793
  %1435 = vmatpush1.bf16.msra.mxu0 %v792
  %1436 = vmatprep.subr.bf16.mxu0 %v789
  %1437 = vmatpush1.bf16.msra.mxu0 %v788
  %1438 = vmatprep.subr.bf16.mxu0 %v785
  %1439 = vmatpush1.bf16.msra.mxu0 %v784
  %1440 = vmatprep.subr.bf16.mxu0 %v781
  %1441 = vmatpush1.bf16.msra.mxu0 %v780
  %1442 = vmatprep.subr.bf16.mxu0 0
  %1443 = vmatpush2.bf16.msra.mxu0 0
  %1444 = vmatprep.subr.bf16.mxu0 0
  %1445 = vmatpush2.bf16.msra.mxu0 0
  %1446 = vmatprep.subr.bf16.mxu0 0
  %1447 = vmatpush2.bf16.msra.mxu0 0
  %1448 = vmatprep.subr.bf16.mxu0 0
  %1449 = vmatpush2.bf16.msra.mxu0 0
  %1450 = vmatprep.subr.bf16.mxu0 0
  %1451 = vmatpush2.bf16.msra.mxu0 0
  %1452 = vmatprep.subr.bf16.mxu0 0
  %1453 = vmatpush2.bf16.msra.mxu0 0
  %1454 = vmatprep.subr.bf16.mxu0 0
  %1455 = vmatpush2.bf16.msra.mxu0 0
  %1456 = vmatprep.subr.bf16.mxu0 0
  %1457 = vmatpush2.bf16.msra.mxu0 0
  %1458 = vmatprep.mubr.bf16.mxu0 0
  %1459 = vmatmul.mubr.bf16.gmra.mxu0 %v1425
  %v1460 = vpop.f32.mrf.mxu0
  %v1461 = vadd.f32 0.0, %v1460
  %v1462 = vpop.f32.mrf.mxu0
  %v1463 = vadd.f32 0.0, %v1462
  %v1464 = vpop.f32.mrf.mxu0
  %v1465 = vpop.f32.mrf.mxu0
  %1466 = vdwg.mxu0
  %1467 = vmatprep.subr.bf16.mxu0 %v811
  %1468 = vmatpush1.bf16.msra.mxu0 %v810
  %1469 = vmatprep.subr.bf16.mxu0 %v807
  %1470 = vmatpush1.bf16.msra.mxu0 %v806
  %1471 = vmatprep.subr.bf16.mxu0 %v803
  %1472 = vmatpush1.bf16.msra.mxu0 %v802
  %1473 = vmatprep.subr.bf16.mxu0 %v799
  %1474 = vmatpush1.bf16.msra.mxu0 %v798
  %1475 = vmatprep.subr.bf16.mxu0 %v795
  %1476 = vmatpush1.bf16.msra.mxu0 %v794
  %1477 = vmatprep.subr.bf16.mxu0 %v791
  %1478 = vmatpush1.bf16.msra.mxu0 %v790
  %1479 = vmatprep.subr.bf16.mxu0 %v787
  %1480 = vmatpush1.bf16.msra.mxu0 %v786
  %1481 = vmatprep.subr.bf16.mxu0 %v783
  %1482 = vmatpush1.bf16.msra.mxu0 %v782
  %1483 = vmatprep.subr.bf16.mxu0 0
  %1484 = vmatpush2.bf16.msra.mxu0 0
  %1485 = vmatprep.subr.bf16.mxu0 0
  %1486 = vmatpush2.bf16.msra.mxu0 0
  %1487 = vmatprep.subr.bf16.mxu0 0
  %1488 = vmatpush2.bf16.msra.mxu0 0
  %1489 = vmatprep.subr.bf16.mxu0 0
  %1490 = vmatpush2.bf16.msra.mxu0 0
  %1491 = vmatprep.subr.bf16.mxu0 0
  %1492 = vmatpush2.bf16.msra.mxu0 0
  %1493 = vmatprep.subr.bf16.mxu0 0
  %1494 = vmatpush2.bf16.msra.mxu0 0
  %1495 = vmatprep.subr.bf16.mxu0 0
  %1496 = vmatpush2.bf16.msra.mxu0 0
  %1497 = vmatprep.subr.bf16.mxu0 0
  %1498 = vmatpush2.bf16.msra.mxu0 0
  %1499 = vmatprep.mubr.bf16.mxu0 0
  %1500 = vmatmul.mubr.bf16.gmra.mxu0 %v1425
  %v1501 = vpop.f32.mrf.mxu0
  %v1502 = vadd.f32 0.0, %v1501
  %v1503 = vpop.f32.mrf.mxu0
  %v1504 = vadd.f32 0.0, %v1503
  %v1505 = vpop.f32.mrf.mxu0
  %v1506 = vpop.f32.mrf.mxu0
  %1507 = vdwg.mxu0
  %v1512 = vrot.slane %v1461, 6
  %v1513 = vrot.slane %v1463, 6
  %v1514 = vrot.slane %v1502, 6
  %v1515 = vrot.slane %v1504, 6
  %v1520 = vadd.f32 %v297, %v1512
  %v1521 = vadd.f32 %v299, %v1513
  %v1522 = vadd.f32 %v340, %v1514
  %v1523 = vadd.f32 %v342, %v1515
  %v1524 = vmul.f32 %v1520, 0.5
  %v1525 = vmul.f32 %v1521, 0.5
  %v1526 = vmul.f32 %v1522, 0.5
  %v1527 = vtanh.pop %v1524
  %v1528 = vtanh.pop %v1525
  %v1529 = vtanh.pop %v1526
  %v1530 = vmul.f32 %v1527, 0.5
  %v1531 = vmul.f32 %v1528, 0.5
  %v1532 = vmul.f32 %v1529, 0.5
  %v1533 = vadd.f32 %v1530, 0.5
  %v1534 = vadd.f32 %v1531, 0.5
  %v1535 = vadd.f32 %v1532, 0.5
  %v1536 = vtanh.pop %v1523
  %v1538 = vrot.slane %v1422, 6
  %v1540 = vmul.f32 %v1534, %v1538
  %v1541 = vmul.f32 %v1533, %v1536
  %v1542 = vadd.f32 %v1540, %v1541
  %v1543 = vtanh.pop %v1542
  %v1544 = vmul.f32 %v1535, %v1543
  %v1545 = vpack.c.bf16 %v1544, %v1544
  %v1547 = vrot.slane %v1545, 1
  %1549 = vmatprep.subr.bf16.mxu0 %v809
  %1550 = vmatpush1.bf16.msra.mxu0 %v808
  %1551 = vmatprep.subr.bf16.mxu0 %v805
  %1552 = vmatpush1.bf16.msra.mxu0 %v804
  %1553 = vmatprep.subr.bf16.mxu0 %v801
  %1554 = vmatpush1.bf16.msra.mxu0 %v800
  %1555 = vmatprep.subr.bf16.mxu0 %v797
  %1556 = vmatpush1.bf16.msra.mxu0 %v796
  %1557 = vmatprep.subr.bf16.mxu0 %v793
  %1558 = vmatpush1.bf16.msra.mxu0 %v792
  %1559 = vmatprep.subr.bf16.mxu0 %v789
  %1560 = vmatpush1.bf16.msra.mxu0 %v788
  %1561 = vmatprep.subr.bf16.mxu0 %v785
  %1562 = vmatpush1.bf16.msra.mxu0 %v784
  %1563 = vmatprep.subr.bf16.mxu0 %v781
  %1564 = vmatpush1.bf16.msra.mxu0 %v780
  %1565 = vmatprep.subr.bf16.mxu0 0
  %1566 = vmatpush2.bf16.msra.mxu0 0
  %1567 = vmatprep.subr.bf16.mxu0 0
  %1568 = vmatpush2.bf16.msra.mxu0 0
  %1569 = vmatprep.subr.bf16.mxu0 0
  %1570 = vmatpush2.bf16.msra.mxu0 0
  %1571 = vmatprep.subr.bf16.mxu0 0
  %1572 = vmatpush2.bf16.msra.mxu0 0
  %1573 = vmatprep.subr.bf16.mxu0 0
  %1574 = vmatpush2.bf16.msra.mxu0 0
  %1575 = vmatprep.subr.bf16.mxu0 0
  %1576 = vmatpush2.bf16.msra.mxu0 0
  %1577 = vmatprep.subr.bf16.mxu0 0
  %1578 = vmatpush2.bf16.msra.mxu0 0
  %1579 = vmatprep.subr.bf16.mxu0 0
  %1580 = vmatpush2.bf16.msra.mxu0 0
  %1581 = vmatprep.mubr.bf16.mxu0 0
  %1582 = vmatmul.mubr.bf16.gmra.mxu0 %v1547
  %v1583 = vpop.f32.mrf.mxu0
  %v1584 = vadd.f32 0.0, %v1583
  %v1585 = vpop.f32.mrf.mxu0
  %v1586 = vadd.f32 0.0, %v1585
  %v1587 = vpop.f32.mrf.mxu0
  %v1588 = vpop.f32.mrf.mxu0
  %1589 = vdwg.mxu0
  %1590 = vmatprep.subr.bf16.mxu0 %v811
  %1591 = vmatpush1.bf16.msra.mxu0 %v810
  %1592 = vmatprep.subr.bf16.mxu0 %v807
  %1593 = vmatpush1.bf16.msra.mxu0 %v806
  %1594 = vmatprep.subr.bf16.mxu0 %v803
  %1595 = vmatpush1.bf16.msra.mxu0 %v802
  %1596 = vmatprep.subr.bf16.mxu0 %v799
  %1597 = vmatpush1.bf16.msra.mxu0 %v798
  %1598 = vmatprep.subr.bf16.mxu0 %v795
  %1599 = vmatpush1.bf16.msra.mxu0 %v794
  %1600 = vmatprep.subr.bf16.mxu0 %v791
  %1601 = vmatpush1.bf16.msra.mxu0 %v790
  %1602 = vmatprep.subr.bf16.mxu0 %v787
  %1603 = vmatpush1.bf16.msra.mxu0 %v786
  %1604 = vmatprep.subr.bf16.mxu0 %v783
  %1605 = vmatpush1.bf16.msra.mxu0 %v782
  %1606 = vmatprep.subr.bf16.mxu0 0
  %1607 = vmatpush2.bf16.msra.mxu0 0
  %1608 = vmatprep.subr.bf16.mxu0 0
  %1609 = vmatpush2.bf16.msra.mxu0 0
  %1610 = vmatprep.subr.bf16.mxu0 0
  %1611 = vmatpush2.bf16.msra.mxu0 0
  %1612 = vmatprep.subr.bf16.mxu0 0
  %1613 = vmatpush2.bf16.msra.mxu0 0
  %1614 = vmatprep.subr.bf16.mxu0 0
  %1615 = vmatpush2.bf16.msra.mxu0 0
  %1616 = vmatprep.subr.bf16.mxu0 0
  %1617 = vmatpush2.bf16.msra.mxu0 0
  %1618 = vmatprep.subr.bf16.mxu0 0
  %1619 = vmatpush2.bf16.msra.mxu0 0
  %1620 = vmatprep.subr.bf16.mxu0 0
  %1621 = vmatpush2.bf16.msra.mxu0 0
  %1622 = vmatprep.mubr.bf16.mxu0 0
  %1623 = vmatmul.mubr.bf16.gmra.mxu0 %v1547
  %v1624 = vpop.f32.mrf.mxu0
  %v1625 = vadd.f32 0.0, %v1624
  %v1626 = vpop.f32.mrf.mxu0
  %v1627 = vadd.f32 0.0, %v1626
  %v1628 = vpop.f32.mrf.mxu0
  %v1629 = vpop.f32.mrf.mxu0
  %1630 = vdwg.mxu0
  %v1635 = vrot.slane %v1584, 4
  %v1636 = vrot.slane %v1586, 4
  %v1637 = vrot.slane %v1625, 4
  %v1638 = vrot.slane %v1627, 4
  %v1643 = vadd.f32 %v297, %v1635
  %v1644 = vadd.f32 %v299, %v1636
  %v1645 = vadd.f32 %v340, %v1637
  %v1646 = vadd.f32 %v342, %v1638
  %v1647 = vmul.f32 %v1643, 0.5
  %v1648 = vmul.f32 %v1644, 0.5
  %v1649 = vmul.f32 %v1645, 0.5
  %v1650 = vtanh.pop %v1647
  %v1651 = vtanh.pop %v1648
  %v1652 = vtanh.pop %v1649
  %v1653 = vmul.f32 %v1650, 0.5
  %v1654 = vmul.f32 %v1651, 0.5
  %v1655 = vmul.f32 %v1652, 0.5
  %v1656 = vadd.f32 %v1653, 0.5
  %v1657 = vadd.f32 %v1654, 0.5
  %v1658 = vadd.f32 %v1655, 0.5
  %v1659 = vtanh.pop %v1646
  %v1661 = vrot.slane %v1542, 6
  %v1663 = vmul.f32 %v1657, %v1661
  %v1664 = vmul.f32 %v1656, %v1659
  %v1665 = vadd.f32 %v1663, %v1664
  %v1666 = vtanh.pop %v1665
  %v1667 = vmul.f32 %v1658, %v1666
  %v1668 = vpack.c.bf16 %v1667, %v1667
  %v1670 = vrot.slane %v1668, 2
  %1672 = vmatprep.subr.bf16.mxu0 %v809
  %1673 = vmatpush1.bf16.msra.mxu0 %v808
  %1674 = vmatprep.subr.bf16.mxu0 %v805
  %1675 = vmatpush1.bf16.msra.mxu0 %v804
  %1676 = vmatprep.subr.bf16.mxu0 %v801
  %1677 = vmatpush1.bf16.msra.mxu0 %v800
  %1678 = vmatprep.subr.bf16.mxu0 %v797
  %1679 = vmatpush1.bf16.msra.mxu0 %v796
  %1680 = vmatprep.subr.bf16.mxu0 %v793
  %1681 = vmatpush1.bf16.msra.mxu0 %v792
  %1682 = vmatprep.subr.bf16.mxu0 %v789
  %1683 = vmatpush1.bf16.msra.mxu0 %v788
  %1684 = vmatprep.subr.bf16.mxu0 %v785
  %1685 = vmatpush1.bf16.msra.mxu0 %v784
  %1686 = vmatprep.subr.bf16.mxu0 %v781
  %1687 = vmatpush1.bf16.msra.mxu0 %v780
  %1688 = vmatprep.subr.bf16.mxu0 0
  %1689 = vmatpush2.bf16.msra.mxu0 0
  %1690 = vmatprep.subr.bf16.mxu0 0
  %1691 = vmatpush2.bf16.msra.mxu0 0
  %1692 = vmatprep.subr.bf16.mxu0 0
  %1693 = vmatpush2.bf16.msra.mxu0 0
  %1694 = vmatprep.subr.bf16.mxu0 0
  %1695 = vmatpush2.bf16.msra.mxu0 0
  %1696 = vmatprep.subr.bf16.mxu0 0
  %1697 = vmatpush2.bf16.msra.mxu0 0
  %1698 = vmatprep.subr.bf16.mxu0 0
  %1699 = vmatpush2.bf16.msra.mxu0 0
  %1700 = vmatprep.subr.bf16.mxu0 0
  %1701 = vmatpush2.bf16.msra.mxu0 0
  %1702 = vmatprep.subr.bf16.mxu0 0
  %1703 = vmatpush2.bf16.msra.mxu0 0
  %1704 = vmatprep.mubr.bf16.mxu0 0
  %1705 = vmatmul.mubr.bf16.gmra.mxu0 %v1670
  %v1706 = vpop.f32.mrf.mxu0
  %v1707 = vadd.f32 0.0, %v1706
  %v1708 = vpop.f32.mrf.mxu0
  %v1709 = vadd.f32 0.0, %v1708
  %v1710 = vpop.f32.mrf.mxu0
  %v1711 = vpop.f32.mrf.mxu0
  %1712 = vdwg.mxu0
  %1713 = vmatprep.subr.bf16.mxu0 %v811
  %1714 = vmatpush1.bf16.msra.mxu0 %v810
  %1715 = vmatprep.subr.bf16.mxu0 %v807
  %1716 = vmatpush1.bf16.msra.mxu0 %v806
  %1717 = vmatprep.subr.bf16.mxu0 %v803
  %1718 = vmatpush1.bf16.msra.mxu0 %v802
  %1719 = vmatprep.subr.bf16.mxu0 %v799
  %1720 = vmatpush1.bf16.msra.mxu0 %v798
  %1721 = vmatprep.subr.bf16.mxu0 %v795
  %1722 = vmatpush1.bf16.msra.mxu0 %v794
  %1723 = vmatprep.subr.bf16.mxu0 %v791
  %1724 = vmatpush1.bf16.msra.mxu0 %v790
  %1725 = vmatprep.subr.bf16.mxu0 %v787
  %1726 = vmatpush1.bf16.msra.mxu0 %v786
  %1727 = vmatprep.subr.bf16.mxu0 %v783
  %1728 = vmatpush1.bf16.msra.mxu0 %v782
  %1729 = vmatprep.subr.bf16.mxu0 0
  %1730 = vmatpush2.bf16.msra.mxu0 0
  %1731 = vmatprep.subr.bf16.mxu0 0
  %1732 = vmatpush2.bf16.msra.mxu0 0
  %1733 = vmatprep.subr.bf16.mxu0 0
  %1734 = vmatpush2.bf16.msra.mxu0 0
  %1735 = vmatprep.subr.bf16.mxu0 0
  %1736 = vmatpush2.bf16.msra.mxu0 0
  %1737 = vmatprep.subr.bf16.mxu0 0
  %1738 = vmatpush2.bf16.msra.mxu0 0
  %1739 = vmatprep.subr.bf16.mxu0 0
  %1740 = vmatpush2.bf16.msra.mxu0 0
  %1741 = vmatprep.subr.bf16.mxu0 0
  %1742 = vmatpush2.bf16.msra.mxu0 0
  %1743 = vmatprep.subr.bf16.mxu0 0
  %1744 = vmatpush2.bf16.msra.mxu0 0
  %1745 = vmatprep.mubr.bf16.mxu0 0
  %1746 = vmatmul.mubr.bf16.gmra.mxu0 %v1670
  %v1747 = vpop.f32.mrf.mxu0
  %v1748 = vadd.f32 0.0, %v1747
  %v1749 = vpop.f32.mrf.mxu0
  %v1750 = vadd.f32 0.0, %v1749
  %v1751 = vpop.f32.mrf.mxu0
  %v1752 = vpop.f32.mrf.mxu0
  %1753 = vdwg.mxu0
  %v1758 = vrot.slane %v1707, 2
  %v1759 = vrot.slane %v1709, 2
  %v1760 = vrot.slane %v1748, 2
  %v1761 = vrot.slane %v1750, 2
  %v1766 = vadd.f32 %v297, %v1758
  %v1767 = vadd.f32 %v299, %v1759
  %v1768 = vadd.f32 %v340, %v1760
  %v1769 = vadd.f32 %v342, %v1761
  %v1770 = vmul.f32 %v1766, 0.5
  %v1771 = vmul.f32 %v1767, 0.5
  %v1772 = vmul.f32 %v1768, 0.5
  %v1773 = vtanh.pop %v1770
  %v1774 = vtanh.pop %v1771
  %v1775 = vtanh.pop %v1772
  %v1776 = vmul.f32 %v1773, 0.5
  %v1777 = vmul.f32 %v1774, 0.5
  %v1778 = vmul.f32 %v1775, 0.5
  %v1779 = vadd.f32 %v1776, 0.5
  %v1780 = vadd.f32 %v1777, 0.5
  %v1781 = vadd.f32 %v1778, 0.5
  %v1782 = vtanh.pop %v1769
  %v1784 = vrot.slane %v1665, 6
  %v1786 = vmul.f32 %v1780, %v1784
  %v1787 = vmul.f32 %v1779, %v1782
  %v1788 = vadd.f32 %v1786, %v1787
  %v1789 = vtanh.pop %v1788
  %v1790 = vmul.f32 %v1781, %v1789
  %v1791 = vpack.c.bf16 %v1790, %v1790
  %v1792 = vld [vmem:[%s6] sm:$0xff]
  %v1793 = vld [vmem:[%s6 + $0x8] sm:$0xff]
  %v1794 = vld [vmem:[%s6 + $0x10] sm:$0xff]
  %v1795 = vld [vmem:[%s6 + $0x18] sm:$0xff]
  %v1796 = vld [vmem:[%s6 + $0x20] sm:$0xff]
  %v1797 = vld [vmem:[%s6 + $0x28] sm:$0xff]
  %v1798 = vld [vmem:[%s6 + $0x30] sm:$0xff]
  %v1799 = vld [vmem:[%s6 + $0x38] sm:$0xff]
  %v1800 = vld [vmem:[%s6 + $0x40] sm:$0xff]
  %v1801 = vld [vmem:[%s6 + $0x48] sm:$0xff]
  %v1802 = vld [vmem:[%s6 + $0x50] sm:$0xff]
  %v1803 = vld [vmem:[%s6 + $0x58] sm:$0xff]
  %v1804 = vld [vmem:[%s6 + $0x60] sm:$0xff]
  %v1805 = vld [vmem:[%s6 + $0x68] sm:$0xff]
  %v1806 = vld [vmem:[%s6 + $0x70] sm:$0xff]
  %v1807 = vld [vmem:[%s6 + $0x78] sm:$0xff]
  %v1808 = vld [vmem:[%s6 + $0x80] sm:$0xff]
  %v1809 = vld [vmem:[%s6 + $0x88] sm:$0xff]
  %v1810 = vld [vmem:[%s6 + $0x90] sm:$0xff]
  %v1811 = vld [vmem:[%s6 + $0x98] sm:$0xff]
  %v1812 = vld [vmem:[%s6 + $0xa0] sm:$0xff]
  %v1813 = vld [vmem:[%s6 + $0xa8] sm:$0xff]
  %v1814 = vld [vmem:[%s6 + $0xb0] sm:$0xff]
  %v1815 = vld [vmem:[%s6 + $0xb8] sm:$0xff]
  %v1816 = vld [vmem:[%s6 + $0xc0] sm:$0xff]
  %v1817 = vld [vmem:[%s6 + $0xc8] sm:$0xff]
  %v1818 = vld [vmem:[%s6 + $0xd0] sm:$0xff]
  %v1819 = vld [vmem:[%s6 + $0xd8] sm:$0xff]
  %v1820 = vld [vmem:[%s6 + $0xe0] sm:$0xff]
  %v1821 = vld [vmem:[%s6 + $0xe8] sm:$0xff]
  %v1822 = vld [vmem:[%s6 + $0xf0] sm:$0xff]
  %v1823 = vld [vmem:[%s6 + $0xf8] sm:$0xff]
  %v1825 = vrot.slane %v1791, 3
  %v1859 = vunpack.c.l.b16 %v1792
  %v1860 = vunpack.c.h.b16 %v1792
  %v1861 = vunpack.c.l.b16 %v1793
  %v1862 = vunpack.c.h.b16 %v1793
  %v1863 = vunpack.c.l.b16 %v1794
  %v1864 = vunpack.c.h.b16 %v1794
  %v1865 = vunpack.c.l.b16 %v1795
  %v1866 = vunpack.c.h.b16 %v1795
  %v1867 = vunpack.c.l.b16 %v1796
  %v1868 = vunpack.c.h.b16 %v1796
  %v1869 = vunpack.c.l.b16 %v1797
  %v1870 = vunpack.c.h.b16 %v1797
  %v1871 = vunpack.c.l.b16 %v1798
  %v1872 = vunpack.c.h.b16 %v1798
  %v1873 = vunpack.c.l.b16 %v1799
  %v1874 = vunpack.c.h.b16 %v1799
  %v1875 = vunpack.c.l.b16 %v1800
  %v1876 = vunpack.c.h.b16 %v1800
  %v1877 = vunpack.c.l.b16 %v1801
  %v1878 = vunpack.c.h.b16 %v1801
  %v1879 = vunpack.c.l.b16 %v1802
  %v1880 = vunpack.c.h.b16 %v1802
  %v1881 = vunpack.c.l.b16 %v1803
  %v1882 = vunpack.c.h.b16 %v1803
  %v1883 = vunpack.c.l.b16 %v1804
  %v1884 = vunpack.c.h.b16 %v1804
  %v1885 = vunpack.c.l.b16 %v1805
  %v1886 = vunpack.c.h.b16 %v1805
  %v1887 = vunpack.c.l.b16 %v1806
  %v1888 = vunpack.c.h.b16 %v1806
  %v1889 = vunpack.c.l.b16 %v1807
  %v1890 = vunpack.c.h.b16 %v1807
  %v1891 = vunpack.c.l.b16 %v1808
  %v1892 = vunpack.c.h.b16 %v1808
  %v1893 = vunpack.c.l.b16 %v1809
  %v1894 = vunpack.c.h.b16 %v1809
  %v1895 = vunpack.c.l.b16 %v1810
  %v1896 = vunpack.c.h.b16 %v1810
  %v1897 = vunpack.c.l.b16 %v1811
  %v1898 = vunpack.c.h.b16 %v1811
  %v1899 = vunpack.c.l.b16 %v1812
  %v1900 = vunpack.c.h.b16 %v1812
  %v1901 = vunpack.c.l.b16 %v1813
  %v1902 = vunpack.c.h.b16 %v1813
  %v1903 = vunpack.c.l.b16 %v1814
  %v1904 = vunpack.c.h.b16 %v1814
  %v1905 = vunpack.c.l.b16 %v1815
  %v1906 = vunpack.c.h.b16 %v1815
  %v1907 = vunpack.c.l.b16 %v1816
  %v1908 = vunpack.c.h.b16 %v1816
  %v1909 = vunpack.c.l.b16 %v1817
  %v1910 = vunpack.c.h.b16 %v1817
  %v1911 = vunpack.c.l.b16 %v1818
  %v1912 = vunpack.c.h.b16 %v1818
  %v1913 = vunpack.c.l.b16 %v1819
  %v1914 = vunpack.c.h.b16 %v1819
  %v1915 = vunpack.c.l.b16 %v1820
  %v1916 = vunpack.c.h.b16 %v1820
  %v1917 = vunpack.c.l.b16 %v1821
  %v1918 = vunpack.c.h.b16 %v1821
  %v1919 = vunpack.c.l.b16 %v1822
  %v1920 = vunpack.c.h.b16 %v1822
  %v1921 = vunpack.c.l.b16 %v1823
  %v1922 = vunpack.c.h.b16 %v1823
  %v1923 = vpack.c.b16 %v1863, %v1859
  %v1924 = vpack.c.b16 %v1864, %v1860
  %v1925 = vpack.c.b16 %v1865, %v1861
  %v1926 = vpack.c.b16 %v1866, %v1862
  %v1927 = vpack.c.b16 %v1871, %v1867
  %v1928 = vpack.c.b16 %v1872, %v1868
  %v1929 = vpack.c.b16 %v1873, %v1869
  %v1930 = vpack.c.b16 %v1874, %v1870
  %v1931 = vpack.c.b16 %v1879, %v1875
  %v1932 = vpack.c.b16 %v1880, %v1876
  %v1933 = vpack.c.b16 %v1881, %v1877
  %v1934 = vpack.c.b16 %v1882, %v1878
  %v1935 = vpack.c.b16 %v1887, %v1883
  %v1936 = vpack.c.b16 %v1888, %v1884
  %v1937 = vpack.c.b16 %v1889, %v1885
  %v1938 = vpack.c.b16 %v1890, %v1886
  %v1939 = vpack.c.b16 %v1895, %v1891
  %v1940 = vpack.c.b16 %v1896, %v1892
  %v1941 = vpack.c.b16 %v1897, %v1893
  %v1942 = vpack.c.b16 %v1898, %v1894
  %v1943 = vpack.c.b16 %v1903, %v1899
  %v1944 = vpack.c.b16 %v1904, %v1900
  %v1945 = vpack.c.b16 %v1905, %v1901
  %v1946 = vpack.c.b16 %v1906, %v1902
  %v1947 = vpack.c.b16 %v1911, %v1907
  %v1948 = vpack.c.b16 %v1912, %v1908
  %v1949 = vpack.c.b16 %v1913, %v1909
  %v1950 = vpack.c.b16 %v1914, %v1910
  %v1951 = vpack.c.b16 %v1919, %v1915
  %v1952 = vpack.c.b16 %v1920, %v1916
  %v1953 = vpack.c.b16 %v1921, %v1917
  %v1954 = vpack.c.b16 %v1922, %v1918
  %1987 = vmatprep.subr.bf16.mxu0 %v1952
  %1988 = vmatpush1.bf16.msra.mxu0 %v1951
  %1989 = vmatprep.subr.bf16.mxu0 %v1948
  %1990 = vmatpush1.bf16.msra.mxu0 %v1947
  %1991 = vmatprep.subr.bf16.mxu0 %v1944
  %1992 = vmatpush1.bf16.msra.mxu0 %v1943
  %1993 = vmatprep.subr.bf16.mxu0 %v1940
  %1994 = vmatpush1.bf16.msra.mxu0 %v1939
  %1995 = vmatprep.subr.bf16.mxu0 %v1936
  %1996 = vmatpush1.bf16.msra.mxu0 %v1935
  %1997 = vmatprep.subr.bf16.mxu0 %v1932
  %1998 = vmatpush1.bf16.msra.mxu0 %v1931
  %1999 = vmatprep.subr.bf16.mxu0 %v1928
  %2000 = vmatpush1.bf16.msra.mxu0 %v1927
  %2001 = vmatprep.subr.bf16.mxu0 %v1924
  %2002 = vmatpush1.bf16.msra.mxu0 %v1923
  %2003 = vmatprep.subr.bf16.mxu0 0
  %2004 = vmatpush2.bf16.msra.mxu0 0
  %2005 = vmatprep.subr.bf16.mxu0 0
  %2006 = vmatpush2.bf16.msra.mxu0 0
  %2007 = vmatprep.subr.bf16.mxu0 0
  %2008 = vmatpush2.bf16.msra.mxu0 0
  %2009 = vmatprep.subr.bf16.mxu0 0
  %2010 = vmatpush2.bf16.msra.mxu0 0
  %2011 = vmatprep.subr.bf16.mxu0 0
  %2012 = vmatpush2.bf16.msra.mxu0 0
  %2013 = vmatprep.subr.bf16.mxu0 0
  %2014 = vmatpush2.bf16.msra.mxu0 0
  %2015 = vmatprep.subr.bf16.mxu0 0
  %2016 = vmatpush2.bf16.msra.mxu0 0
  %2017 = vmatprep.subr.bf16.mxu0 0
  %2018 = vmatpush2.bf16.msra.mxu0 0
  %2019 = vmatprep.mubr.bf16.mxu0 0
  %2020 = vmatmul.mubr.bf16.gmra.mxu0 %v1825
  %v2021 = vpop.f32.mrf.mxu0
  %v2022 = vadd.f32 0.0, %v2021
  %v2023 = vpop.f32.mrf.mxu0
  %v2024 = vadd.f32 0.0, %v2023
  %v2025 = vpop.f32.mrf.mxu0
  %v2026 = vpop.f32.mrf.mxu0
  %2027 = vdwg.mxu0
  %2028 = vmatprep.subr.bf16.mxu0 %v1954
  %2029 = vmatpush1.bf16.msra.mxu0 %v1953
  %2030 = vmatprep.subr.bf16.mxu0 %v1950
  %2031 = vmatpush1.bf16.msra.mxu0 %v1949
  %2032 = vmatprep.subr.bf16.mxu0 %v1946
  %2033 = vmatpush1.bf16.msra.mxu0 %v1945
  %2034 = vmatprep.subr.bf16.mxu0 %v1942
  %2035 = vmatpush1.bf16.msra.mxu0 %v1941
  %2036 = vmatprep.subr.bf16.mxu0 %v1938
  %2037 = vmatpush1.bf16.msra.mxu0 %v1937
  %2038 = vmatprep.subr.bf16.mxu0 %v1934
  %2039 = vmatpush1.bf16.msra.mxu0 %v1933
  %2040 = vmatprep.subr.bf16.mxu0 %v1930
  %2041 = vmatpush1.bf16.msra.mxu0 %v1929
  %2042 = vmatprep.subr.bf16.mxu0 %v1926
  %2043 = vmatpush1.bf16.msra.mxu0 %v1925
  %2044 = vmatprep.subr.bf16.mxu0 0
  %2045 = vmatpush2.bf16.msra.mxu0 0
  %2046 = vmatprep.subr.bf16.mxu0 0
  %2047 = vmatpush2.bf16.msra.mxu0 0
  %2048 = vmatprep.subr.bf16.mxu0 0
  %2049 = vmatpush2.bf16.msra.mxu0 0
  %2050 = vmatprep.subr.bf16.mxu0 0
  %2051 = vmatpush2.bf16.msra.mxu0 0
  %2052 = vmatprep.subr.bf16.mxu0 0
  %2053 = vmatpush2.bf16.msra.mxu0 0
  %2054 = vmatprep.subr.bf16.mxu0 0
  %2055 = vmatpush2.bf16.msra.mxu0 0
  %2056 = vmatprep.subr.bf16.mxu0 0
  %2057 = vmatpush2.bf16.msra.mxu0 0
  %2058 = vmatprep.subr.bf16.mxu0 0
  %2059 = vmatpush2.bf16.msra.mxu0 0
  %2060 = vmatprep.mubr.bf16.mxu0 0
  %2061 = vmatmul.mubr.bf16.gmra.mxu0 %v1825
  %v2062 = vpop.f32.mrf.mxu0
  %v2063 = vadd.f32 0.0, %v2062
  %v2064 = vpop.f32.mrf.mxu0
  %v2065 = vadd.f32 0.0, %v2064
  %v2066 = vpop.f32.mrf.mxu0
  %v2067 = vpop.f32.mrf.mxu0
  %2068 = vdwg.mxu0
  %v2069 = vadd.f32 %v601, %v2022
  %v2070 = vadd.f32 %v603, %v2024
  %v2071 = vadd.f32 %v644, %v2063
  %v2072 = vadd.f32 %v646, %v2065
  %v2073 = vmul.f32 %v2069, 0.5
  %v2074 = vmul.f32 %v2070, 0.5
  %v2075 = vmul.f32 %v2071, 0.5
  %v2076 = vtanh.pop %v2073
  %v2077 = vtanh.pop %v2074
  %v2078 = vtanh.pop %v2075
  %v2079 = vmul.f32 %v2076, 0.5
  %v2080 = vmul.f32 %v2077, 0.5
  %v2081 = vmul.f32 %v2078, 0.5
  %v2082 = vadd.f32 %v2079, 0.5
  %v2083 = vadd.f32 %v2080, 0.5
  %v2084 = vadd.f32 %v2081, 0.5
  %v2085 = vtanh.pop %v2072
  %v2087 = vrot.slane %v1788, 6
  %v2089 = vmul.f32 %v2083, %v2087
  %v2090 = vmul.f32 %v2082, %v2085
  %v2091 = vadd.f32 %v2089, %v2090
  %v2092 = vtanh.pop %v2091
  %v2093 = vmul.f32 %v2084, %v2092
  %v2094 = vpack.c.bf16 %v2093, %v2093
  %2095 = vmatprep.subr.bf16.mxu0 %v1952
  %2096 = vmatpush1.bf16.msra.mxu0 %v1951
  %2097 = vmatprep.subr.bf16.mxu0 %v1948
  %2098 = vmatpush1.bf16.msra.mxu0 %v1947
  %2099 = vmatprep.subr.bf16.mxu0 %v1944
  %2100 = vmatpush1.bf16.msra.mxu0 %v1943
  %2101 = vmatprep.subr.bf16.mxu0 %v1940
  %2102 = vmatpush1.bf16.msra.mxu0 %v1939
  %2103 = vmatprep.subr.bf16.mxu0 %v1936
  %2104 = vmatpush1.bf16.msra.mxu0 %v1935
  %2105 = vmatprep.subr.bf16.mxu0 %v1932
  %2106 = vmatpush1.bf16.msra.mxu0 %v1931
  %2107 = vmatprep.subr.bf16.mxu0 %v1928
  %2108 = vmatpush1.bf16.msra.mxu0 %v1927
  %2109 = vmatprep.subr.bf16.mxu0 %v1924
  %2110 = vmatpush1.bf16.msra.mxu0 %v1923
  %2111 = vmatprep.subr.bf16.mxu0 0
  %2112 = vmatpush2.bf16.msra.mxu0 0
  %2113 = vmatprep.subr.bf16.mxu0 0
  %2114 = vmatpush2.bf16.msra.mxu0 0
  %2115 = vmatprep.subr.bf16.mxu0 0
  %2116 = vmatpush2.bf16.msra.mxu0 0
  %2117 = vmatprep.subr.bf16.mxu0 0
  %2118 = vmatpush2.bf16.msra.mxu0 0
  %2119 = vmatprep.subr.bf16.mxu0 0
  %2120 = vmatpush2.bf16.msra.mxu0 0
  %2121 = vmatprep.subr.bf16.mxu0 0
  %2122 = vmatpush2.bf16.msra.mxu0 0
  %2123 = vmatprep.subr.bf16.mxu0 0
  %2124 = vmatpush2.bf16.msra.mxu0 0
  %2125 = vmatprep.subr.bf16.mxu0 0
  %2126 = vmatpush2.bf16.msra.mxu0 0
  %2127 = vmatprep.mubr.bf16.mxu0 0
  %2128 = vmatmul.mubr.bf16.gmra.mxu0 %v2094
  %v2129 = vpop.f32.mrf.mxu0
  %v2130 = vadd.f32 0.0, %v2129
  %v2131 = vpop.f32.mrf.mxu0
  %v2132 = vadd.f32 0.0, %v2131
  %v2133 = vpop.f32.mrf.mxu0
  %v2134 = vpop.f32.mrf.mxu0
  %2135 = vdwg.mxu0
  %2136 = vmatprep.subr.bf16.mxu0 %v1954
  %2137 = vmatpush1.bf16.msra.mxu0 %v1953
  %2138 = vmatprep.subr.bf16.mxu0 %v1950
  %2139 = vmatpush1.bf16.msra.mxu0 %v1949
  %2140 = vmatprep.subr.bf16.mxu0 %v1946
  %2141 = vmatpush1.bf16.msra.mxu0 %v1945
  %2142 = vmatprep.subr.bf16.mxu0 %v1942
  %2143 = vmatpush1.bf16.msra.mxu0 %v1941
  %2144 = vmatprep.subr.bf16.mxu0 %v1938
  %2145 = vmatpush1.bf16.msra.mxu0 %v1937
  %2146 = vmatprep.subr.bf16.mxu0 %v1934
  %2147 = vmatpush1.bf16.msra.mxu0 %v1933
  %2148 = vmatprep.subr.bf16.mxu0 %v1930
  %2149 = vmatpush1.bf16.msra.mxu0 %v1929
  %2150 = vmatprep.subr.bf16.mxu0 %v1926
  %2151 = vmatpush1.bf16.msra.mxu0 %v1925
  %2152 = vmatprep.subr.bf16.mxu0 0
  %2153 = vmatpush2.bf16.msra.mxu0 0
  %2154 = vmatprep.subr.bf16.mxu0 0
  %2155 = vmatpush2.bf16.msra.mxu0 0
  %2156 = vmatprep.subr.bf16.mxu0 0
  %2157 = vmatpush2.bf16.msra.mxu0 0
  %2158 = vmatprep.subr.bf16.mxu0 0
  %2159 = vmatpush2.bf16.msra.mxu0 0
  %2160 = vmatprep.subr.bf16.mxu0 0
  %2161 = vmatpush2.bf16.msra.mxu0 0
  %2162 = vmatprep.subr.bf16.mxu0 0
  %2163 = vmatpush2.bf16.msra.mxu0 0
  %2164 = vmatprep.subr.bf16.mxu0 0
  %2165 = vmatpush2.bf16.msra.mxu0 0
  %2166 = vmatprep.subr.bf16.mxu0 0
  %2167 = vmatpush2.bf16.msra.mxu0 0
  %2168 = vmatprep.mubr.bf16.mxu0 0
  %2169 = vmatmul.mubr.bf16.gmra.mxu0 %v2094
  %v2170 = vpop.f32.mrf.mxu0
  %v2171 = vadd.f32 0.0, %v2170
  %v2172 = vpop.f32.mrf.mxu0
  %v2173 = vadd.f32 0.0, %v2172
  %v2174 = vpop.f32.mrf.mxu0
  %v2175 = vpop.f32.mrf.mxu0
  %2176 = vdwg.mxu0
  %v2181 = vrot.slane %v2130, 6
  %v2182 = vrot.slane %v2132, 6
  %v2183 = vrot.slane %v2171, 6
  %v2184 = vrot.slane %v2173, 6
  %v2189 = vadd.f32 %v601, %v2181
  %v2190 = vadd.f32 %v603, %v2182
  %v2191 = vadd.f32 %v644, %v2183
  %v2192 = vadd.f32 %v646, %v2184
  %v2193 = vmul.f32 %v2189, 0.5
  %v2194 = vmul.f32 %v2190, 0.5
  %v2195 = vmul.f32 %v2191, 0.5
  %v2196 = vtanh.pop %v2193
  %v2197 = vtanh.pop %v2194
  %v2198 = vtanh.pop %v2195
  %v2199 = vmul.f32 %v2196, 0.5
  %v2200 = vmul.f32 %v2197, 0.5
  %v2201 = vmul.f32 %v2198, 0.5
  %v2202 = vadd.f32 %v2199, 0.5
  %v2203 = vadd.f32 %v2200, 0.5
  %v2204 = vadd.f32 %v2201, 0.5
  %v2205 = vtanh.pop %v2192
  %v2207 = vrot.slane %v2091, 6
  %v2209 = vmul.f32 %v2203, %v2207
  %v2210 = vmul.f32 %v2202, %v2205
  %v2211 = vadd.f32 %v2209, %v2210
  %v2212 = vtanh.pop %v2211
  %v2213 = vmul.f32 %v2204, %v2212
  %v2214 = vpack.c.bf16 %v2213, %v2213
  %v2216 = vrot.slane %v2214, 1
  %2218 = vmatprep.subr.bf16.mxu0 %v1952
  %2219 = vmatpush1.bf16.msra.mxu0 %v1951
  %2220 = vmatprep.subr.bf16.mxu0 %v1948
  %2221 = vmatpush1.bf16.msra.mxu0 %v1947
  %2222 = vmatprep.subr.bf16.mxu0 %v1944
  %2223 = vmatpush1.bf16.msra.mxu0 %v1943
  %2224 = vmatprep.subr.bf16.mxu0 %v1940
  %2225 = vmatpush1.bf16.msra.mxu0 %v1939
  %2226 = vmatprep.subr.bf16.mxu0 %v1936
  %2227 = vmatpush1.bf16.msra.mxu0 %v1935
  %2228 = vmatprep.subr.bf16.mxu0 %v1932
  %2229 = vmatpush1.bf16.msra.mxu0 %v1931
  %2230 = vmatprep.subr.bf16.mxu0 %v1928
  %2231 = vmatpush1.bf16.msra.mxu0 %v1927
  %2232 = vmatprep.subr.bf16.mxu0 %v1924
  %2233 = vmatpush1.bf16.msra.mxu0 %v1923
  %2234 = vmatprep.subr.bf16.mxu0 0
  %2235 = vmatpush2.bf16.msra.mxu0 0
  %2236 = vmatprep.subr.bf16.mxu0 0
  %2237 = vmatpush2.bf16.msra.mxu0 0
  %2238 = vmatprep.subr.bf16.mxu0 0
  %2239 = vmatpush2.bf16.msra.mxu0 0
  %2240 = vmatprep.subr.bf16.mxu0 0
  %2241 = vmatpush2.bf16.msra.mxu0 0
  %2242 = vmatprep.subr.bf16.mxu0 0
  %2243 = vmatpush2.bf16.msra.mxu0 0
  %2244 = vmatprep.subr.bf16.mxu0 0
  %2245 = vmatpush2.bf16.msra.mxu0 0
  %2246 = vmatprep.subr.bf16.mxu0 0
  %2247 = vmatpush2.bf16.msra.mxu0 0
  %2248 = vmatprep.subr.bf16.mxu0 0
  %2249 = vmatpush2.bf16.msra.mxu0 0
  %2250 = vmatprep.mubr.bf16.mxu0 0
  %2251 = vmatmul.mubr.bf16.gmra.mxu0 %v2216
  %v2252 = vpop.f32.mrf.mxu0
  %v2253 = vadd.f32 0.0, %v2252
  %v2254 = vpop.f32.mrf.mxu0
  %v2255 = vadd.f32 0.0, %v2254
  %v2256 = vpop.f32.mrf.mxu0
  %v2257 = vpop.f32.mrf.mxu0
  %2258 = vdwg.mxu0
  %2259 = vmatprep.subr.bf16.mxu0 %v1954
  %2260 = vmatpush1.bf16.msra.mxu0 %v1953
  %2261 = vmatprep.subr.bf16.mxu0 %v1950
  %2262 = vmatpush1.bf16.msra.mxu0 %v1949
  %2263 = vmatprep.subr.bf16.mxu0 %v1946
  %2264 = vmatpush1.bf16.msra.mxu0 %v1945
  %2265 = vmatprep.subr.bf16.mxu0 %v1942
  %2266 = vmatpush1.bf16.msra.mxu0 %v1941
  %2267 = vmatprep.subr.bf16.mxu0 %v1938
  %2268 = vmatpush1.bf16.msra.mxu0 %v1937
  %2269 = vmatprep.subr.bf16.mxu0 %v1934
  %2270 = vmatpush1.bf16.msra.mxu0 %v1933
  %2271 = vmatprep.subr.bf16.mxu0 %v1930
  %2272 = vmatpush1.bf16.msra.mxu0 %v1929
  %2273 = vmatprep.subr.bf16.mxu0 %v1926
  %2274 = vmatpush1.bf16.msra.mxu0 %v1925
  %2275 = vmatprep.subr.bf16.mxu0 0
  %2276 = vmatpush2.bf16.msra.mxu0 0
  %2277 = vmatprep.subr.bf16.mxu0 0
  %2278 = vmatpush2.bf16.msra.mxu0 0
  %2279 = vmatprep.subr.bf16.mxu0 0
  %2280 = vmatpush2.bf16.msra.mxu0 0
  %2281 = vmatprep.subr.bf16.mxu0 0
  %2282 = vmatpush2.bf16.msra.mxu0 0
  %2283 = vmatprep.subr.bf16.mxu0 0
  %2284 = vmatpush2.bf16.msra.mxu0 0
  %2285 = vmatprep.subr.bf16.mxu0 0
  %2286 = vmatpush2.bf16.msra.mxu0 0
  %2287 = vmatprep.subr.bf16.mxu0 0
  %2288 = vmatpush2.bf16.msra.mxu0 0
  %2289 = vmatprep.subr.bf16.mxu0 0
  %2290 = vmatpush2.bf16.msra.mxu0 0
  %2291 = vmatprep.mubr.bf16.mxu0 0
  %2292 = vmatmul.mubr.bf16.gmra.mxu0 %v2216
  %v2293 = vpop.f32.mrf.mxu0
  %v2294 = vadd.f32 0.0, %v2293
  %v2295 = vpop.f32.mrf.mxu0
  %v2296 = vadd.f32 0.0, %v2295
  %v2297 = vpop.f32.mrf.mxu0
  %v2298 = vpop.f32.mrf.mxu0
  %2299 = vdwg.mxu0
  %v2304 = vrot.slane %v2253, 4
  %v2305 = vrot.slane %v2255, 4
  %v2306 = vrot.slane %v2294, 4
  %v2307 = vrot.slane %v2296, 4
  %v2312 = vadd.f32 %v601, %v2304
  %v2313 = vadd.f32 %v603, %v2305
  %v2314 = vadd.f32 %v644, %v2306
  %v2315 = vadd.f32 %v646, %v2307
  %v2316 = vmul.f32 %v2312, 0.5
  %v2317 = vmul.f32 %v2313, 0.5
  %v2318 = vmul.f32 %v2314, 0.5
  %v2319 = vtanh.pop %v2316
  %v2320 = vtanh.pop %v2317
  %v2321 = vtanh.pop %v2318
  %v2322 = vmul.f32 %v2319, 0.5
  %v2323 = vmul.f32 %v2320, 0.5
  %v2324 = vmul.f32 %v2321, 0.5
  %v2325 = vadd.f32 %v2322, 0.5
  %v2326 = vadd.f32 %v2323, 0.5
  %v2327 = vadd.f32 %v2324, 0.5
  %v2328 = vtanh.pop %v2315
  %v2330 = vrot.slane %v2211, 6
  %v2332 = vmul.f32 %v2326, %v2330
  %v2333 = vmul.f32 %v2325, %v2328
  %v2334 = vadd.f32 %v2332, %v2333
  %v2335 = vtanh.pop %v2334
  %v2336 = vmul.f32 %v2327, %v2335
  %v2337 = vpack.c.bf16 %v2336, %v2336
  %v2339 = vrot.slane %v2337, 2
  %2341 = vmatprep.subr.bf16.mxu0 %v1952
  %2342 = vmatpush1.bf16.msra.mxu0 %v1951
  %2343 = vmatprep.subr.bf16.mxu0 %v1948
  %2344 = vmatpush1.bf16.msra.mxu0 %v1947
  %2345 = vmatprep.subr.bf16.mxu0 %v1944
  %2346 = vmatpush1.bf16.msra.mxu0 %v1943
  %2347 = vmatprep.subr.bf16.mxu0 %v1940
  %2348 = vmatpush1.bf16.msra.mxu0 %v1939
  %2349 = vmatprep.subr.bf16.mxu0 %v1936
  %2350 = vmatpush1.bf16.msra.mxu0 %v1935
  %2351 = vmatprep.subr.bf16.mxu0 %v1932
  %2352 = vmatpush1.bf16.msra.mxu0 %v1931
  %2353 = vmatprep.subr.bf16.mxu0 %v1928
  %2354 = vmatpush1.bf16.msra.mxu0 %v1927
  %2355 = vmatprep.subr.bf16.mxu0 %v1924
  %2356 = vmatpush1.bf16.msra.mxu0 %v1923
  %2357 = vmatprep.subr.bf16.mxu0 0
  %2358 = vmatpush2.bf16.msra.mxu0 0
  %2359 = vmatprep.subr.bf16.mxu0 0
  %2360 = vmatpush2.bf16.msra.mxu0 0
  %2361 = vmatprep.subr.bf16.mxu0 0
  %2362 = vmatpush2.bf16.msra.mxu0 0
  %2363 = vmatprep.subr.bf16.mxu0 0
  %2364 = vmatpush2.bf16.msra.mxu0 0
  %2365 = vmatprep.subr.bf16.mxu0 0
  %2366 = vmatpush2.bf16.msra.mxu0 0
  %2367 = vmatprep.subr.bf16.mxu0 0
  %2368 = vmatpush2.bf16.msra.mxu0 0
  %2369 = vmatprep.subr.bf16.mxu0 0
  %2370 = vmatpush2.bf16.msra.mxu0 0
  %2371 = vmatprep.subr.bf16.mxu0 0
  %2372 = vmatpush2.bf16.msra.mxu0 0
  %2373 = vmatprep.mubr.bf16.mxu0 0
  %2374 = vmatmul.mubr.bf16.gmra.mxu0 %v2339
  %v2375 = vpop.f32.mrf.mxu0
  %v2376 = vadd.f32 0.0, %v2375
  %v2377 = vpop.f32.mrf.mxu0
  %v2378 = vadd.f32 0.0, %v2377
  %v2379 = vpop.f32.mrf.mxu0
  %v2380 = vpop.f32.mrf.mxu0
  %2381 = vdwg.mxu0
  %2382 = vmatprep.subr.bf16.mxu0 %v1954
  %2383 = vmatpush1.bf16.msra.mxu0 %v1953
  %2384 = vmatprep.subr.bf16.mxu0 %v1950
  %2385 = vmatpush1.bf16.msra.mxu0 %v1949
  %2386 = vmatprep.subr.bf16.mxu0 %v1946
  %2387 = vmatpush1.bf16.msra.mxu0 %v1945
  %2388 = vmatprep.subr.bf16.mxu0 %v1942
  %2389 = vmatpush1.bf16.msra.mxu0 %v1941
  %2390 = vmatprep.subr.bf16.mxu0 %v1938
  %2391 = vmatpush1.bf16.msra.mxu0 %v1937
  %2392 = vmatprep.subr.bf16.mxu0 %v1934
  %2393 = vmatpush1.bf16.msra.mxu0 %v1933
  %2394 = vmatprep.subr.bf16.mxu0 %v1930
  %2395 = vmatpush1.bf16.msra.mxu0 %v1929
  %2396 = vmatprep.subr.bf16.mxu0 %v1926
  %2397 = vmatpush1.bf16.msra.mxu0 %v1925
  %2398 = vmatprep.subr.bf16.mxu0 0
  %2399 = vmatpush2.bf16.msra.mxu0 0
  %2400 = vmatprep.subr.bf16.mxu0 0
  %2401 = vmatpush2.bf16.msra.mxu0 0
  %2402 = vmatprep.subr.bf16.mxu0 0
  %2403 = vmatpush2.bf16.msra.mxu0 0
  %2404 = vmatprep.subr.bf16.mxu0 0
  %2405 = vmatpush2.bf16.msra.mxu0 0
  %2406 = vmatprep.subr.bf16.mxu0 0
  %2407 = vmatpush2.bf16.msra.mxu0 0
  %2408 = vmatprep.subr.bf16.mxu0 0
  %2409 = vmatpush2.bf16.msra.mxu0 0
  %2410 = vmatprep.subr.bf16.mxu0 0
  %2411 = vmatpush2.bf16.msra.mxu0 0
  %2412 = vmatprep.subr.bf16.mxu0 0
  %2413 = vmatpush2.bf16.msra.mxu0 0
  %2414 = vmatprep.mubr.bf16.mxu0 0
  %2415 = vmatmul.mubr.bf16.gmra.mxu0 %v2339
  %v2416 = vpop.f32.mrf.mxu0
  %v2417 = vadd.f32 0.0, %v2416
  %v2418 = vpop.f32.mrf.mxu0
  %v2419 = vadd.f32 0.0, %v2418
  %v2420 = vpop.f32.mrf.mxu0
  %v2421 = vpop.f32.mrf.mxu0
  %2422 = vdwg.mxu0
  %v2427 = vrot.slane %v2376, 2
  %v2428 = vrot.slane %v2378, 2
  %v2429 = vrot.slane %v2417, 2
  %v2430 = vrot.slane %v2419, 2
  %v2435 = vadd.f32 %v601, %v2427
  %v2436 = vadd.f32 %v603, %v2428
  %v2437 = vadd.f32 %v644, %v2429
  %v2438 = vadd.f32 %v646, %v2430
  %v2439 = vmul.f32 %v2435, 0.5
  %v2440 = vmul.f32 %v2436, 0.5
  %v2441 = vmul.f32 %v2437, 0.5
  %v2442 = vtanh.pop %v2439
  %v2443 = vtanh.pop %v2440
  %v2444 = vtanh.pop %v2441
  %v2445 = vmul.f32 %v2442, 0.5
  %v2446 = vmul.f32 %v2443, 0.5
  %v2447 = vmul.f32 %v2444, 0.5
  %v2448 = vadd.f32 %v2445, 0.5
  %v2449 = vadd.f32 %v2446, 0.5
  %v2450 = vadd.f32 %v2447, 0.5
  %v2451 = vtanh.pop %v2438
  %v2453 = vrot.slane %v2334, 6
  %v2455 = vmul.f32 %v2449, %v2453
  %v2456 = vmul.f32 %v2448, %v2451
  %v2457 = vadd.f32 %v2455, %v2456
  %v2458 = vtanh.pop %v2457
  %v2459 = vmul.f32 %v2450, %v2458
  %v2460 = vpack.c.bf16 %v2459, %v2459
  %v2462 = vrot.slane %v2460, 3
  %2464 = vmatprep.subr.bf16.mxu0 %v1952
  %2465 = vmatpush1.bf16.msra.mxu0 %v1951
  %2466 = vmatprep.subr.bf16.mxu0 %v1948
  %2467 = vmatpush1.bf16.msra.mxu0 %v1947
  %2468 = vmatprep.subr.bf16.mxu0 %v1944
  %2469 = vmatpush1.bf16.msra.mxu0 %v1943
  %2470 = vmatprep.subr.bf16.mxu0 %v1940
  %2471 = vmatpush1.bf16.msra.mxu0 %v1939
  %2472 = vmatprep.subr.bf16.mxu0 %v1936
  %2473 = vmatpush1.bf16.msra.mxu0 %v1935
  %2474 = vmatprep.subr.bf16.mxu0 %v1932
  %2475 = vmatpush1.bf16.msra.mxu0 %v1931
  %2476 = vmatprep.subr.bf16.mxu0 %v1928
  %2477 = vmatpush1.bf16.msra.mxu0 %v1927
  %2478 = vmatprep.subr.bf16.mxu0 %v1924
  %2479 = vmatpush1.bf16.msra.mxu0 %v1923
  %2480 = vmatprep.subr.bf16.mxu0 0
  %2481 = vmatpush2.bf16.msra.mxu0 0
  %2482 = vmatprep.subr.bf16.mxu0 0
  %2483 = vmatpush2.bf16.msra.mxu0 0
  %2484 = vmatprep.subr.bf16.mxu0 0
  %2485 = vmatpush2.bf16.msra.mxu0 0
  %2486 = vmatprep.subr.bf16.mxu0 0
  %2487 = vmatpush2.bf16.msra.mxu0 0
  %2488 = vmatprep.subr.bf16.mxu0 0
  %2489 = vmatpush2.bf16.msra.mxu0 0
  %2490 = vmatprep.subr.bf16.mxu0 0
  %2491 = vmatpush2.bf16.msra.mxu0 0
  %2492 = vmatprep.subr.bf16.mxu0 0
  %2493 = vmatpush2.bf16.msra.mxu0 0
  %2494 = vmatprep.subr.bf16.mxu0 0
  %2495 = vmatpush2.bf16.msra.mxu0 0
  %2496 = vmatprep.mubr.bf16.mxu0 0
  %2497 = vmatmul.mubr.bf16.gmra.mxu0 %v2462
  %v2498 = vpop.f32.mrf.mxu0
  %v2499 = vadd.f32 0.0, %v2498
  %v2500 = vpop.f32.mrf.mxu0
  %v2501 = vadd.f32 0.0, %v2500
  %v2502 = vpop.f32.mrf.mxu0
  %v2503 = vpop.f32.mrf.mxu0
  %2504 = vdwg.mxu0
  %2505 = vmatprep.subr.bf16.mxu0 %v1954
  %2506 = vmatpush1.bf16.msra.mxu0 %v1953
  %2507 = vmatprep.subr.bf16.mxu0 %v1950
  %2508 = vmatpush1.bf16.msra.mxu0 %v1949
  %2509 = vmatprep.subr.bf16.mxu0 %v1946
  %2510 = vmatpush1.bf16.msra.mxu0 %v1945
  %2511 = vmatprep.subr.bf16.mxu0 %v1942
  %2512 = vmatpush1.bf16.msra.mxu0 %v1941
  %2513 = vmatprep.subr.bf16.mxu0 %v1938
  %2514 = vmatpush1.bf16.msra.mxu0 %v1937
  %2515 = vmatprep.subr.bf16.mxu0 %v1934
  %2516 = vmatpush1.bf16.msra.mxu0 %v1933
  %2517 = vmatprep.subr.bf16.mxu0 %v1930
  %2518 = vmatpush1.bf16.msra.mxu0 %v1929
  %2519 = vmatprep.subr.bf16.mxu0 %v1926
  %2520 = vmatpush1.bf16.msra.mxu0 %v1925
  %2521 = vmatprep.subr.bf16.mxu0 0
  %2522 = vmatpush2.bf16.msra.mxu0 0
  %2523 = vmatprep.subr.bf16.mxu0 0
  %2524 = vmatpush2.bf16.msra.mxu0 0
  %2525 = vmatprep.subr.bf16.mxu0 0
  %2526 = vmatpush2.bf16.msra.mxu0 0
  %2527 = vmatprep.subr.bf16.mxu0 0
  %2528 = vmatpush2.bf16.msra.mxu0 0
  %2529 = vmatprep.subr.bf16.mxu0 0
  %2530 = vmatpush2.bf16.msra.mxu0 0
  %2531 = vmatprep.subr.bf16.mxu0 0
  %2532 = vmatpush2.bf16.msra.mxu0 0
  %2533 = vmatprep.subr.bf16.mxu0 0
  %2534 = vmatpush2.bf16.msra.mxu0 0
  %2535 = vmatprep.subr.bf16.mxu0 0
  %2536 = vmatpush2.bf16.msra.mxu0 0
  %2537 = vmatprep.mubr.bf16.mxu0 0
  %2538 = vmatmul.mubr.bf16.gmra.mxu0 %v2462
  %v2539 = vpop.f32.mrf.mxu0
  %v2540 = vadd.f32 0.0, %v2539
  %v2541 = vpop.f32.mrf.mxu0
  %v2542 = vadd.f32 0.0, %v2541
  %v2543 = vpop.f32.mrf.mxu0
  %v2544 = vpop.f32.mrf.mxu0
  %2545 = vdwg.mxu0
  %v2546 = vadd.f32 %v605, %v2499
  %v2547 = vadd.f32 %v607, %v2501
  %v2548 = vadd.f32 %v648, %v2540
  %v2549 = vadd.f32 %v650, %v2542
  %v2550 = vmul.f32 %v2546, 0.5
  %v2551 = vmul.f32 %v2547, 0.5
  %v2552 = vmul.f32 %v2548, 0.5
  %v2553 = vtanh.pop %v2550
  %v2554 = vtanh.pop %v2551
  %v2555 = vtanh.pop %v2552
  %v2556 = vmul.f32 %v2553, 0.5
  %v2557 = vmul.f32 %v2554, 0.5
  %v2558 = vmul.f32 %v2555, 0.5
  %v2559 = vadd.f32 %v2556, 0.5
  %v2560 = vadd.f32 %v2557, 0.5
  %v2561 = vadd.f32 %v2558, 0.5
  %v2562 = vtanh.pop %v2549
  %v2564 = vrot.slane %v2457, 6
  %v2566 = vmul.f32 %v2560, %v2564
  %v2567 = vmul.f32 %v2559, %v2562
  %v2568 = vadd.f32 %v2566, %v2567
  %v2569 = vtanh.pop %v2568
  %v2570 = vmul.f32 %v2561, %v2569
  %v2571 = vpack.c.bf16 %v2570, %v2570
  %2572 = vmatprep.subr.bf16.mxu0 %v1952
  %2573 = vmatpush1.bf16.msra.mxu0 %v1951
  %2574 = vmatprep.subr.bf16.mxu0 %v1948
  %2575 = vmatpush1.bf16.msra.mxu0 %v1947
  %2576 = vmatprep.subr.bf16.mxu0 %v1944
  %2577 = vmatpush1.bf16.msra.mxu0 %v1943
  %2578 = vmatprep.subr.bf16.mxu0 %v1940
  %2579 = vmatpush1.bf16.msra.mxu0 %v1939
  %2580 = vmatprep.subr.bf16.mxu0 %v1936
  %2581 = vmatpush1.bf16.msra.mxu0 %v1935
  %2582 = vmatprep.subr.bf16.mxu0 %v1932
  %2583 = vmatpush1.bf16.msra.mxu0 %v1931
  %2584 = vmatprep.subr.bf16.mxu0 %v1928
  %2585 = vmatpush1.bf16.msra.mxu0 %v1927
  %2586 = vmatprep.subr.bf16.mxu0 %v1924
  %2587 = vmatpush1.bf16.msra.mxu0 %v1923
  %2588 = vmatprep.subr.bf16.mxu0 0
  %2589 = vmatpush2.bf16.msra.mxu0 0
  %2590 = vmatprep.subr.bf16.mxu0 0
  %2591 = vmatpush2.bf16.msra.mxu0 0
  %2592 = vmatprep.subr.bf16.mxu0 0
  %2593 = vmatpush2.bf16.msra.mxu0 0
  %2594 = vmatprep.subr.bf16.mxu0 0
  %2595 = vmatpush2.bf16.msra.mxu0 0
  %2596 = vmatprep.subr.bf16.mxu0 0
  %2597 = vmatpush2.bf16.msra.mxu0 0
  %2598 = vmatprep.subr.bf16.mxu0 0
  %2599 = vmatpush2.bf16.msra.mxu0 0
  %2600 = vmatprep.subr.bf16.mxu0 0
  %2601 = vmatpush2.bf16.msra.mxu0 0
  %2602 = vmatprep.subr.bf16.mxu0 0
  %2603 = vmatpush2.bf16.msra.mxu0 0
  %2604 = vmatprep.mubr.bf16.mxu0 0
  %2605 = vmatmul.mubr.bf16.gmra.mxu0 %v2571
  %v2606 = vpop.f32.mrf.mxu0
  %v2607 = vadd.f32 0.0, %v2606
  %v2608 = vpop.f32.mrf.mxu0
  %v2609 = vadd.f32 0.0, %v2608
  %v2610 = vpop.f32.mrf.mxu0
  %v2611 = vpop.f32.mrf.mxu0
  %2612 = vdwg.mxu0
  %2613 = vmatprep.subr.bf16.mxu0 %v1954
  %2614 = vmatpush1.bf16.msra.mxu0 %v1953
  %2615 = vmatprep.subr.bf16.mxu0 %v1950
  %2616 = vmatpush1.bf16.msra.mxu0 %v1949
  %2617 = vmatprep.subr.bf16.mxu0 %v1946
  %2618 = vmatpush1.bf16.msra.mxu0 %v1945
  %2619 = vmatprep.subr.bf16.mxu0 %v1942
  %2620 = vmatpush1.bf16.msra.mxu0 %v1941
  %2621 = vmatprep.subr.bf16.mxu0 %v1938
  %2622 = vmatpush1.bf16.msra.mxu0 %v1937
  %2623 = vmatprep.subr.bf16.mxu0 %v1934
  %2624 = vmatpush1.bf16.msra.mxu0 %v1933
  %2625 = vmatprep.subr.bf16.mxu0 %v1930
  %2626 = vmatpush1.bf16.msra.mxu0 %v1929
  %2627 = vmatprep.subr.bf16.mxu0 %v1926
  %2628 = vmatpush1.bf16.msra.mxu0 %v1925
  %2629 = vmatprep.subr.bf16.mxu0 0
  %2630 = vmatpush2.bf16.msra.mxu0 0
  %2631 = vmatprep.subr.bf16.mxu0 0
  %2632 = vmatpush2.bf16.msra.mxu0 0
  %2633 = vmatprep.subr.bf16.mxu0 0
  %2634 = vmatpush2.bf16.msra.mxu0 0
  %2635 = vmatprep.subr.bf16.mxu0 0
  %2636 = vmatpush2.bf16.msra.mxu0 0
  %2637 = vmatprep.subr.bf16.mxu0 0
  %2638 = vmatpush2.bf16.msra.mxu0 0
  %2639 = vmatprep.subr.bf16.mxu0 0
  %2640 = vmatpush2.bf16.msra.mxu0 0
  %2641 = vmatprep.subr.bf16.mxu0 0
  %2642 = vmatpush2.bf16.msra.mxu0 0
  %2643 = vmatprep.subr.bf16.mxu0 0
  %2644 = vmatpush2.bf16.msra.mxu0 0
  %2645 = vmatprep.mubr.bf16.mxu0 0
  %2646 = vmatmul.mubr.bf16.gmra.mxu0 %v2571
  %v2647 = vpop.f32.mrf.mxu0
  %v2648 = vadd.f32 0.0, %v2647
  %v2649 = vpop.f32.mrf.mxu0
  %v2650 = vadd.f32 0.0, %v2649
  %v2651 = vpop.f32.mrf.mxu0
  %v2652 = vpop.f32.mrf.mxu0
  %2653 = vdwg.mxu0
  %v2658 = vrot.slane %v2607, 6
  %v2659 = vrot.slane %v2609, 6
  %v2660 = vrot.slane %v2648, 6
  %v2661 = vrot.slane %v2650, 6
  %v2666 = vadd.f32 %v605, %v2658
  %v2667 = vadd.f32 %v607, %v2659
  %v2668 = vadd.f32 %v648, %v2660
  %v2669 = vadd.f32 %v650, %v2661
  %v2670 = vmul.f32 %v2666, 0.5
  %v2671 = vmul.f32 %v2667, 0.5
  %v2672 = vmul.f32 %v2668, 0.5
  %v2673 = vtanh.pop %v2670
  %v2674 = vtanh.pop %v2671
  %v2675 = vtanh.pop %v2672
  %v2676 = vmul.f32 %v2673, 0.5
  %v2677 = vmul.f32 %v2674, 0.5
  %v2678 = vmul.f32 %v2675, 0.5
  %v2679 = vadd.f32 %v2676, 0.5
  %v2680 = vadd.f32 %v2677, 0.5
  %v2681 = vadd.f32 %v2678, 0.5
  %v2682 = vtanh.pop %v2669
  %v2684 = vrot.slane %v2568, 6
  %v2686 = vmul.f32 %v2680, %v2684
  %v2687 = vmul.f32 %v2679, %v2682
  %v2688 = vadd.f32 %v2686, %v2687
  %v2689 = vtanh.pop %v2688
  %v2690 = vmul.f32 %v2681, %v2689
  %v2691 = vpack.c.bf16 %v2690, %v2690
  %v2693 = vrot.slane %v2691, 1
  %2695 = vmatprep.subr.bf16.mxu0 %v1952
  %2696 = vmatpush1.bf16.msra.mxu0 %v1951
  %2697 = vmatprep.subr.bf16.mxu0 %v1948
  %2698 = vmatpush1.bf16.msra.mxu0 %v1947
  %2699 = vmatprep.subr.bf16.mxu0 %v1944
  %2700 = vmatpush1.bf16.msra.mxu0 %v1943
  %2701 = vmatprep.subr.bf16.mxu0 %v1940
  %2702 = vmatpush1.bf16.msra.mxu0 %v1939
  %2703 = vmatprep.subr.bf16.mxu0 %v1936
  %2704 = vmatpush1.bf16.msra.mxu0 %v1935
  %2705 = vmatprep.subr.bf16.mxu0 %v1932
  %2706 = vmatpush1.bf16.msra.mxu0 %v1931
  %2707 = vmatprep.subr.bf16.mxu0 %v1928
  %2708 = vmatpush1.bf16.msra.mxu0 %v1927
  %2709 = vmatprep.subr.bf16.mxu0 %v1924
  %2710 = vmatpush1.bf16.msra.mxu0 %v1923
  %2711 = vmatprep.subr.bf16.mxu0 0
  %2712 = vmatpush2.bf16.msra.mxu0 0
  %2713 = vmatprep.subr.bf16.mxu0 0
  %2714 = vmatpush2.bf16.msra.mxu0 0
  %2715 = vmatprep.subr.bf16.mxu0 0
  %2716 = vmatpush2.bf16.msra.mxu0 0
  %2717 = vmatprep.subr.bf16.mxu0 0
  %2718 = vmatpush2.bf16.msra.mxu0 0
  %2719 = vmatprep.subr.bf16.mxu0 0
  %2720 = vmatpush2.bf16.msra.mxu0 0
  %2721 = vmatprep.subr.bf16.mxu0 0
  %2722 = vmatpush2.bf16.msra.mxu0 0
  %2723 = vmatprep.subr.bf16.mxu0 0
  %2724 = vmatpush2.bf16.msra.mxu0 0
  %2725 = vmatprep.subr.bf16.mxu0 0
  %2726 = vmatpush2.bf16.msra.mxu0 0
  %2727 = vmatprep.mubr.bf16.mxu0 0
  %2728 = vmatmul.mubr.bf16.gmra.mxu0 %v2693
  %v2729 = vpop.f32.mrf.mxu0
  %v2730 = vadd.f32 0.0, %v2729
  %v2731 = vpop.f32.mrf.mxu0
  %v2732 = vadd.f32 0.0, %v2731
  %v2733 = vpop.f32.mrf.mxu0
  %v2734 = vpop.f32.mrf.mxu0
  %2735 = vdwg.mxu0
  %2736 = vmatprep.subr.bf16.mxu0 %v1954
  %2737 = vmatpush1.bf16.msra.mxu0 %v1953
  %2738 = vmatprep.subr.bf16.mxu0 %v1950
  %2739 = vmatpush1.bf16.msra.mxu0 %v1949
  %2740 = vmatprep.subr.bf16.mxu0 %v1946
  %2741 = vmatpush1.bf16.msra.mxu0 %v1945
  %2742 = vmatprep.subr.bf16.mxu0 %v1942
  %2743 = vmatpush1.bf16.msra.mxu0 %v1941
  %2744 = vmatprep.subr.bf16.mxu0 %v1938
  %2745 = vmatpush1.bf16.msra.mxu0 %v1937
  %2746 = vmatprep.subr.bf16.mxu0 %v1934
  %2747 = vmatpush1.bf16.msra.mxu0 %v1933
  %2748 = vmatprep.subr.bf16.mxu0 %v1930
  %2749 = vmatpush1.bf16.msra.mxu0 %v1929
  %2750 = vmatprep.subr.bf16.mxu0 %v1926
  %2751 = vmatpush1.bf16.msra.mxu0 %v1925
  %2752 = vmatprep.subr.bf16.mxu0 0
  %2753 = vmatpush2.bf16.msra.mxu0 0
  %2754 = vmatprep.subr.bf16.mxu0 0
  %2755 = vmatpush2.bf16.msra.mxu0 0
  %2756 = vmatprep.subr.bf16.mxu0 0
  %2757 = vmatpush2.bf16.msra.mxu0 0
  %2758 = vmatprep.subr.bf16.mxu0 0
  %2759 = vmatpush2.bf16.msra.mxu0 0
  %2760 = vmatprep.subr.bf16.mxu0 0
  %2761 = vmatpush2.bf16.msra.mxu0 0
  %2762 = vmatprep.subr.bf16.mxu0 0
  %2763 = vmatpush2.bf16.msra.mxu0 0
  %2764 = vmatprep.subr.bf16.mxu0 0
  %2765 = vmatpush2.bf16.msra.mxu0 0
  %2766 = vmatprep.subr.bf16.mxu0 0
  %2767 = vmatpush2.bf16.msra.mxu0 0
  %2768 = vmatprep.mubr.bf16.mxu0 0
  %2769 = vmatmul.mubr.bf16.gmra.mxu0 %v2693
  %v2770 = vpop.f32.mrf.mxu0
  %v2771 = vadd.f32 0.0, %v2770
  %v2772 = vpop.f32.mrf.mxu0
  %v2773 = vadd.f32 0.0, %v2772
  %v2774 = vpop.f32.mrf.mxu0
  %v2775 = vpop.f32.mrf.mxu0
  %2776 = vdwg.mxu0
  %v2781 = vrot.slane %v2730, 4
  %v2782 = vrot.slane %v2732, 4
  %v2783 = vrot.slane %v2771, 4
  %v2784 = vrot.slane %v2773, 4
  %v2789 = vadd.f32 %v605, %v2781
  %v2790 = vadd.f32 %v607, %v2782
  %v2791 = vadd.f32 %v648, %v2783
  %v2792 = vadd.f32 %v650, %v2784
  %v2793 = vmul.f32 %v2789, 0.5
  %v2794 = vmul.f32 %v2790, 0.5
  %v2795 = vmul.f32 %v2791, 0.5
  %v2796 = vtanh.pop %v2793
  %v2797 = vtanh.pop %v2794
  %v2798 = vtanh.pop %v2795
  %v2799 = vmul.f32 %v2796, 0.5
  %v2800 = vmul.f32 %v2797, 0.5
  %v2801 = vmul.f32 %v2798, 0.5
  %v2802 = vadd.f32 %v2799, 0.5
  %v2803 = vadd.f32 %v2800, 0.5
  %v2804 = vadd.f32 %v2801, 0.5
  %v2805 = vtanh.pop %v2792
  %v2807 = vrot.slane %v2688, 6
  %v2809 = vmul.f32 %v2803, %v2807
  %v2810 = vmul.f32 %v2802, %v2805
  %v2811 = vadd.f32 %v2809, %v2810
  %v2812 = vtanh.pop %v2811
  %v2813 = vmul.f32 %v2804, %v2812
  %v2814 = vpack.c.bf16 %v2813, %v2813
  %v2816 = vrot.slane %v2814, 2
  %2818 = vmatprep.subr.bf16.mxu0 %v1952
  %2819 = vmatpush1.bf16.msra.mxu0 %v1951
  %2820 = vmatprep.subr.bf16.mxu0 %v1948
  %2821 = vmatpush1.bf16.msra.mxu0 %v1947
  %2822 = vmatprep.subr.bf16.mxu0 %v1944
  %2823 = vmatpush1.bf16.msra.mxu0 %v1943
  %2824 = vmatprep.subr.bf16.mxu0 %v1940
  %2825 = vmatpush1.bf16.msra.mxu0 %v1939
  %2826 = vmatprep.subr.bf16.mxu0 %v1936
  %2827 = vmatpush1.bf16.msra.mxu0 %v1935
  %2828 = vmatprep.subr.bf16.mxu0 %v1932
  %2829 = vmatpush1.bf16.msra.mxu0 %v1931
  %2830 = vmatprep.subr.bf16.mxu0 %v1928
  %2831 = vmatpush1.bf16.msra.mxu0 %v1927
  %2832 = vmatprep.subr.bf16.mxu0 %v1924
  %2833 = vmatpush1.bf16.msra.mxu0 %v1923
  %2834 = vmatprep.subr.bf16.mxu0 0
  %2835 = vmatpush2.bf16.msra.mxu0 0
  %2836 = vmatprep.subr.bf16.mxu0 0
  %2837 = vmatpush2.bf16.msra.mxu0 0
  %2838 = vmatprep.subr.bf16.mxu0 0
  %2839 = vmatpush2.bf16.msra.mxu0 0
  %2840 = vmatprep.subr.bf16.mxu0 0
  %2841 = vmatpush2.bf16.msra.mxu0 0
  %2842 = vmatprep.subr.bf16.mxu0 0
  %2843 = vmatpush2.bf16.msra.mxu0 0
  %2844 = vmatprep.subr.bf16.mxu0 0
  %2845 = vmatpush2.bf16.msra.mxu0 0
  %2846 = vmatprep.subr.bf16.mxu0 0
  %2847 = vmatpush2.bf16.msra.mxu0 0
  %2848 = vmatprep.subr.bf16.mxu0 0
  %2849 = vmatpush2.bf16.msra.mxu0 0
  %2850 = vmatprep.mubr.bf16.mxu0 0
  %2851 = vmatmul.mubr.bf16.gmra.mxu0 %v2816
  %v2852 = vpop.f32.mrf.mxu0
  %v2853 = vadd.f32 0.0, %v2852
  %v2854 = vpop.f32.mrf.mxu0
  %v2855 = vadd.f32 0.0, %v2854
  %v2856 = vpop.f32.mrf.mxu0
  %v2857 = vpop.f32.mrf.mxu0
  %2858 = vdwg.mxu0
  %2859 = vmatprep.subr.bf16.mxu0 %v1954
  %2860 = vmatpush1.bf16.msra.mxu0 %v1953
  %2861 = vmatprep.subr.bf16.mxu0 %v1950
  %2862 = vmatpush1.bf16.msra.mxu0 %v1949
  %2863 = vmatprep.subr.bf16.mxu0 %v1946
  %2864 = vmatpush1.bf16.msra.mxu0 %v1945
  %2865 = vmatprep.subr.bf16.mxu0 %v1942
  %2866 = vmatpush1.bf16.msra.mxu0 %v1941
  %2867 = vmatprep.subr.bf16.mxu0 %v1938
  %2868 = vmatpush1.bf16.msra.mxu0 %v1937
  %2869 = vmatprep.subr.bf16.mxu0 %v1934
  %2870 = vmatpush1.bf16.msra.mxu0 %v1933
  %2871 = vmatprep.subr.bf16.mxu0 %v1930
  %2872 = vmatpush1.bf16.msra.mxu0 %v1929
  %2873 = vmatprep.subr.bf16.mxu0 %v1926
  %2874 = vmatpush1.bf16.msra.mxu0 %v1925
  %2875 = vmatprep.subr.bf16.mxu0 0
  %2876 = vmatpush2.bf16.msra.mxu0 0
  %2877 = vmatprep.subr.bf16.mxu0 0
  %2878 = vmatpush2.bf16.msra.mxu0 0
  %2879 = vmatprep.subr.bf16.mxu0 0
  %2880 = vmatpush2.bf16.msra.mxu0 0
  %2881 = vmatprep.subr.bf16.mxu0 0
  %2882 = vmatpush2.bf16.msra.mxu0 0
  %2883 = vmatprep.subr.bf16.mxu0 0
  %2884 = vmatpush2.bf16.msra.mxu0 0
  %2885 = vmatprep.subr.bf16.mxu0 0
  %2886 = vmatpush2.bf16.msra.mxu0 0
  %2887 = vmatprep.subr.bf16.mxu0 0
  %2888 = vmatpush2.bf16.msra.mxu0 0
  %2889 = vmatprep.subr.bf16.mxu0 0
  %2890 = vmatpush2.bf16.msra.mxu0 0
  %2891 = vmatprep.mubr.bf16.mxu0 0
  %2892 = vmatmul.mubr.bf16.gmra.mxu0 %v2816
  %v2893 = vpop.f32.mrf.mxu0
  %v2894 = vadd.f32 0.0, %v2893
  %v2895 = vpop.f32.mrf.mxu0
  %v2896 = vadd.f32 0.0, %v2895
  %v2897 = vpop.f32.mrf.mxu0
  %v2898 = vpop.f32.mrf.mxu0
  %2899 = vdwg.mxu0
  %v2904 = vrot.slane %v2853, 2
  %v2905 = vrot.slane %v2855, 2
  %v2906 = vrot.slane %v2894, 2
  %v2907 = vrot.slane %v2896, 2
  %v2912 = vadd.f32 %v605, %v2904
  %v2913 = vadd.f32 %v607, %v2905
  %v2914 = vadd.f32 %v648, %v2906
  %v2915 = vadd.f32 %v650, %v2907
  %v2916 = vmul.f32 %v2912, 0.5
  %v2917 = vmul.f32 %v2913, 0.5
  %v2918 = vmul.f32 %v2914, 0.5
  %v2919 = vtanh.pop %v2916
  %v2920 = vtanh.pop %v2917
  %v2921 = vtanh.pop %v2918
  %v2922 = vmul.f32 %v2919, 0.5
  %v2923 = vmul.f32 %v2920, 0.5
  %v2924 = vmul.f32 %v2921, 0.5
  %v2925 = vadd.f32 %v2922, 0.5
  %v2926 = vadd.f32 %v2923, 0.5
  %v2927 = vadd.f32 %v2924, 0.5
  %v2928 = vtanh.pop %v2915
  %v2930 = vrot.slane %v2811, 6
  %v2932 = vmul.f32 %v2926, %v2930
  %v2933 = vmul.f32 %v2925, %v2928
  %v2934 = vadd.f32 %v2932, %v2933
  %v2935 = vtanh.pop %v2934
  %v2936 = vmul.f32 %v2927, %v2935
  %v2937 = vpack.c.bf16 %v2936, %v2936
  %v2939 = vrot.slane %v2571, 4
  %v2940 = vrot.slane %v2691, 4
  %v2941 = vrot.slane %v2814, 4
  %v2943 = vrot.slane %v2937, 4
  %vm2944 = vcmask 1040384
  %v2947 = vsel %vm2944, %v2094, %v2214
  %vm2948 = vcmask 1041408
  %v2950 = vsel %vm2948, %v2947, %v2337
  %vm2951 = vcmask 1042432
  %v2953 = vsel %vm2951, %v2950, %v2460
  %vm2954 = vcmask 1043456
  %v2956 = vsel %vm2954, %v2953, %v2939
  %vm2957 = vcmask 1044480
  %v2959 = vsel %vm2957, %v2956, %v2940
  %vm2960 = vcmask 1045504
  %v2962 = vsel %vm2960, %v2959, %v2941
  %vm2963 = vcmask 1046528
  %v2965 = vsel %vm2963, %v2962, %v2943
  %v2967 = vld [vmem:[%s8] sm:$0xff]
  %v2968 = vld [vmem:[%s8 + $0x8] sm:$0xff]
  %v2969 = vld [vmem:[%s8 + $0x10] sm:$0xff]
  %v2970 = vld [vmem:[%s8 + $0x18] sm:$0xff]
  %v2971 = vld [vmem:[%s8 + $0x20] sm:$0xff]
  %v2972 = vld [vmem:[%s8 + $0x28] sm:$0xff]
  %v2973 = vld [vmem:[%s8 + $0x30] sm:$0xff]
  %v2974 = vld [vmem:[%s8 + $0x38] sm:$0xff]
  %v2975 = vld [vmem:[%s8 + $0x40] sm:$0xff]
  %v2976 = vld [vmem:[%s8 + $0x48] sm:$0xff]
  %v2977 = vld [vmem:[%s8 + $0x50] sm:$0xff]
  %v2978 = vld [vmem:[%s8 + $0x58] sm:$0xff]
  %v2979 = vld [vmem:[%s8 + $0x60] sm:$0xff]
  %v2980 = vld [vmem:[%s8 + $0x68] sm:$0xff]
  %v2981 = vld [vmem:[%s8 + $0x70] sm:$0xff]
  %v2982 = vld [vmem:[%s8 + $0x78] sm:$0xff]
  %v2983 = vld [vmem:[%s9] sm:$0x3]
  %v2985 = vlaneseq
  %v2986 = vshrl.u32 %v2985, 7
  %v2987 = vsub.s32 0, %v2986
  %v2988 = vrot.slane %v2983, %v2987
  %v2989 = vlaneseq
  %v2990 = vshrl.u32 %v2989, 7
  %v2991 = vsub.s32 1, %v2990
  %v2992 = vrot.slane %v2983, %v2991
  %v3011 = vunpack.c.l.b16 %v2967
  %v3012 = vunpack.c.h.b16 %v2967
  %v3013 = vunpack.c.l.b16 %v2968
  %v3014 = vunpack.c.h.b16 %v2968
  %v3015 = vunpack.c.l.b16 %v2969
  %v3016 = vunpack.c.h.b16 %v2969
  %v3017 = vunpack.c.l.b16 %v2970
  %v3018 = vunpack.c.h.b16 %v2970
  %v3019 = vunpack.c.l.b16 %v2971
  %v3020 = vunpack.c.h.b16 %v2971
  %v3021 = vunpack.c.l.b16 %v2972
  %v3022 = vunpack.c.h.b16 %v2972
  %v3023 = vunpack.c.l.b16 %v2973
  %v3024 = vunpack.c.h.b16 %v2973
  %v3025 = vunpack.c.l.b16 %v2974
  %v3026 = vunpack.c.h.b16 %v2974
  %v3027 = vunpack.c.l.b16 %v2975
  %v3028 = vunpack.c.h.b16 %v2975
  %v3029 = vunpack.c.l.b16 %v2976
  %v3030 = vunpack.c.h.b16 %v2976
  %v3031 = vunpack.c.l.b16 %v2977
  %v3032 = vunpack.c.h.b16 %v2977
  %v3033 = vunpack.c.l.b16 %v2978
  %v3034 = vunpack.c.h.b16 %v2978
  %v3035 = vunpack.c.l.b16 %v2979
  %v3036 = vunpack.c.h.b16 %v2979
  %v3037 = vunpack.c.l.b16 %v2980
  %v3038 = vunpack.c.h.b16 %v2980
  %v3039 = vunpack.c.l.b16 %v2981
  %v3040 = vunpack.c.h.b16 %v2981
  %v3041 = vunpack.c.l.b16 %v2982
  %v3042 = vunpack.c.h.b16 %v2982
  %v3043 = vpack.c.b16 %v3013, %v3011
  %v3044 = vpack.c.b16 %v3014, %v3012
  %v3045 = vpack.c.b16 %v3017, %v3015
  %v3046 = vpack.c.b16 %v3018, %v3016
  %v3047 = vpack.c.b16 %v3021, %v3019
  %v3048 = vpack.c.b16 %v3022, %v3020
  %v3049 = vpack.c.b16 %v3025, %v3023
  %v3050 = vpack.c.b16 %v3026, %v3024
  %v3051 = vpack.c.b16 %v3029, %v3027
  %v3052 = vpack.c.b16 %v3030, %v3028
  %v3053 = vpack.c.b16 %v3033, %v3031
  %v3054 = vpack.c.b16 %v3034, %v3032
  %v3055 = vpack.c.b16 %v3037, %v3035
  %v3056 = vpack.c.b16 %v3038, %v3036
  %v3057 = vpack.c.b16 %v3041, %v3039
  %v3058 = vpack.c.b16 %v3042, %v3040
  %3075 = vmatprep.subr.bf16.mxu0 %v3058
  %3076 = vmatpush1.bf16.msra.mxu0 %v3057
  %3077 = vmatprep.subr.bf16.mxu0 %v3056
  %3078 = vmatpush1.bf16.msra.mxu0 %v3055
  %3079 = vmatprep.subr.bf16.mxu0 %v3054
  %3080 = vmatpush1.bf16.msra.mxu0 %v3053
  %3081 = vmatprep.subr.bf16.mxu0 %v3052
  %3082 = vmatpush1.bf16.msra.mxu0 %v3051
  %3083 = vmatprep.subr.bf16.mxu0 %v3050
  %3084 = vmatpush1.bf16.msra.mxu0 %v3049
  %3085 = vmatprep.subr.bf16.mxu0 %v3048
  %3086 = vmatpush1.bf16.msra.mxu0 %v3047
  %3087 = vmatprep.subr.bf16.mxu0 %v3046
  %3088 = vmatpush1.bf16.msra.mxu0 %v3045
  %3089 = vmatprep.subr.bf16.mxu0 %v3044
  %3090 = vmatpush1.bf16.msra.mxu0 %v3043
  %3091 = vmatprep.subr.bf16.mxu0 0
  %3092 = vmatpush2.bf16.msra.mxu0 0
  %3093 = vmatprep.subr.bf16.mxu0 0
  %3094 = vmatpush2.bf16.msra.mxu0 0
  %3095 = vmatprep.subr.bf16.mxu0 0
  %3096 = vmatpush2.bf16.msra.mxu0 0
  %3097 = vmatprep.subr.bf16.mxu0 0
  %3098 = vmatpush2.bf16.msra.mxu0 0
  %3099 = vmatprep.subr.bf16.mxu0 0
  %3100 = vmatpush2.bf16.msra.mxu0 0
  %3101 = vmatprep.subr.bf16.mxu0 0
  %3102 = vmatpush2.bf16.msra.mxu0 0
  %3103 = vmatprep.subr.bf16.mxu0 0
  %3104 = vmatpush2.bf16.msra.mxu0 0
  %3105 = vmatprep.subr.bf16.mxu0 0
  %3106 = vmatpush2.bf16.msra.mxu0 0
  %3107 = vmatprep.mubr.bf16.mxu0 0
  %3108 = vmatmul.mubr.bf16.gmra.mxu0 %v2965
  %v3109 = vpop.f32.mrf.mxu0
  %v3110 = vadd.f32 %v2988, %v3109
  %v3111 = vpop.f32.mrf.mxu0
  %v3112 = vadd.f32 %v2992, %v3111
  %v3113 = vpop.f32.mrf.mxu0
  %v3114 = vadd.f32 %v2988, %v3113
  %v3115 = vpop.f32.mrf.mxu0
  %v3116 = vadd.f32 %v2992, %v3115
  %3117 = vdwg.mxu0
  %3118 = vst [vmem:[%s10] sm:$0xff] %v3110
  %3119 = vst [vmem:[%s10 + $0x8] sm:$0xff] %v3112
  %3120 = vst [vmem:[%s10 + $0x10] sm:$0xff] %v3114
  %3121 = vst [vmem:[%s10 + $0x18] sm:$0xff] %v3116
  // Predicated region
  $region42: #{denoising_autoencoder_forward.1} parent=0 // pred_check
    _
  $region43: #{denoising_autoencoder_forward.1} parent=0 // pred_check_branch
    %3123 = sbr.rel (0) target = $region45
  $region44: #{denoising_autoencoder_forward.1} parent=0 // pred_region
    _
  $region45: #{denoising_autoencoder_forward.1} parent=0 // pred_fallthru
    _
  // Predicated region
  $region46: #{denoising_autoencoder_forward.1} parent=0 // pred_check
    _
  $region47: #{denoising_autoencoder_forward.1} parent=0 // pred_check_branch
    %3125 = sbr.rel (0) target = $region49
  $region48: #{denoising_autoencoder_forward.1} parent=0 // pred_region
    _
  $region49: #{denoising_autoencoder_forward.1} parent=0 // pred_fallthru
    _

</llo_original>
